<compile_context>
chip_gen: v6e
topology: v6e:2x2x1
jax: 0.10.0
libtpu: 0.0.40
codegen_flags: <defaults>
</compile_context>

<pallas_src>
import functools

import jax
import jax.numpy as jnp
from jax.experimental import pallas as pl
from jax.experimental.pallas import tpu as pltpu

LN_EPS = 1e-5


def _layernorm(x, g, b):
    mu = jnp.mean(x, axis=-1, keepdims=True)
    var = jnp.mean((x - mu) ** 2, axis=-1, keepdims=True)
    return (x - mu) * jax.lax.rsqrt(var + LN_EPS) * g + b


def fused_encoder_kernel(
    x_ref, pos_ref,
    ln1_g_ref, ln1_b_ref,
    wqkv_ref, wproj_ref, bproj_ref,
    ln2_g_ref, ln2_b_ref,
    wfc1_ref, bfc1_ref, wfc2_ref, bfc2_ref,
    o_ref, attn_ref,
    acc_ref,
    *, num_heads, batch_tile, seq_len, gelu_approx,
):
    layer = pl.program_id(1)
    last_layer = pl.num_programs(1) - 1
    rows, C = acc_ref.shape
    hd = C // num_heads

    # x lives in VMEM across the 'arbitrary' layer axis; (re)load only at layer 0.
    @pl.when(layer == 0)
    def _():
        acc_ref[...] = x_ref[...].reshape(rows, C).astype(jnp.float32)

    x = acc_ref[...] + pos_ref[...].reshape(rows, C).astype(jnp.float32)   # (rows, C)

    # ---- Attention: LN1 -> qkv (scale pre-folded into q cols) -> softmax(QK^T)V -> proj
    xn = _layernorm(x, ln1_g_ref[0], ln1_b_ref[0])
    qkv = jnp.dot(xn.astype(jnp.bfloat16), wqkv_ref[0],
                  preferred_element_type=jnp.float32)                      # (rows, 3C)

    q = qkv[:, :C].reshape(batch_tile, seq_len, C).astype(jnp.bfloat16)
    k = qkv[:, C:2 * C].reshape(batch_tile, seq_len, C).astype(jnp.bfloat16)
    v = qkv[:, 2 * C:].reshape(batch_tile, seq_len, C).astype(jnp.bfloat16)

    probs, ctx_heads = [], []
    for h in range(num_heads):
        sl = slice(h * hd, (h + 1) * hd)
        logits = jnp.einsum("bnd,bmd->bnm", q[:, :, sl], k[:, :, sl],
                            preferred_element_type=jnp.float32)            # (Bt, N, N)
        logits = logits - jnp.max(logits, axis=-1, keepdims=True)
        e = jnp.exp(logits)
        # approx reciprocal (EUP): attention rows sum to 1 only to ~1e-3.
        p = e * pl.reciprocal(jnp.sum(e, axis=-1, keepdims=True), approx=True)
        probs.append(p)
        ctx_heads.append(jnp.einsum("bnm,bmd->bnd", p.astype(jnp.bfloat16), v[:, :, sl],
                                    preferred_element_type=jnp.float32))   # (Bt, N, hd)

    # Head-major lane concat (== torch (attn@v).transpose.reshape order), then one
    # full-contraction (rows, C) x (C, C) projection matmul.
    ctx = jnp.concatenate(ctx_heads, axis=-1).reshape(rows, C)
    x = x + jnp.dot(ctx.astype(jnp.bfloat16), wproj_ref[0],
                    preferred_element_type=jnp.float32) + bproj_ref[0]

    # ---- MLP: LN2 -> fc1 -> GELU -> fc2
    xn2 = _layernorm(x, ln2_g_ref[0], ln2_b_ref[0])
    h1 = jnp.dot(xn2.astype(jnp.bfloat16), wfc1_ref[0],
                 preferred_element_type=jnp.float32) + bfc1_ref[0]
    h1 = jax.nn.gelu(h1, approximate=gelu_approx)
    h2 = jnp.dot(h1.astype(jnp.bfloat16), wfc2_ref[0],
                 preferred_element_type=jnp.float32) + bfc2_ref[0]
    x = x + h2

    acc_ref[...] = x

    # Outputs are resident across the layer axis -> only the last layer's store matters.
    @pl.when(layer == last_layer)
    def _():
        o_ref[...] = x.reshape(batch_tile, seq_len, C).astype(o_ref.dtype)
        attn_ref[...] = jnp.stack(probs, axis=1).astype(attn_ref.dtype)    # (Bt, H, N, N)


def _pick_batch_tile(B, N, target_rows=256):
    bt = min(B, max(1, -(-target_rows // N)))
    while B % bt:          # largest divisor of B <= bt
        bt -= 1
    return bt


def _vmem_limit_bytes(bt, N, C, hidden, H):
    rows = bt * N
    pad = lambda n: -(-n // 128) * 128
    # per-layer bf16 weights + f32 biases/LN params (double-buffered by the pipeline)
    w_layer = 2 * (4 * C * C + 2 * C * hidden) + 4 * (4 * C + hidden)
    # x / pos / out / attn blocks (f32), double-buffered; attn last dim lane-padded
    act_blk = 4 * (3 * rows * pad(C) + bt * H * N * pad(N))
    # resident f32 accumulator + in-kernel temporaries (qkv, h1, ctx, per-head logits)
    tmp = (4 * rows * pad(C)
           + 4 * rows * (3 * pad(C) + pad(hidden) + pad(C))
           + 2 * rows * (3 * pad(C) + pad(hidden))
           + 4 * 2 * bt * H * N * pad(N))
    est = 2 * (w_layer + act_blk) + tmp + (8 << 20)
    try:
        cap = int(pltpu.get_tpu_info().vmem_capacity_bytes)
    except Exception:
        cap = 64 << 20     # conservative fallback (v7x per-core VMEM)
    return int(min(max(est, 32 << 20), int(cap * 0.85)))


def transformer_encoder_forward(x, pos, params, num_heads, *, batch_tile=None,
                                gelu_approx=True):
    B, N, C = x.shape
    assert C % num_heads == 0, "embed dim must be divisible by num_heads"
    H = num_heads
    depth = params["wqkv"].shape[0]
    hidden = params["wfc1"].shape[-1]

    bt = _pick_batch_tile(B, N) if batch_tile is None else batch_tile
    assert B % bt == 0

    def lyr(shape):
        nd = len(shape)
        return pl.BlockSpec((1,) + shape, lambda b, l, nd=nd: (l,) + (0,) * nd)

    seq = pl.BlockSpec((bt, N, C), lambda b, l: (b, 0, 0))

    in_specs = [
        seq, seq,                        # x, pos
        lyr((1, C)), lyr((1, C)),        # ln1 gamma/beta
        lyr((C, 3 * C)),                 # wqkv (bf16, scale folded into q cols)
        lyr((C, C)), lyr((1, C)),        # wproj (bf16, single K=C matmul), bproj
        lyr((1, C)), lyr((1, C)),        # ln2 gamma/beta
        lyr((C, hidden)), lyr((1, hidden)),
        lyr((hidden, C)), lyr((1, C)),
    ]
    out_specs = (
        pl.BlockSpec((bt, N, C), lambda b, l: (b, 0, 0)),
        pl.BlockSpec((bt, H, N, N), lambda b, l: (b, 0, 0, 0)),
    )
    out_shape = (
        jax.ShapeDtypeStruct((B, N, C), x.dtype),
        jax.ShapeDtypeStruct((B, H, N, N), jnp.float32),
    )

    kernel = functools.partial(fused_encoder_kernel, num_heads=num_heads,
                               batch_tile=bt, seq_len=N, gelu_approx=gelu_approx)
    return pl.pallas_call(
        kernel,
        grid=(B // bt, depth),
        in_specs=in_specs,
        out_specs=out_specs,
        out_shape=out_shape,
        scratch_shapes=[pltpu.VMEM((bt * N, C), jnp.float32)],
        compiler_params=pltpu.CompilerParams(
            dimension_semantics=("parallel", "arbitrary"),
            vmem_limit_bytes=_vmem_limit_bytes(bt, N, C, hidden, H)),
    )(
        x, pos,
        params["ln1_g"], params["ln1_b"],
        params["wqkv"],
        params["wproj"], params["bproj"],
        params["ln2_g"], params["ln2_b"],
        params["wfc1"], params["bfc1"],
        params["wfc2"], params["bfc2"],
    )


def xavier_uniform(key, fan_in, fan_out):
    bound = (6.0 / (fan_in + fan_out)) ** 0.5
    return jax.random.uniform(key, (fan_in, fan_out), jnp.float32, -bound, bound)


def init_encoder_params(key, embed_dim, depth, num_heads, mlp_ratio=4):
    C, H = embed_dim, num_heads
    hd = C // H
    hidden = int(C * mlp_ratio)
    scale = float(hd ** -0.5)

    cols = {k: [] for k in ("ln1_g", "ln1_b", "wqkv", "wproj", "bproj",
                            "ln2_g", "ln2_b", "wfc1", "bfc1", "wfc2", "bfc2")}
    for _ in range(depth):
        key, k1, k2, k3, k4 = jax.random.split(key, 5)
        w_qkv = xavier_uniform(k1, C, 3 * C)
        # Fold the attention scale (head_dim**-0.5) into the q columns.
        w_qkv = w_qkv.at[:, :C].multiply(scale)
        cols["ln1_g"].append(jnp.ones((1, C), jnp.float32))
        cols["ln1_b"].append(jnp.zeros((1, C), jnp.float32))
        cols["wqkv"].append(w_qkv.astype(jnp.bfloat16))                      # qkv_bias=False
        cols["wproj"].append(xavier_uniform(k2, C, C).astype(jnp.bfloat16))  # (C, C)
        cols["bproj"].append(jnp.zeros((1, C), jnp.float32))
        cols["ln2_g"].append(jnp.ones((1, C), jnp.float32))
        cols["ln2_b"].append(jnp.zeros((1, C), jnp.float32))
        cols["wfc1"].append(xavier_uniform(k3, C, hidden).astype(jnp.bfloat16))
        cols["bfc1"].append(jnp.zeros((1, hidden), jnp.float32))
        cols["wfc2"].append(xavier_uniform(k4, hidden, C).astype(jnp.bfloat16))
        cols["bfc2"].append(jnp.zeros((1, C), jnp.float32))
    return {k: jnp.stack(v, axis=0) for k, v in cols.items()}


def _reference_forward(x, pos, params, num_heads):
    """Pure-JAX f32 reference of the same core path (same bf16 weights, exact erf GELU)."""
    B, N, C = x.shape
    H = num_heads
    hd = C // H
    depth = params["wqkv"].shape[0]
    attn_w = None
    for l in range(depth):
        xp = x + pos
        xn = _layernorm(xp, params["ln1_g"][l], params["ln1_b"][l])
        qkv = xn @ params["wqkv"][l].astype(jnp.float32)                      # (B,N,3C)
        q = qkv[..., :C].reshape(B, N, H, hd).transpose(0, 2, 1, 3)
        k = qkv[..., C:2 * C].reshape(B, N, H, hd).transpose(0, 2, 1, 3)
        v = qkv[..., 2 * C:].reshape(B, N, H, hd).transpose(0, 2, 1, 3)
        logits = q @ jnp.swapaxes(k, -1, -2)                                  # scale already folded
        p = jax.nn.softmax(logits, axis=-1)
        attn_w = p
        ctx = (p @ v).transpose(0, 2, 1, 3).reshape(B, N, C)
        xa = xp + ctx @ params["wproj"][l].astype(jnp.float32) + params["bproj"][l]
        xn2 = _layernorm(xa, params["ln2_g"][l], params["ln2_b"][l])
        h1 = jax.nn.gelu(xn2 @ params["wfc1"][l].astype(jnp.float32) + params["bfc1"][l],
                         approximate=False)
        h2 = h1 @ params["wfc2"][l].astype(jnp.float32) + params["bfc2"][l]
        x = xa + h2
    return x, attn_w


if __name__ == "__main__":
    B, N, C = 2, 16, 128
    num_heads = 4
    depth = 2

    key = jax.random.PRNGKey(0)
    kx, kp, kw = jax.random.split(key, 3)
    x = jax.random.normal(kx, (B, N, C), jnp.float32)
    pos = jax.random.normal(kp, (B, N, C), jnp.float32)

    params = init_encoder_params(kw, C, depth, num_heads, mlp_ratio=4)

    out, attn_w = transformer_encoder_forward(x, pos, params, num_heads)
    out, attn_w = jax.block_until_ready((out, attn_w))

    assert out.shape == (B, N, C)
    assert attn_w.shape == (B, num_heads, N, N)
    assert bool(jnp.all(jnp.isfinite(out))) and bool(jnp.all(jnp.isfinite(attn_w)))

    # Loose check vs. a pure-JAX f32 reference (bf16 matmul inputs, approx reciprocal
    # in softmax, tanh GELU vs exact erf; accumulation is f32 in both).
    ref_out, ref_attn = _reference_forward(x, pos, params, num_heads)
    max_err = float(jnp.max(jnp.abs(out - ref_out)))
    rel_err = float(jnp.linalg.norm(out - ref_out) / jnp.linalg.norm(ref_out))
    assert max_err < 0.5 and rel_err < 0.05, (max_err, rel_err)
    assert float(jnp.max(jnp.abs(attn_w - ref_attn))) < 0.05

    print("KERNEL_OK")
</pallas_src>

<mosaic_0001>
module attributes {stable_mosaic.version = 11 : i64} {
  func.func @fused_encoder_kernel(%arg0: i32, %arg1: i32, %arg2: memref<2x16x128xf32, #tpu.memory_space<vmem>>, %arg3: memref<2x16x128xf32, #tpu.memory_space<vmem>>, %arg4: memref<1x1x128xf32, #tpu.memory_space<vmem>>, %arg5: memref<1x1x128xf32, #tpu.memory_space<vmem>>, %arg6: memref<1x128x384xbf16, #tpu.memory_space<vmem>>, %arg7: memref<1x128x128xbf16, #tpu.memory_space<vmem>>, %arg8: memref<1x1x128xf32, #tpu.memory_space<vmem>>, %arg9: memref<1x1x128xf32, #tpu.memory_space<vmem>>, %arg10: memref<1x1x128xf32, #tpu.memory_space<vmem>>, %arg11: memref<1x128x512xbf16, #tpu.memory_space<vmem>>, %arg12: memref<1x1x512xf32, #tpu.memory_space<vmem>>, %arg13: memref<1x512x128xbf16, #tpu.memory_space<vmem>>, %arg14: memref<1x1x128xf32, #tpu.memory_space<vmem>>, %arg15: memref<2x16x128xf32, #tpu.memory_space<vmem>>, %arg16: memref<2x4x16x16xf32, #tpu.memory_space<vmem>>, %arg17: memref<32x128xf32, #tpu.memory_space<vmem>>) attributes {dimension_semantics = [#tpu.dimension_semantics<parallel>, #tpu.dimension_semantics<arbitrary>], iteration_bounds = array<i64: 1, 2>, scalar_prefetch = 0 : i64, scratch_operands = 1 : i64, tpu.core_type = #tpu.core_type<tc>, window_params = [{transform_indices = @transform_0, window_bounds = array<i64: 2, 16, 128>}, {transform_indices = @transform_1, window_bounds = array<i64: 2, 16, 128>}, {transform_indices = @transform_2, window_bounds = array<i64: 1, 1, 128>}, {transform_indices = @transform_3, window_bounds = array<i64: 1, 1, 128>}, {transform_indices = @transform_4, window_bounds = array<i64: 1, 128, 384>}, {transform_indices = @transform_5, window_bounds = array<i64: 1, 128, 128>}, {transform_indices = @transform_6, window_bounds = array<i64: 1, 1, 128>}, {transform_indices = @transform_7, window_bounds = array<i64: 1, 1, 128>}, {transform_indices = @transform_8, window_bounds = array<i64: 1, 1, 128>}, {transform_indices = @transform_9, window_bounds = array<i64: 1, 128, 512>}, {transform_indices = @transform_10, window_bounds = array<i64: 1, 1, 512>}, {transform_indices = @transform_11, window_bounds = array<i64: 1, 512, 128>}, {transform_indices = @transform_12, window_bounds = array<i64: 1, 1, 128>}, {transform_indices = @transform_13, window_bounds = array<i64: 2, 16, 128>}, {transform_indices = @transform_14, window_bounds = array<i64: 2, 4, 16, 16>}]} {
    %c0_i32 = arith.constant 0 : i32
    %0 = arith.cmpi eq, %arg1, %c0_i32 : i32
    %1 = arith.extui %0 : i1 to i32
    %c0_i32_0 = arith.constant 0 : i32
    %2 = arith.cmpi ne, %1, %c0_i32_0 : i32
    scf.if %2 {
      %c0_74 = arith.constant 0 : index
      %c0_75 = arith.constant 0 : index
      %c0_76 = arith.constant 0 : index
      %181 = vector.load %arg2[%c0_74, %c0_75, %c0_76] : memref<2x16x128xf32, #tpu.memory_space<vmem>>, vector<2x16x128xf32>
      %182 = vector.shape_cast %181 : vector<2x16x128xf32> to vector<32x128xf32>
      %c0_77 = arith.constant 0 : index
      %c0_78 = arith.constant 0 : index
      %183 = vector.load %arg17[%c0_77, %c0_78] : memref<32x128xf32, #tpu.memory_space<vmem>>, vector<32x128xf32>
      tpu.vector_store %arg17[%c0_77, %c0_78], %182 {strides = array<i32>} : memref<32x128xf32, #tpu.memory_space<vmem>>, vector<32x128xf32>,
    } else {
    }
    %c0 = arith.constant 0 : index
    %c0_1 = arith.constant 0 : index
    %3 = vector.load %arg17[%c0, %c0_1] : memref<32x128xf32, #tpu.memory_space<vmem>>, vector<32x128xf32>
    %c0_2 = arith.constant 0 : index
    %c0_3 = arith.constant 0 : index
    %c0_4 = arith.constant 0 : index
    %4 = vector.load %arg3[%c0_2, %c0_3, %c0_4] : memref<2x16x128xf32, #tpu.memory_space<vmem>>, vector<2x16x128xf32>
    %5 = vector.shape_cast %4 : vector<2x16x128xf32> to vector<32x128xf32>
    %6 = arith.addf %3, %5 : vector<32x128xf32>
    %c0_5 = arith.constant 0 : index
    %c0_6 = arith.constant 0 : index
    %c0_7 = arith.constant 0 : index
    %7 = vector.load %arg4[%c0_5, %c0_6, %c0_7] : memref<1x1x128xf32, #tpu.memory_space<vmem>>, vector<1x1x128xf32>
    %8 = vector.shape_cast %7 : vector<1x1x128xf32> to vector<1x128xf32>
    %c0_8 = arith.constant 0 : index
    %c0_9 = arith.constant 0 : index
    %c0_10 = arith.constant 0 : index
    %9 = vector.load %arg5[%c0_8, %c0_9, %c0_10] : memref<1x1x128xf32, #tpu.memory_space<vmem>>, vector<1x1x128xf32>
    %10 = vector.shape_cast %9 : vector<1x1x128xf32> to vector<1x128xf32>
    %cst = arith.constant dense<0.000000e+00> : vector<32xf32>
    %11 = vector.multi_reduction <add>, %6, %cst [1] : vector<32x128xf32> to vector<32xf32>
    %12 = vector.shape_cast %11 : vector<32xf32> to vector<32x1xf32>
    %cst_11 = arith.constant 1.280000e+02 : f32
    %13 = vector.broadcast %cst_11 : f32 to vector<32x1xf32>
    %14 = arith.divf %12, %13 : vector<32x1xf32>
    %15 = vector.broadcast %14 : vector<32x1xf32> to vector<32x128xf32>
    %16 = arith.subf %6, %15 : vector<32x128xf32>
    %17 = arith.mulf %16, %16 : vector<32x128xf32>
    %cst_12 = arith.constant dense<0.000000e+00> : vector<32xf32>
    %18 = vector.multi_reduction <add>, %17, %cst_12 [1] : vector<32x128xf32> to vector<32xf32>
    %19 = vector.shape_cast %18 : vector<32xf32> to vector<32x1xf32>
    %cst_13 = arith.constant 1.280000e+02 : f32
    %20 = vector.broadcast %cst_13 : f32 to vector<32x1xf32>
    %21 = arith.divf %19, %20 : vector<32x1xf32>
    %22 = vector.broadcast %14 : vector<32x1xf32> to vector<32x128xf32>
    %23 = arith.subf %6, %22 : vector<32x128xf32>
    %cst_14 = arith.constant 9.99999974E-6 : f32
    %24 = vector.broadcast %cst_14 : f32 to vector<32x1xf32>
    %25 = arith.addf %21, %24 : vector<32x1xf32>
    %26 = math.rsqrt %25 : vector<32x1xf32>
    %27 = vector.broadcast %26 : vector<32x1xf32> to vector<32x128xf32>
    %28 = arith.mulf %23, %27 : vector<32x128xf32>
    %29 = vector.broadcast %8 : vector<1x128xf32> to vector<32x128xf32>
    %30 = arith.mulf %28, %29 : vector<32x128xf32>
    %31 = vector.broadcast %10 : vector<1x128xf32> to vector<32x128xf32>
    %32 = arith.addf %30, %31 : vector<32x128xf32>
    %33 = arith.truncf %32 : vector<32x128xf32> to vector<32x128xbf16>
    %c0_15 = arith.constant 0 : index
    %c0_16 = arith.constant 0 : index
    %c0_17 = arith.constant 0 : index
    %34 = vector.load %arg6[%c0_15, %c0_16, %c0_17] : memref<1x128x384xbf16, #tpu.memory_space<vmem>>, vector<1x128x384xbf16>
    %35 = vector.shape_cast %34 : vector<1x128x384xbf16> to vector<128x384xbf16>
    %cst_18 = arith.constant dense<0.000000e+00> : vector<32x384xf32>
    %36 = tpu.matmul %33, %35, %cst_18 {dimension_numbers = #tpu.dot_dimension_numbers<[1], [0], [0], [1], [0, 0, 1, 1], [], []>} : vector<32x128xbf16>, vector<128x384xbf16>, vector<32x384xf32> -> vector<32x384xf32>
    %37 = vector.extract_strided_slice %36 {offsets = [0, 0], sizes = [32, 128], strides = [1, 1]} : vector<32x384xf32> to vector<32x128xf32>
    %38 = vector.shape_cast %37 : vector<32x128xf32> to vector<2x16x128xf32>
    %39 = arith.truncf %38 : vector<2x16x128xf32> to vector<2x16x128xbf16>
    %40 = vector.extract_strided_slice %36 {offsets = [0, 128], sizes = [32, 128], strides = [1, 1]} : vector<32x384xf32> to vector<32x128xf32>
    %41 = vector.shape_cast %40 : vector<32x128xf32> to vector<2x16x128xf32>
    %42 = arith.truncf %41 : vector<2x16x128xf32> to vector<2x16x128xbf16>
    %43 = vector.extract_strided_slice %36 {offsets = [0, 256], sizes = [32, 128], strides = [1, 1]} : vector<32x384xf32> to vector<32x128xf32>
    %44 = vector.shape_cast %43 : vector<32x128xf32> to vector<2x16x128xf32>
    %45 = arith.truncf %44 : vector<2x16x128xf32> to vector<2x16x128xbf16>
    %46 = vector.extract_strided_slice %39 {offsets = [0, 0, 0], sizes = [2, 16, 32], strides = [1, 1, 1]} : vector<2x16x128xbf16> to vector<2x16x32xbf16>
    %47 = vector.extract_strided_slice %42 {offsets = [0, 0, 0], sizes = [2, 16, 32], strides = [1, 1, 1]} : vector<2x16x128xbf16> to vector<2x16x32xbf16>
    "tpu.trace_start"() <{level = 10 : i32, message = "bnd,bmd->bnm"}> : () -> ()
    %cst_19 = arith.constant dense<0.000000e+00> : vector<2x16x16xf32>
    %48 = tpu.matmul %46, %47, %cst_19 {dimension_numbers = #tpu.dot_dimension_numbers<[2], [2], [1], [1], [0, 0, 0, 1, 1, 1], [0], [0]>} : vector<2x16x32xbf16>, vector<2x16x32xbf16>, vector<2x16x16xf32> -> vector<2x16x16xf32>
    "tpu.trace_stop"() : () -> ()
    %cst_20 = arith.constant dense<0xFF800000> : vector<2x16xf32>
    %49 = vector.multi_reduction <maximumf>, %48, %cst_20 [2] : vector<2x16x16xf32> to vector<2x16xf32>
    %50 = vector.shape_cast %49 : vector<2x16xf32> to vector<2x16x1xf32>
    %51 = vector.broadcast %50 : vector<2x16x1xf32> to vector<2x16x16xf32>
    %52 = arith.subf %48, %51 : vector<2x16x16xf32>
    %53 = math.exp %52 : vector<2x16x16xf32>
    %cst_21 = arith.constant dense<0.000000e+00> : vector<2x16xf32>
    %54 = vector.multi_reduction <add>, %53, %cst_21 [2] : vector<2x16x16xf32> to vector<2x16xf32>
    %55 = vector.shape_cast %54 : vector<2x16xf32> to vector<2x16x1xf32>
    %56 = tpu.reciprocal %55 {approx = true} : vector<2x16x1xf32> -> vector<2x16x1xf32>
    %57 = vector.broadcast %56 : vector<2x16x1xf32> to vector<2x16x16xf32>
    %58 = arith.mulf %53, %57 : vector<2x16x16xf32>
    %59 = arith.truncf %58 : vector<2x16x16xf32> to vector<2x16x16xbf16>
    %60 = vector.extract_strided_slice %45 {offsets = [0, 0, 0], sizes = [2, 16, 32], strides = [1, 1, 1]} : vector<2x16x128xbf16> to vector<2x16x32xbf16>
    "tpu.trace_start"() <{level = 10 : i32, message = "bnm,bmd->bnd"}> : () -> ()
    %cst_22 = arith.constant dense<0.000000e+00> : vector<2x16x32xf32>
    %61 = tpu.matmul %59, %60, %cst_22 {dimension_numbers = #tpu.dot_dimension_numbers<[2], [1], [1], [2], [0, 0, 0, 1, 1, 2], [0], [0]>} : vector<2x16x16xbf16>, vector<2x16x32xbf16>, vector<2x16x32xf32> -> vector<2x16x32xf32>
    "tpu.trace_stop"() : () -> ()
    %62 = vector.extract_strided_slice %39 {offsets = [0, 0, 32], sizes = [2, 16, 32], strides = [1, 1, 1]} : vector<2x16x128xbf16> to vector<2x16x32xbf16>
    %63 = vector.extract_strided_slice %42 {offsets = [0, 0, 32], sizes = [2, 16, 32], strides = [1, 1, 1]} : vector<2x16x128xbf16> to vector<2x16x32xbf16>
    "tpu.trace_start"() <{level = 10 : i32, message = "bnd,bmd->bnm"}> : () -> ()
    %cst_23 = arith.constant dense<0.000000e+00> : vector<2x16x16xf32>
    %64 = tpu.matmul %62, %63, %cst_23 {dimension_numbers = #tpu.dot_dimension_numbers<[2], [2], [1], [1], [0, 0, 0, 1, 1, 1], [0], [0]>} : vector<2x16x32xbf16>, vector<2x16x32xbf16>, vector<2x16x16xf32> -> vector<2x16x16xf32>
    "tpu.trace_stop"() : () -> ()
    %cst_24 = arith.constant dense<0xFF800000> : vector<2x16xf32>
    %65 = vector.multi_reduction <maximumf>, %64, %cst_24 [2] : vector<2x16x16xf32> to vector<2x16xf32>
    %66 = vector.shape_cast %65 : vector<2x16xf32> to vector<2x16x1xf32>
    %67 = vector.broadcast %66 : vector<2x16x1xf32> to vector<2x16x16xf32>
    %68 = arith.subf %64, %67 : vector<2x16x16xf32>
    %69 = math.exp %68 : vector<2x16x16xf32>
    %cst_25 = arith.constant dense<0.000000e+00> : vector<2x16xf32>
    %70 = vector.multi_reduction <add>, %69, %cst_25 [2] : vector<2x16x16xf32> to vector<2x16xf32>
    %71 = vector.shape_cast %70 : vector<2x16xf32> to vector<2x16x1xf32>
    %72 = tpu.reciprocal %71 {approx = true} : vector<2x16x1xf32> -> vector<2x16x1xf32>
    %73 = vector.broadcast %72 : vector<2x16x1xf32> to vector<2x16x16xf32>
    %74 = arith.mulf %69, %73 : vector<2x16x16xf32>
    %75 = arith.truncf %74 : vector<2x16x16xf32> to vector<2x16x16xbf16>
    %76 = vector.extract_strided_slice %45 {offsets = [0, 0, 32], sizes = [2, 16, 32], strides = [1, 1, 1]} : vector<2x16x128xbf16> to vector<2x16x32xbf16>
    "tpu.trace_start"() <{level = 10 : i32, message = "bnm,bmd->bnd"}> : () -> ()
    %cst_26 = arith.constant dense<0.000000e+00> : vector<2x16x32xf32>
    %77 = tpu.matmul %75, %76, %cst_26 {dimension_numbers = #tpu.dot_dimension_numbers<[2], [1], [1], [2], [0, 0, 0, 1, 1, 2], [0], [0]>} : vector<2x16x16xbf16>, vector<2x16x32xbf16>, vector<2x16x32xf32> -> vector<2x16x32xf32>
    "tpu.trace_stop"() : () -> ()
    %78 = vector.extract_strided_slice %39 {offsets = [0, 0, 64], sizes = [2, 16, 32], strides = [1, 1, 1]} : vector<2x16x128xbf16> to vector<2x16x32xbf16>
    %79 = vector.extract_strided_slice %42 {offsets = [0, 0, 64], sizes = [2, 16, 32], strides = [1, 1, 1]} : vector<2x16x128xbf16> to vector<2x16x32xbf16>
    "tpu.trace_start"() <{level = 10 : i32, message = "bnd,bmd->bnm"}> : () -> ()
    %cst_27 = arith.constant dense<0.000000e+00> : vector<2x16x16xf32>
    %80 = tpu.matmul %78, %79, %cst_27 {dimension_numbers = #tpu.dot_dimension_numbers<[2], [2], [1], [1], [0, 0, 0, 1, 1, 1], [0], [0]>} : vector<2x16x32xbf16>, vector<2x16x32xbf16>, vector<2x16x16xf32> -> vector<2x16x16xf32>
    "tpu.trace_stop"() : () -> ()
    %cst_28 = arith.constant dense<0xFF800000> : vector<2x16xf32>
    %81 = vector.multi_reduction <maximumf>, %80, %cst_28 [2] : vector<2x16x16xf32> to vector<2x16xf32>
    %82 = vector.shape_cast %81 : vector<2x16xf32> to vector<2x16x1xf32>
    %83 = vector.broadcast %82 : vector<2x16x1xf32> to vector<2x16x16xf32>
    %84 = arith.subf %80, %83 : vector<2x16x16xf32>
    %85 = math.exp %84 : vector<2x16x16xf32>
    %cst_29 = arith.constant dense<0.000000e+00> : vector<2x16xf32>
    %86 = vector.multi_reduction <add>, %85, %cst_29 [2] : vector<2x16x16xf32> to vector<2x16xf32>
    %87 = vector.shape_cast %86 : vector<2x16xf32> to vector<2x16x1xf32>
    %88 = tpu.reciprocal %87 {approx = true} : vector<2x16x1xf32> -> vector<2x16x1xf32>
    %89 = vector.broadcast %88 : vector<2x16x1xf32> to vector<2x16x16xf32>
    %90 = arith.mulf %85, %89 : vector<2x16x16xf32>
    %91 = arith.truncf %90 : vector<2x16x16xf32> to vector<2x16x16xbf16>
    %92 = vector.extract_strided_slice %45 {offsets = [0, 0, 64], sizes = [2, 16, 32], strides = [1, 1, 1]} : vector<2x16x128xbf16> to vector<2x16x32xbf16>
    "tpu.trace_start"() <{level = 10 : i32, message = "bnm,bmd->bnd"}> : () -> ()
    %cst_30 = arith.constant dense<0.000000e+00> : vector<2x16x32xf32>
    %93 = tpu.matmul %91, %92, %cst_30 {dimension_numbers = #tpu.dot_dimension_numbers<[2], [1], [1], [2], [0, 0, 0, 1, 1, 2], [0], [0]>} : vector<2x16x16xbf16>, vector<2x16x32xbf16>, vector<2x16x32xf32> -> vector<2x16x32xf32>
    "tpu.trace_stop"() : () -> ()
    %94 = vector.extract_strided_slice %39 {offsets = [0, 0, 96], sizes = [2, 16, 32], strides = [1, 1, 1]} : vector<2x16x128xbf16> to vector<2x16x32xbf16>
    %95 = vector.extract_strided_slice %42 {offsets = [0, 0, 96], sizes = [2, 16, 32], strides = [1, 1, 1]} : vector<2x16x128xbf16> to vector<2x16x32xbf16>
    "tpu.trace_start"() <{level = 10 : i32, message = "bnd,bmd->bnm"}> : () -> ()
    %cst_31 = arith.constant dense<0.000000e+00> : vector<2x16x16xf32>
    %96 = tpu.matmul %94, %95, %cst_31 {dimension_numbers = #tpu.dot_dimension_numbers<[2], [2], [1], [1], [0, 0, 0, 1, 1, 1], [0], [0]>} : vector<2x16x32xbf16>, vector<2x16x32xbf16>, vector<2x16x16xf32> -> vector<2x16x16xf32>
    "tpu.trace_stop"() : () -> ()
    %cst_32 = arith.constant dense<0xFF800000> : vector<2x16xf32>
    %97 = vector.multi_reduction <maximumf>, %96, %cst_32 [2] : vector<2x16x16xf32> to vector<2x16xf32>
    %98 = vector.shape_cast %97 : vector<2x16xf32> to vector<2x16x1xf32>
    %99 = vector.broadcast %98 : vector<2x16x1xf32> to vector<2x16x16xf32>
    %100 = arith.subf %96, %99 : vector<2x16x16xf32>
    %101 = math.exp %100 : vector<2x16x16xf32>
    %cst_33 = arith.constant dense<0.000000e+00> : vector<2x16xf32>
    %102 = vector.multi_reduction <add>, %101, %cst_33 [2] : vector<2x16x16xf32> to vector<2x16xf32>
    %103 = vector.shape_cast %102 : vector<2x16xf32> to vector<2x16x1xf32>
    %104 = tpu.reciprocal %103 {approx = true} : vector<2x16x1xf32> -> vector<2x16x1xf32>
    %105 = vector.broadcast %104 : vector<2x16x1xf32> to vector<2x16x16xf32>
    %106 = arith.mulf %101, %105 : vector<2x16x16xf32>
    %107 = arith.truncf %106 : vector<2x16x16xf32> to vector<2x16x16xbf16>
    %108 = vector.extract_strided_slice %45 {offsets = [0, 0, 96], sizes = [2, 16, 32], strides = [1, 1, 1]} : vector<2x16x128xbf16> to vector<2x16x32xbf16>
    "tpu.trace_start"() <{level = 10 : i32, message = "bnm,bmd->bnd"}> : () -> ()
    %cst_34 = arith.constant dense<0.000000e+00> : vector<2x16x32xf32>
    %109 = tpu.matmul %107, %108, %cst_34 {dimension_numbers = #tpu.dot_dimension_numbers<[2], [1], [1], [2], [0, 0, 0, 1, 1, 2], [0], [0]>} : vector<2x16x16xbf16>, vector<2x16x32xbf16>, vector<2x16x32xf32> -> vector<2x16x32xf32>
    "tpu.trace_stop"() : () -> ()
    %110 = tpu.concatenate %61, %77, %93, %109 in 2 : vector<2x16x32xf32>, vector<2x16x32xf32>, vector<2x16x32xf32>, vector<2x16x32xf32> -> vector<2x16x128xf32>
    %111 = vector.shape_cast %110 : vector<2x16x128xf32> to vector<32x128xf32>
    %112 = arith.truncf %111 : vector<32x128xf32> to vector<32x128xbf16>
    %c0_35 = arith.constant 0 : index
    %c0_36 = arith.constant 0 : index
    %c0_37 = arith.constant 0 : index
    %113 = vector.load %arg7[%c0_35, %c0_36, %c0_37] : memref<1x128x128xbf16, #tpu.memory_space<vmem>>, vector<1x128x128xbf16>
    %114 = vector.shape_cast %113 : vector<1x128x128xbf16> to vector<128x128xbf16>
    %cst_38 = arith.constant dense<0.000000e+00> : vector<32x128xf32>
    %115 = tpu.matmul %112, %114, %cst_38 {dimension_numbers = #tpu.dot_dimension_numbers<[1], [0], [0], [1], [0, 0, 1, 1], [], []>} : vector<32x128xbf16>, vector<128x128xbf16>, vector<32x128xf32> -> vector<32x128xf32>
    %116 = arith.addf %6, %115 : vector<32x128xf32>
    %c0_39 = arith.constant 0 : index
    %c0_40 = arith.constant 0 : index
    %c0_41 = arith.constant 0 : index
    %117 = vector.load %arg8[%c0_39, %c0_40, %c0_41] : memref<1x1x128xf32, #tpu.memory_space<vmem>>, vector<1x1x128xf32>
    %118 = vector.shape_cast %117 : vector<1x1x128xf32> to vector<1x128xf32>
    %119 = vector.broadcast %118 : vector<1x128xf32> to vector<32x128xf32>
    %120 = arith.addf %116, %119 : vector<32x128xf32>
    %c0_42 = arith.constant 0 : index
    %c0_43 = arith.constant 0 : index
    %c0_44 = arith.constant 0 : index
    %121 = vector.load %arg9[%c0_42, %c0_43, %c0_44] : memref<1x1x128xf32, #tpu.memory_space<vmem>>, vector<1x1x128xf32>
    %122 = vector.shape_cast %121 : vector<1x1x128xf32> to vector<1x128xf32>
    %c0_45 = arith.constant 0 : index
    %c0_46 = arith.constant 0 : index
    %c0_47 = arith.constant 0 : index
    %123 = vector.load %arg10[%c0_45, %c0_46, %c0_47] : memref<1x1x128xf32, #tpu.memory_space<vmem>>, vector<1x1x128xf32>
    %124 = vector.shape_cast %123 : vector<1x1x128xf32> to vector<1x128xf32>
    %cst_48 = arith.constant dense<0.000000e+00> : vector<32xf32>
    %125 = vector.multi_reduction <add>, %120, %cst_48 [1] : vector<32x128xf32> to vector<32xf32>
    %126 = vector.shape_cast %125 : vector<32xf32> to vector<32x1xf32>
    %cst_49 = arith.constant 1.280000e+02 : f32
    %127 = vector.broadcast %cst_49 : f32 to vector<32x1xf32>
    %128 = arith.divf %126, %127 : vector<32x1xf32>
    %129 = vector.broadcast %128 : vector<32x1xf32> to vector<32x128xf32>
    %130 = arith.subf %120, %129 : vector<32x128xf32>
    %131 = arith.mulf %130, %130 : vector<32x128xf32>
    %cst_50 = arith.constant dense<0.000000e+00> : vector<32xf32>
    %132 = vector.multi_reduction <add>, %131, %cst_50 [1] : vector<32x128xf32> to vector<32xf32>
    %133 = vector.shape_cast %132 : vector<32xf32> to vector<32x1xf32>
    %cst_51 = arith.constant 1.280000e+02 : f32
    %134 = vector.broadcast %cst_51 : f32 to vector<32x1xf32>
    %135 = arith.divf %133, %134 : vector<32x1xf32>
    %136 = vector.broadcast %128 : vector<32x1xf32> to vector<32x128xf32>
    %137 = arith.subf %120, %136 : vector<32x128xf32>
    %cst_52 = arith.constant 9.99999974E-6 : f32
    %138 = vector.broadcast %cst_52 : f32 to vector<32x1xf32>
    %139 = arith.addf %135, %138 : vector<32x1xf32>
    %140 = math.rsqrt %139 : vector<32x1xf32>
    %141 = vector.broadcast %140 : vector<32x1xf32> to vector<32x128xf32>
    %142 = arith.mulf %137, %141 : vector<32x128xf32>
    %143 = vector.broadcast %122 : vector<1x128xf32> to vector<32x128xf32>
    %144 = arith.mulf %142, %143 : vector<32x128xf32>
    %145 = vector.broadcast %124 : vector<1x128xf32> to vector<32x128xf32>
    %146 = arith.addf %144, %145 : vector<32x128xf32>
    %147 = arith.truncf %146 : vector<32x128xf32> to vector<32x128xbf16>
    %c0_53 = arith.constant 0 : index
    %c0_54 = arith.constant 0 : index
    %c0_55 = arith.constant 0 : index
    %148 = vector.load %arg11[%c0_53, %c0_54, %c0_55] : memref<1x128x512xbf16, #tpu.memory_space<vmem>>, vector<1x128x512xbf16>
    %149 = vector.shape_cast %148 : vector<1x128x512xbf16> to vector<128x512xbf16>
    %cst_56 = arith.constant dense<0.000000e+00> : vector<32x512xf32>
    %150 = tpu.matmul %147, %149, %cst_56 {dimension_numbers = #tpu.dot_dimension_numbers<[1], [0], [0], [1], [0, 0, 1, 1], [], []>} : vector<32x128xbf16>, vector<128x512xbf16>, vector<32x512xf32> -> vector<32x512xf32>
    %c0_57 = arith.constant 0 : index
    %c0_58 = arith.constant 0 : index
    %c0_59 = arith.constant 0 : index
    %151 = vector.load %arg12[%c0_57, %c0_58, %c0_59] : memref<1x1x512xf32, #tpu.memory_space<vmem>>, vector<1x1x512xf32>
    %152 = vector.shape_cast %151 : vector<1x1x512xf32> to vector<1x512xf32>
    %153 = vector.broadcast %152 : vector<1x512xf32> to vector<32x512xf32>
    %154 = arith.addf %150, %153 : vector<32x512xf32>
    %155 = arith.mulf %154, %154 : vector<32x512xf32>
    %156 = arith.mulf %154, %155 : vector<32x512xf32>
    %cst_60 = arith.constant 4.471500e-02 : f32
    %157 = vector.broadcast %cst_60 : f32 to vector<32x512xf32>
    %158 = arith.mulf %157, %156 : vector<32x512xf32>
    %159 = arith.addf %154, %158 : vector<32x512xf32>
    %cst_61 = arith.constant 0.797884583 : f32
    %160 = vector.broadcast %cst_61 : f32 to vector<32x512xf32>
    %161 = arith.mulf %160, %159 : vector<32x512xf32>
    %162 = math.tanh %161 : vector<32x512xf32>
    %cst_62 = arith.constant 1.000000e+00 : f32
    %163 = vector.broadcast %cst_62 : f32 to vector<32x512xf32>
    %164 = arith.addf %163, %162 : vector<32x512xf32>
    %cst_63 = arith.constant 5.000000e-01 : f32
    %165 = vector.broadcast %cst_63 : f32 to vector<32x512xf32>
    %166 = arith.mulf %165, %164 : vector<32x512xf32>
    %167 = arith.mulf %154, %166 : vector<32x512xf32>
    %168 = arith.truncf %167 : vector<32x512xf32> to vector<32x512xbf16>
    %c0_64 = arith.constant 0 : index
    %c0_65 = arith.constant 0 : index
    %c0_66 = arith.constant 0 : index
    %169 = vector.load %arg13[%c0_64, %c0_65, %c0_66] : memref<1x512x128xbf16, #tpu.memory_space<vmem>>, vector<1x512x128xbf16>
    %170 = vector.shape_cast %169 : vector<1x512x128xbf16> to vector<512x128xbf16>
    %cst_67 = arith.constant dense<0.000000e+00> : vector<32x128xf32>
    %171 = tpu.matmul %168, %170, %cst_67 {dimension_numbers = #tpu.dot_dimension_numbers<[1], [0], [0], [1], [0, 0, 1, 1], [], []>} : vector<32x512xbf16>, vector<512x128xbf16>, vector<32x128xf32> -> vector<32x128xf32>
    %c0_68 = arith.constant 0 : index
    %c0_69 = arith.constant 0 : index
    %c0_70 = arith.constant 0 : index
    %172 = vector.load %arg14[%c0_68, %c0_69, %c0_70] : memref<1x1x128xf32, #tpu.memory_space<vmem>>, vector<1x1x128xf32>
    %173 = vector.shape_cast %172 : vector<1x1x128xf32> to vector<1x128xf32>
    %174 = vector.broadcast %173 : vector<1x128xf32> to vector<32x128xf32>
    %175 = arith.addf %171, %174 : vector<32x128xf32>
    %176 = arith.addf %120, %175 : vector<32x128xf32>
    %c0_71 = arith.constant 0 : index
    %c0_72 = arith.constant 0 : index
    %177 = vector.load %arg17[%c0_71, %c0_72] : memref<32x128xf32, #tpu.memory_space<vmem>>, vector<32x128xf32>
    tpu.vector_store %arg17[%c0_71, %c0_72], %176 {strides = array<i32>} : memref<32x128xf32, #tpu.memory_space<vmem>>, vector<32x128xf32>,
    %c1_i32 = arith.constant 1 : i32
    %178 = arith.cmpi eq, %arg1, %c1_i32 : i32
    %179 = arith.extui %178 : i1 to i32
    %c0_i32_73 = arith.constant 0 : i32
    %180 = arith.cmpi ne, %179, %c0_i32_73 : i32
    scf.if %180 {
      %181 = vector.shape_cast %176 : vector<32x128xf32> to vector<2x16x128xf32>
      %c0_74 = arith.constant 0 : index
      %c0_75 = arith.constant 0 : index
      %c0_76 = arith.constant 0 : index
      %182 = vector.load %arg15[%c0_74, %c0_75, %c0_76] : memref<2x16x128xf32, #tpu.memory_space<vmem>>, vector<2x16x128xf32>
      tpu.vector_store %arg15[%c0_74, %c0_75, %c0_76], %181 {strides = array<i32>} : memref<2x16x128xf32, #tpu.memory_space<vmem>>, vector<2x16x128xf32>,
      %183 = vector.shape_cast %58 : vector<2x16x16xf32> to vector<2x1x16x16xf32>
      %184 = vector.shape_cast %74 : vector<2x16x16xf32> to vector<2x1x16x16xf32>
      %185 = vector.shape_cast %90 : vector<2x16x16xf32> to vector<2x1x16x16xf32>
      %186 = vector.shape_cast %106 : vector<2x16x16xf32> to vector<2x1x16x16xf32>
      %187 = tpu.concatenate %183, %184, %185, %186 in 1 : vector<2x1x16x16xf32>, vector<2x1x16x16xf32>, vector<2x1x16x16xf32>, vector<2x1x16x16xf32> -> vector<2x4x16x16xf32>
      %c0_77 = arith.constant 0 : index
      %c0_78 = arith.constant 0 : index
      %c0_79 = arith.constant 0 : index
      %c0_80 = arith.constant 0 : index
      %188 = vector.load %arg16[%c0_77, %c0_78, %c0_79, %c0_80] : memref<2x4x16x16xf32, #tpu.memory_space<vmem>>, vector<2x4x16x16xf32>
      tpu.vector_store %arg16[%c0_77, %c0_78, %c0_79, %c0_80], %187 {strides = array<i32>} : memref<2x4x16x16xf32, #tpu.memory_space<vmem>>, vector<2x4x16x16xf32>,
    } else {
    }
    return
  }
  func.func @transform_0(%arg0: i32, %arg1: i32) -> (i32, i32, i32) {
    %c0_i32 = arith.constant 0 : i32
    %c0_i32_0 = arith.constant 0 : i32
    %c0_i32_1 = arith.constant 0 : i32
    return %arg0, %c0_i32, %c0_i32_0 : i32, i32, i32
  }
  func.func @transform_1(%arg0: i32, %arg1: i32) -> (i32, i32, i32) {
    %c0_i32 = arith.constant 0 : i32
    %c0_i32_0 = arith.constant 0 : i32
    %c0_i32_1 = arith.constant 0 : i32
    return %arg0, %c0_i32, %c0_i32_0 : i32, i32, i32
  }
  func.func @transform_2(%arg0: i32, %arg1: i32) -> (i32, i32, i32) {
    %c0_i32 = arith.constant 0 : i32
    %c0_i32_0 = arith.constant 0 : i32
    %c0_i32_1 = arith.constant 0 : i32
    return %arg1, %c0_i32, %c0_i32_0 : i32, i32, i32
  }
  func.func @transform_3(%arg0: i32, %arg1: i32) -> (i32, i32, i32) {
    %c0_i32 = arith.constant 0 : i32
    %c0_i32_0 = arith.constant 0 : i32
    %c0_i32_1 = arith.constant 0 : i32
    return %arg1, %c0_i32, %c0_i32_0 : i32, i32, i32
  }
  func.func @transform_4(%arg0: i32, %arg1: i32) -> (i32, i32, i32) {
    %c0_i32 = arith.constant 0 : i32
    %c0_i32_0 = arith.constant 0 : i32
    %c0_i32_1 = arith.constant 0 : i32
    return %arg1, %c0_i32, %c0_i32_0 : i32, i32, i32
  }
  func.func @transform_5(%arg0: i32, %arg1: i32) -> (i32, i32, i32) {
    %c0_i32 = arith.constant 0 : i32
    %c0_i32_0 = arith.constant 0 : i32
    %c0_i32_1 = arith.constant 0 : i32
    return %arg1, %c0_i32, %c0_i32_0 : i32, i32, i32
  }
  func.func @transform_6(%arg0: i32, %arg1: i32) -> (i32, i32, i32) {
    %c0_i32 = arith.constant 0 : i32
    %c0_i32_0 = arith.constant 0 : i32
    %c0_i32_1 = arith.constant 0 : i32
    return %arg1, %c0_i32, %c0_i32_0 : i32, i32, i32
  }
  func.func @transform_7(%arg0: i32, %arg1: i32) -> (i32, i32, i32) {
    %c0_i32 = arith.constant 0 : i32
    %c0_i32_0 = arith.constant 0 : i32
    %c0_i32_1 = arith.constant 0 : i32
    return %arg1, %c0_i32, %c0_i32_0 : i32, i32, i32
  }
  func.func @transform_8(%arg0: i32, %arg1: i32) -> (i32, i32, i32) {
    %c0_i32 = arith.constant 0 : i32
    %c0_i32_0 = arith.constant 0 : i32
    %c0_i32_1 = arith.constant 0 : i32
    return %arg1, %c0_i32, %c0_i32_0 : i32, i32, i32
  }
  func.func @transform_9(%arg0: i32, %arg1: i32) -> (i32, i32, i32) {
    %c0_i32 = arith.constant 0 : i32
    %c0_i32_0 = arith.constant 0 : i32
    %c0_i32_1 = arith.constant 0 : i32
    return %arg1, %c0_i32, %c0_i32_0 : i32, i32, i32
  }
  func.func @transform_10(%arg0: i32, %arg1: i32) -> (i32, i32, i32) {
    %c0_i32 = arith.constant 0 : i32
    %c0_i32_0 = arith.constant 0 : i32
    %c0_i32_1 = arith.constant 0 : i32
    return %arg1, %c0_i32, %c0_i32_0 : i32, i32, i32
  }
  func.func @transform_11(%arg0: i32, %arg1: i32) -> (i32, i32, i32) {
    %c0_i32 = arith.constant 0 : i32
    %c0_i32_0 = arith.constant 0 : i32
    %c0_i32_1 = arith.constant 0 : i32
    return %arg1, %c0_i32, %c0_i32_0 : i32, i32, i32
  }
  func.func @transform_12(%arg0: i32, %arg1: i32) -> (i32, i32, i32) {
    %c0_i32 = arith.constant 0 : i32
    %c0_i32_0 = arith.constant 0 : i32
    %c0_i32_1 = arith.constant 0 : i32
    return %arg1, %c0_i32, %c0_i32_0 : i32, i32, i32
  }
  func.func @transform_13(%arg0: i32, %arg1: i32) -> (i32, i32, i32) {
    %c0_i32 = arith.constant 0 : i32
    %c0_i32_0 = arith.constant 0 : i32
    %c0_i32_1 = arith.constant 0 : i32
    return %arg0, %c0_i32, %c0_i32_0 : i32, i32, i32
  }
  func.func @transform_14(%arg0: i32, %arg1: i32) -> (i32, i32, i32, i32) {
    %c0_i32 = arith.constant 0 : i32
    %c0_i32_0 = arith.constant 0 : i32
    %c0_i32_1 = arith.constant 0 : i32
    %c0_i32_2 = arith.constant 0 : i32
    return %arg0, %c0_i32, %c0_i32_0, %c0_i32_1 : i32, i32, i32, i32
  }
}

</mosaic_0001>

<llo_original>
// kernel: tpu_custom_call.1
$region0: #{tpu_custom_call.1}
  #allocation0 [shape = 'u32[]', space=smem, size = 0x4, offset = 0x4, fixed_abs, tag = 'smem constant byte address 0x4 - core index']
  #allocation1 [shape = 'u32[144,128]{1,0:T(1,128)}', space=vmem, size = 0x12000, scoped, tag = 'internal scratch']
  #allocation2 [shape = 'f32[32,128]{1,0:T(8,128)}', space=vmem, size = 0x4000, scoped, tag = 'scratch operand']
  %s0 = inlined_call_operand.hbm [shape: f32[2,16,128], index: 0, kind: input, shape index: {}]
  %s1 = inlined_call_operand.hbm [shape: f32[2,16,128], index: 1, kind: input, shape index: {}]
  %s2 = inlined_call_operand.vmem [shape: f32[2,1,128], index: 2, kind: input, shape index: {}]
  %s3 = inlined_call_operand.vmem [shape: f32[2,1,128], index: 3, kind: input, shape index: {}]
  %s4 = inlined_call_operand.hbm [shape: bf16[2,128,384], index: 4, kind: input, shape index: {}]
  %s5 = inlined_call_operand.hbm [shape: bf16[2,128,128], index: 5, kind: input, shape index: {}]
  %s6 = inlined_call_operand.vmem [shape: f32[2,1,128], index: 6, kind: input, shape index: {}]
  %s7 = inlined_call_operand.vmem [shape: f32[2,1,128], index: 7, kind: input, shape index: {}]
  %s8 = inlined_call_operand.hbm [shape: f32[2,1,128], index: 8, kind: input, shape index: {}]
  %s9 = inlined_call_operand.hbm [shape: bf16[2,128,512], index: 9, kind: input, shape index: {}]
  %s10 = inlined_call_operand.vmem [shape: f32[2,1,512], index: 10, kind: input, shape index: {}]
  %s11 = inlined_call_operand.hbm [shape: bf16[2,512,128], index: 11, kind: input, shape index: {}]
  %s12 = inlined_call_operand.vmem [shape: f32[2,1,128], index: 12, kind: input, shape index: {}]
  %s13 = inlined_call_operand.hbm [shape: f32[2,16,128], index: 13, kind: output, shape index: {0}]
  %s14 = inlined_call_operand.hbm [shape: f32[2,4,16,16], index: 14, kind: output, shape index: {1}]
  %15 = xla_tuple %s13, %s14
  %s16 = sld [smem:[#allocation0]]
  $region129: #{tpu_custom_call.1} parent=0
    _
  %s18 = ssub.s32 1, %s16
  %s19 = scalar_select 0, %s18, %s16
  $region1: #{tpu_custom_call.1} parent=0
    #allocation3 [shape = 'u8[16384]{0}', space=vmem, size = 0x4000, scoped, tag = 'input window, operand 0, single buffered']
    #allocation4 [shape = 's32[2]{0}', space=sflag, size = 0x8, scoped, tag = 'scoped memory for tpu_custom_call.1']
    #allocation5 [shape = 's32[2]{0}', space=sflag, size = 0x8, scoped, tag = 'scoped memory for tpu_custom_call.1']
    #allocation6 [shape = 'u8[16384]{0}', space=vmem, size = 0x4000, scoped, tag = 'input window, operand 1, single buffered']
    #allocation7 [shape = 's32[1]{0}', space=sflag, size = 0x4, scoped, tag = 'scoped memory for tpu_custom_call.1']
    #allocation8 [shape = 'u8[196608]{0}', space=vmem, size = 0x30000, scoped, tag = 'input window, operand 4']
    #allocation9 [shape = 'u8[65536]{0}', space=vmem, size = 0x10000, scoped, tag = 'input window, operand 5']
    #allocation10 [shape = 'u8[1024]{0}', space=vmem, size = 0x400, scoped, tag = 'input window, operand 8']
    #allocation11 [shape = 'u8[262144]{0}', space=vmem, size = 0x40000, scoped, tag = 'input window, operand 9']
    #allocation12 [shape = 'u8[262144]{0}', space=vmem, size = 0x40000, scoped, tag = 'input window, operand 11']
    #allocation13 [shape = 'u8[16384]{0}', space=vmem, size = 0x4000, scoped, tag = 'output window, operand 0, single buffered']
    #allocation14 [shape = 'u8[65536]{0}', space=vmem, size = 0x10000, scoped, tag = 'output window, operand 1, single buffered']
    #allocation15 [shape = 's32[1]{0}', space=sflag, size = 0x4, scoped, tag = 'scoped memory for tpu_custom_call.1']
    %20 = vsyncpa [#allocation4], 0
    %21 = vsyncpa [#allocation7], 0
    %22 = vsyncpa [#allocation5], 0
    %23 = vsyncpa [#allocation15], 0
    loop: start=0, step=1, limit=4
    $region2: #{tpu_custom_call.1} parent=1 // loop_pre_header
      _
    $region3: #{tpu_custom_call.1} parent=1 // loop_header
      %s25 = sphi 0, %s29
      %p26 = scmp.ge.s32.totalorder %s25, 4
      %s32 = sphi 0, %s44
      %s33 = sphi 0, %s40
      %s34 = sphi 0, %s32
      %s35 = sphi 0, %s33
      %s36 = sphi 0, %s34
      %s37 = sphi 0, %s35
      %s47 = sphi 0, %s49
      %s50 = sphi 0, %s47
      %s51 = sphi 0, %s50
      %s67 = sphi 0, %s51
      %s73 = sphi 0, %s75
      %s76 = sphi 0, %s73
      %s77 = sphi 0, %s76
      %s93 = sphi 0, %s77
      %s99 = sphi 0, %s101
      %s102 = sphi 0, %s99
      %s103 = sphi 0, %s102
      %s119 = sphi 0, %s103
      %s125 = sphi 0, %s127
      %s128 = sphi 0, %s125
      %s129 = sphi 0, %s128
      %s145 = sphi 0, %s129
      %s151 = sphi 0, %s153
      %s154 = sphi 0, %s151
      %s155 = sphi 0, %s154
      %s171 = sphi 0, %s155
      %s177 = sphi 0, %s179
      %s180 = sphi 0, %s177
      %s181 = sphi 0, %s180
      %s197 = sphi 0, %s181
      %s203 = sphi 0, %s205
      %s206 = sphi 0, %s203
      %s207 = sphi 0, %s206
      %s223 = sphi 0, %s207
      %s229 = sphi 0, %s231
      %s232 = sphi 0, %s229
      %s233 = sphi 0, %s232
      %s249 = sphi 0, %s233
      %s255 = sphi 0, %s257
      %s258 = sphi 0, %s255
      %s259 = sphi 0, %s258
      %s275 = sphi 0, %s259
      %s281 = sphi 0, %s283
      %s284 = sphi 0, %s281
      %s285 = sphi 0, %s284
      %s301 = sphi 0, %s285
      %s307 = sphi 0, %s309
      %s310 = sphi 0, %s307
      %s311 = sphi 0, %s310
      %s327 = sphi 0, %s311
      %s333 = sphi 0, %s335
      %s336 = sphi 0, %s333
      %s337 = sphi 0, %s336
      %s353 = sphi 0, %s337
      %s359 = sphi 0, %s361
      %s362 = sphi 0, %s359
      %s363 = sphi 0, %s362
      %s379 = sphi 0, %s363
      %s385 = sphi 0, %s387
      %s388 = sphi 0, %s385
      %s389 = sphi 0, %s388
      %s405 = sphi 0, %s389
      %s411 = sphi 0, %s413
      %s414 = sphi 0, %s411
      %s415 = sphi 0, %s414
      %s431 = sphi 0, %s415
    $region4: #{tpu_custom_call.1} parent=1 // loop_header_branch
      %28 = sbr.rel (%p26) target = $region8
    $region5: #{tpu_custom_call.1} parent=1 // loop_body
      %s30 = ssub.s32 %s25, 1
      %s31 = ssub.s32 %s25, 2
      %s38 = sadd.s32 1, %s33
      %p39 = scmp.ge.s32.totalorder %s38, 2
      %s40 = scalar_select %p39, 0, %s38
      %s41 = sadd.s32 1, %s32
      %s42 = scalar_select %p39, %s41, %s32
      %p43 = scmp.ge.s32.totalorder %s42, 1
      %s44 = scalar_select %p43, 0, %s42
      %s45 = ssub.s32 %s32, %s44
      %p46 = scmp.eq.s32.totalorder %s45, 0
      %s48 = sadd.s32 %s47, 1
      %s49 = scalar_select %p46, %s47, %s48
      %p52 = pneg %p46
      %p53 = scmp.eq.s32.totalorder %s25, 1
      %p54 = por %p52, %p53
      %p55 = scmp.ne.s32.totalorder %s47, %s50
      %p56 = scmp.eq.s32.totalorder %s25, 0
      %p57 = por %p55, %p56
      %p58 = scmp.ne.s32.totalorder %s47, %s50
      %p59 = scmp.eq.s32.totalorder %s30, 1
      %p60 = por %p58, %p59
      %p61 = scmp.ne.s32.totalorder %s50, %s51
      %p62 = scmp.eq.s32.totalorder %s30, 0
      %p63 = por %p61, %p62
      %p64 = scmp.ne.s32.totalorder %s50, %s51
      %p65 = scmp.eq.s32.totalorder %s31, 1
      %p66 = por %p64, %p65
      %p68 = scmp.ne.s32.totalorder %s51, %s67
      %p69 = scmp.eq.s32.totalorder %s31, 0
      %p70 = por %p68, %p69
      %s71 = ssub.s32 %s32, %s44
      %p72 = scmp.eq.s32.totalorder %s71, 0
      %s74 = sadd.s32 %s73, 1
      %s75 = scalar_select %p72, %s73, %s74
      %p78 = pneg %p72
      %p79 = scmp.eq.s32.totalorder %s25, 1
      %p80 = por %p78, %p79
      %p81 = scmp.ne.s32.totalorder %s73, %s76
      %p82 = scmp.eq.s32.totalorder %s25, 0
      %p83 = por %p81, %p82
      %p84 = scmp.ne.s32.totalorder %s73, %s76
      %p85 = scmp.eq.s32.totalorder %s30, 1
      %p86 = por %p84, %p85
      %p87 = scmp.ne.s32.totalorder %s76, %s77
      %p88 = scmp.eq.s32.totalorder %s30, 0
      %p89 = por %p87, %p88
      %p90 = scmp.ne.s32.totalorder %s76, %s77
      %p91 = scmp.eq.s32.totalorder %s31, 1
      %p92 = por %p90, %p91
      %p94 = scmp.ne.s32.totalorder %s77, %s93
      %p95 = scmp.eq.s32.totalorder %s31, 0
      %p96 = por %p94, %p95
      %s97 = ssub.s32 %s33, %s40
      %p98 = scmp.eq.s32.totalorder %s97, 0
      %s100 = sadd.s32 %s99, 1
      %s101 = scalar_select %p98, %s99, %s100
      %p104 = pneg %p98
      %p105 = scmp.eq.s32.totalorder %s25, 1
      %p106 = por %p104, %p105
      %p107 = scmp.ne.s32.totalorder %s99, %s102
      %p108 = scmp.eq.s32.totalorder %s25, 0
      %p109 = por %p107, %p108
      %p110 = scmp.ne.s32.totalorder %s99, %s102
      %p111 = scmp.eq.s32.totalorder %s30, 1
      %p112 = por %p110, %p111
      %p113 = scmp.ne.s32.totalorder %s102, %s103
      %p114 = scmp.eq.s32.totalorder %s30, 0
      %p115 = por %p113, %p114
      %p116 = scmp.ne.s32.totalorder %s102, %s103
      %p117 = scmp.eq.s32.totalorder %s31, 1
      %p118 = por %p116, %p117
      %p120 = scmp.ne.s32.totalorder %s103, %s119
      %p121 = scmp.eq.s32.totalorder %s31, 0
      %p122 = por %p120, %p121
      %s123 = ssub.s32 %s33, %s40
      %p124 = scmp.eq.s32.totalorder %s123, 0
      %s126 = sadd.s32 %s125, 1
      %s127 = scalar_select %p124, %s125, %s126
      %p130 = pneg %p124
      %p131 = scmp.eq.s32.totalorder %s25, 1
      %p132 = por %p130, %p131
      %p133 = scmp.ne.s32.totalorder %s125, %s128
      %p134 = scmp.eq.s32.totalorder %s25, 0
      %p135 = por %p133, %p134
      %p136 = scmp.ne.s32.totalorder %s125, %s128
      %p137 = scmp.eq.s32.totalorder %s30, 1
      %p138 = por %p136, %p137
      %p139 = scmp.ne.s32.totalorder %s128, %s129
      %p140 = scmp.eq.s32.totalorder %s30, 0
      %p141 = por %p139, %p140
      %p142 = scmp.ne.s32.totalorder %s128, %s129
      %p143 = scmp.eq.s32.totalorder %s31, 1
      %p144 = por %p142, %p143
      %p146 = scmp.ne.s32.totalorder %s129, %s145
      %p147 = scmp.eq.s32.totalorder %s31, 0
      %p148 = por %p146, %p147
      %s149 = ssub.s32 %s33, %s40
      %p150 = scmp.eq.s32.totalorder %s149, 0
      %s152 = sadd.s32 %s151, 1
      %s153 = scalar_select %p150, %s151, %s152
      %p156 = pneg %p150
      %p157 = scmp.eq.s32.totalorder %s25, 1
      %p158 = por %p156, %p157
      %p159 = scmp.ne.s32.totalorder %s151, %s154
      %p160 = scmp.eq.s32.totalorder %s25, 0
      %p161 = por %p159, %p160
      %p162 = scmp.ne.s32.totalorder %s151, %s154
      %p163 = scmp.eq.s32.totalorder %s30, 1
      %p164 = por %p162, %p163
      %p165 = scmp.ne.s32.totalorder %s154, %s155
      %p166 = scmp.eq.s32.totalorder %s30, 0
      %p167 = por %p165, %p166
      %p168 = scmp.ne.s32.totalorder %s154, %s155
      %p169 = scmp.eq.s32.totalorder %s31, 1
      %p170 = por %p168, %p169
      %p172 = scmp.ne.s32.totalorder %s155, %s171
      %p173 = scmp.eq.s32.totalorder %s31, 0
      %p174 = por %p172, %p173
      %s175 = ssub.s32 %s33, %s40
      %p176 = scmp.eq.s32.totalorder %s175, 0
      %s178 = sadd.s32 %s177, 1
      %s179 = scalar_select %p176, %s177, %s178
      %p182 = pneg %p176
      %p183 = scmp.eq.s32.totalorder %s25, 1
      %p184 = por %p182, %p183
      %p185 = scmp.ne.s32.totalorder %s177, %s180
      %p186 = scmp.eq.s32.totalorder %s25, 0
      %p187 = por %p185, %p186
      %p188 = scmp.ne.s32.totalorder %s177, %s180
      %p189 = scmp.eq.s32.totalorder %s30, 1
      %p190 = por %p188, %p189
      %p191 = scmp.ne.s32.totalorder %s180, %s181
      %p192 = scmp.eq.s32.totalorder %s30, 0
      %p193 = por %p191, %p192
      %p194 = scmp.ne.s32.totalorder %s180, %s181
      %p195 = scmp.eq.s32.totalorder %s31, 1
      %p196 = por %p194, %p195
      %p198 = scmp.ne.s32.totalorder %s181, %s197
      %p199 = scmp.eq.s32.totalorder %s31, 0
      %p200 = por %p198, %p199
      %s201 = ssub.s32 %s33, %s40
      %p202 = scmp.eq.s32.totalorder %s201, 0
      %s204 = sadd.s32 %s203, 1
      %s205 = scalar_select %p202, %s203, %s204
      %p208 = pneg %p202
      %p209 = scmp.eq.s32.totalorder %s25, 1
      %p210 = por %p208, %p209
      %p211 = scmp.ne.s32.totalorder %s203, %s206
      %p212 = scmp.eq.s32.totalorder %s25, 0
      %p213 = por %p211, %p212
      %p214 = scmp.ne.s32.totalorder %s203, %s206
      %p215 = scmp.eq.s32.totalorder %s30, 1
      %p216 = por %p214, %p215
      %p217 = scmp.ne.s32.totalorder %s206, %s207
      %p218 = scmp.eq.s32.totalorder %s30, 0
      %p219 = por %p217, %p218
      %p220 = scmp.ne.s32.totalorder %s206, %s207
      %p221 = scmp.eq.s32.totalorder %s31, 1
      %p222 = por %p220, %p221
      %p224 = scmp.ne.s32.totalorder %s207, %s223
      %p225 = scmp.eq.s32.totalorder %s31, 0
      %p226 = por %p224, %p225
      %s227 = ssub.s32 %s33, %s40
      %p228 = scmp.eq.s32.totalorder %s227, 0
      %s230 = sadd.s32 %s229, 1
      %s231 = scalar_select %p228, %s229, %s230
      %p234 = pneg %p228
      %p235 = scmp.eq.s32.totalorder %s25, 1
      %p236 = por %p234, %p235
      %p237 = scmp.ne.s32.totalorder %s229, %s232
      %p238 = scmp.eq.s32.totalorder %s25, 0
      %p239 = por %p237, %p238
      %p240 = scmp.ne.s32.totalorder %s229, %s232
      %p241 = scmp.eq.s32.totalorder %s30, 1
      %p242 = por %p240, %p241
      %p243 = scmp.ne.s32.totalorder %s232, %s233
      %p244 = scmp.eq.s32.totalorder %s30, 0
      %p245 = por %p243, %p244
      %p246 = scmp.ne.s32.totalorder %s232, %s233
      %p247 = scmp.eq.s32.totalorder %s31, 1
      %p248 = por %p246, %p247
      %p250 = scmp.ne.s32.totalorder %s233, %s249
      %p251 = scmp.eq.s32.totalorder %s31, 0
      %p252 = por %p250, %p251
      %s253 = ssub.s32 %s33, %s40
      %p254 = scmp.eq.s32.totalorder %s253, 0
      %s256 = sadd.s32 %s255, 1
      %s257 = scalar_select %p254, %s255, %s256
      %p260 = pneg %p254
      %p261 = scmp.eq.s32.totalorder %s25, 1
      %p262 = por %p260, %p261
      %p263 = scmp.ne.s32.totalorder %s255, %s258
      %p264 = scmp.eq.s32.totalorder %s25, 0
      %p265 = por %p263, %p264
      %p266 = scmp.ne.s32.totalorder %s255, %s258
      %p267 = scmp.eq.s32.totalorder %s30, 1
      %p268 = por %p266, %p267
      %p269 = scmp.ne.s32.totalorder %s258, %s259
      %p270 = scmp.eq.s32.totalorder %s30, 0
      %p271 = por %p269, %p270
      %p272 = scmp.ne.s32.totalorder %s258, %s259
      %p273 = scmp.eq.s32.totalorder %s31, 1
      %p274 = por %p272, %p273
      %p276 = scmp.ne.s32.totalorder %s259, %s275
      %p277 = scmp.eq.s32.totalorder %s31, 0
      %p278 = por %p276, %p277
      %s279 = ssub.s32 %s33, %s40
      %p280 = scmp.eq.s32.totalorder %s279, 0
      %s282 = sadd.s32 %s281, 1
      %s283 = scalar_select %p280, %s281, %s282
      %p286 = pneg %p280
      %p287 = scmp.eq.s32.totalorder %s25, 1
      %p288 = por %p286, %p287
      %p289 = scmp.ne.s32.totalorder %s281, %s284
      %p290 = scmp.eq.s32.totalorder %s25, 0
      %p291 = por %p289, %p290
      %p292 = scmp.ne.s32.totalorder %s281, %s284
      %p293 = scmp.eq.s32.totalorder %s30, 1
      %p294 = por %p292, %p293
      %p295 = scmp.ne.s32.totalorder %s284, %s285
      %p296 = scmp.eq.s32.totalorder %s30, 0
      %p297 = por %p295, %p296
      %p298 = scmp.ne.s32.totalorder %s284, %s285
      %p299 = scmp.eq.s32.totalorder %s31, 1
      %p300 = por %p298, %p299
      %p302 = scmp.ne.s32.totalorder %s285, %s301
      %p303 = scmp.eq.s32.totalorder %s31, 0
      %p304 = por %p302, %p303
      %s305 = ssub.s32 %s33, %s40
      %p306 = scmp.eq.s32.totalorder %s305, 0
      %s308 = sadd.s32 %s307, 1
      %s309 = scalar_select %p306, %s307, %s308
      %p312 = pneg %p306
      %p313 = scmp.eq.s32.totalorder %s25, 1
      %p314 = por %p312, %p313
      %p315 = scmp.ne.s32.totalorder %s307, %s310
      %p316 = scmp.eq.s32.totalorder %s25, 0
      %p317 = por %p315, %p316
      %p318 = scmp.ne.s32.totalorder %s307, %s310
      %p319 = scmp.eq.s32.totalorder %s30, 1
      %p320 = por %p318, %p319
      %p321 = scmp.ne.s32.totalorder %s310, %s311
      %p322 = scmp.eq.s32.totalorder %s30, 0
      %p323 = por %p321, %p322
      %p324 = scmp.ne.s32.totalorder %s310, %s311
      %p325 = scmp.eq.s32.totalorder %s31, 1
      %p326 = por %p324, %p325
      %p328 = scmp.ne.s32.totalorder %s311, %s327
      %p329 = scmp.eq.s32.totalorder %s31, 0
      %p330 = por %p328, %p329
      %s331 = ssub.s32 %s33, %s40
      %p332 = scmp.eq.s32.totalorder %s331, 0
      %s334 = sadd.s32 %s333, 1
      %s335 = scalar_select %p332, %s333, %s334
      %p338 = pneg %p332
      %p339 = scmp.eq.s32.totalorder %s25, 1
      %p340 = por %p338, %p339
      %p341 = scmp.ne.s32.totalorder %s333, %s336
      %p342 = scmp.eq.s32.totalorder %s25, 0
      %p343 = por %p341, %p342
      %p344 = scmp.ne.s32.totalorder %s333, %s336
      %p345 = scmp.eq.s32.totalorder %s30, 1
      %p346 = por %p344, %p345
      %p347 = scmp.ne.s32.totalorder %s336, %s337
      %p348 = scmp.eq.s32.totalorder %s30, 0
      %p349 = por %p347, %p348
      %p350 = scmp.ne.s32.totalorder %s336, %s337
      %p351 = scmp.eq.s32.totalorder %s31, 1
      %p352 = por %p350, %p351
      %p354 = scmp.ne.s32.totalorder %s337, %s353
      %p355 = scmp.eq.s32.totalorder %s31, 0
      %p356 = por %p354, %p355
      %s357 = ssub.s32 %s33, %s40
      %p358 = scmp.eq.s32.totalorder %s357, 0
      %s360 = sadd.s32 %s359, 1
      %s361 = scalar_select %p358, %s359, %s360
      %p364 = pneg %p358
      %p365 = scmp.eq.s32.totalorder %s25, 1
      %p366 = por %p364, %p365
      %p367 = scmp.ne.s32.totalorder %s359, %s362
      %p368 = scmp.eq.s32.totalorder %s25, 0
      %p369 = por %p367, %p368
      %p370 = scmp.ne.s32.totalorder %s359, %s362
      %p371 = scmp.eq.s32.totalorder %s30, 1
      %p372 = por %p370, %p371
      %p373 = scmp.ne.s32.totalorder %s362, %s363
      %p374 = scmp.eq.s32.totalorder %s30, 0
      %p375 = por %p373, %p374
      %p376 = scmp.ne.s32.totalorder %s362, %s363
      %p377 = scmp.eq.s32.totalorder %s31, 1
      %p378 = por %p376, %p377
      %p380 = scmp.ne.s32.totalorder %s363, %s379
      %p381 = scmp.eq.s32.totalorder %s31, 0
      %p382 = por %p380, %p381
      %s383 = ssub.s32 %s32, %s44
      %p384 = scmp.eq.s32.totalorder %s383, 0
      %s386 = sadd.s32 %s385, 1
      %s387 = scalar_select %p384, %s385, %s386
      %p390 = pneg %p384
      %p391 = scmp.eq.s32.totalorder %s25, 1
      %p392 = por %p390, %p391
      %p393 = scmp.ne.s32.totalorder %s385, %s388
      %p394 = scmp.eq.s32.totalorder %s25, 0
      %p395 = por %p393, %p394
      %p396 = scmp.ne.s32.totalorder %s385, %s388
      %p397 = scmp.eq.s32.totalorder %s30, 1
      %p398 = por %p396, %p397
      %p399 = scmp.ne.s32.totalorder %s388, %s389
      %p400 = scmp.eq.s32.totalorder %s30, 0
      %p401 = por %p399, %p400
      %p402 = scmp.ne.s32.totalorder %s388, %s389
      %p403 = scmp.eq.s32.totalorder %s31, 1
      %p404 = por %p402, %p403
      %p406 = scmp.ne.s32.totalorder %s389, %s405
      %p407 = scmp.eq.s32.totalorder %s31, 0
      %p408 = por %p406, %p407
      %s409 = ssub.s32 %s32, %s44
      %p410 = scmp.eq.s32.totalorder %s409, 0
      %s412 = sadd.s32 %s411, 1
      %s413 = scalar_select %p410, %s411, %s412
      %p416 = pneg %p410
      %p417 = scmp.eq.s32.totalorder %s25, 1
      %p418 = por %p416, %p417
      %p419 = scmp.ne.s32.totalorder %s411, %s414
      %p420 = scmp.eq.s32.totalorder %s25, 0
      %p421 = por %p419, %p420
      %p422 = scmp.ne.s32.totalorder %s411, %s414
      %p423 = scmp.eq.s32.totalorder %s30, 1
      %p424 = por %p422, %p423
      %p425 = scmp.ne.s32.totalorder %s414, %s415
      %p426 = scmp.eq.s32.totalorder %s30, 0
      %p427 = por %p425, %p426
      %p428 = scmp.ne.s32.totalorder %s414, %s415
      %p429 = scmp.eq.s32.totalorder %s31, 1
      %p430 = por %p428, %p429
      %p432 = scmp.ne.s32.totalorder %s415, %s431
      %p433 = scmp.eq.s32.totalorder %s31, 0
      %p434 = por %p432, %p433
      %p435 = scmp.le.s32.totalorder 1, %s25
      %p436 = scmp.lt.s32.totalorder %s25, 3
      %p437 = pnand %p435, %p436
      %p438 = pneg %p437
      // Predicated region
      $region9: #{tpu_custom_call.1} parent=5 // pred_check
        _
      $region10: #{tpu_custom_call.1} parent=5 // pred_check_branch
        %440 = sbr.rel (%p437) target = $region12
      $region11: #{tpu_custom_call.1} parent=5 // pred_region
        %s441 = ssub.s32 %s25, 1
        // Predicated region
        $region13: #{tpu_custom_call.1} parent=11 // pred_check
          %p442 = pneg %p63
        $region14: #{tpu_custom_call.1} parent=11 // pred_check_branch
          %444 = sbr.rel (%p442) target = $region16
        $region15: #{tpu_custom_call.1} parent=11 // pred_region
          %s445 = smul.u32 2, %s34
          %s447 = ssub.s32 512, 512
          %448 = vsyncadd [#allocation4], %s447
          %s449 = smul.addr %s445, 2
          %s450 = smul.addr %s449, 128
          %s451 = scalar_lea.hbm %s0, %s450
          %s452 = sshll.u32 [#allocation3], 4
          %s453 = int_to_ptr.vmem [resolvable:$true] %s452
          %458 = dma.hbm_to_vmem [thread:$0]  %s451, 512, %s453, [#allocation4], 128, 128, 8
        $region16: #{tpu_custom_call.1} parent=11 // pred_fallthru
          _
        // Predicated region
        $region17: #{tpu_custom_call.1} parent=11 // pred_check
          %p459 = pneg %p89
        $region18: #{tpu_custom_call.1} parent=11 // pred_check_branch
          %461 = sbr.rel (%p459) target = $region20
        $region19: #{tpu_custom_call.1} parent=11 // pred_region
          %s462 = smul.u32 2, %s34
          %s464 = ssub.s32 512, 512
          %465 = vsyncadd [#allocation7], %s464
          %s466 = smul.addr %s462, 2
          %s467 = smul.addr %s466, 128
          %s468 = scalar_lea.hbm %s1, %s467
          %s469 = sshll.u32 [#allocation6], 4
          %s470 = int_to_ptr.vmem [resolvable:$true] %s469
          %475 = dma.hbm_to_vmem [thread:$0]  %s468, 512, %s470, [#allocation7], 128, 128, 8
        $region20: #{tpu_custom_call.1} parent=11 // pred_fallthru
          _
      $region12: #{tpu_custom_call.1} parent=5 // pred_fallthru
        _
      %p476 = scmp.lt.s32.totalorder %s25, 2
      // Predicated region
      $region21: #{tpu_custom_call.1} parent=5 // pred_check
        %p477 = pneg %p476
      $region22: #{tpu_custom_call.1} parent=5 // pred_check_branch
        %479 = sbr.rel (%p477) target = $region24
      $region23: #{tpu_custom_call.1} parent=5 // pred_region
        // Predicated region
        $region25: #{tpu_custom_call.1} parent=23 // pred_check
          %p480 = pneg %p109
        $region26: #{tpu_custom_call.1} parent=23 // pred_check_branch
          %482 = sbr.rel (%p480) target = $region28
        $region27: #{tpu_custom_call.1} parent=23 // pred_region
          %p483 = scmp.lt.s32.totalorder %s33, 1
          %s484 = scalar_select %p483, %s33, 1
          %s485 = scalar_lea.vmem %s2, %s484
        $region28: #{tpu_custom_call.1} parent=23 // pred_fallthru
          _
        // Predicated region
        $region29: #{tpu_custom_call.1} parent=23 // pred_check
          %p486 = pneg %p135
        $region30: #{tpu_custom_call.1} parent=23 // pred_check_branch
          %488 = sbr.rel (%p486) target = $region32
        $region31: #{tpu_custom_call.1} parent=23 // pred_region
          %p489 = scmp.lt.s32.totalorder %s33, 1
          %s490 = scalar_select %p489, %s33, 1
          %s491 = scalar_lea.vmem %s3, %s490
        $region32: #{tpu_custom_call.1} parent=23 // pred_fallthru
          _
        // Predicated region
        $region33: #{tpu_custom_call.1} parent=23 // pred_check
          %p492 = pneg %p161
        $region34: #{tpu_custom_call.1} parent=23 // pred_check_branch
          %494 = sbr.rel (%p492) target = $region36
        $region35: #{tpu_custom_call.1} parent=23 // pred_region
          %s495 = sand.u32 %s25, 1
          %s496 = scalar_lea.sflag [#allocation4], %s495
          %s497 = sand.u32 %s151, 1
          %s498 = smul.addr %s497, 192
          %s499 = scalar_lea.vmem [#allocation8], %s498
          %s501 = ssub.s32 3072, 3072
          %502 = vsyncadd %s496, %s501
          %s503 = smul.addr %s33, 48
          %s504 = smul.addr %s503, 64
          %s505 = scalar_lea.hbm %s4, %s504
          %s506 = sshll.u32 %s499, 4
          %s507 = int_to_ptr.vmem [resolvable:$true] %s506
          %512 = dma.hbm_to_vmem [thread:$0]  %s505, 3072, %s507, %s496, 192, 192, 12
        $region36: #{tpu_custom_call.1} parent=23 // pred_fallthru
          _
        // Predicated region
        $region37: #{tpu_custom_call.1} parent=23 // pred_check
          %p513 = pneg %p187
        $region38: #{tpu_custom_call.1} parent=23 // pred_check_branch
          %515 = sbr.rel (%p513) target = $region40
        $region39: #{tpu_custom_call.1} parent=23 // pred_region
          %s516 = sand.u32 %s25, 1
          %s517 = scalar_lea.sflag [#allocation4], %s516
          %s518 = sand.u32 %s177, 1
          %s519 = smul.addr %s518, 64
          %s520 = scalar_lea.vmem [#allocation9], %s519
          %s522 = ssub.s32 1024, 1024
          %523 = vsyncadd %s517, %s522
          %s524 = smul.addr %s33, 16
          %s525 = smul.addr %s524, 64
          %s526 = scalar_lea.hbm %s5, %s525
          %s527 = sshll.u32 %s520, 4
          %s528 = int_to_ptr.vmem [resolvable:$true] %s527
          %533 = dma.hbm_to_vmem [thread:$0]  %s526, 1024, %s528, %s517, 64, 64, 4
        $region40: #{tpu_custom_call.1} parent=23 // pred_fallthru
          _
        // Predicated region
        $region41: #{tpu_custom_call.1} parent=23 // pred_check
          %p534 = pneg %p213
        $region42: #{tpu_custom_call.1} parent=23 // pred_check_branch
          %536 = sbr.rel (%p534) target = $region44
        $region43: #{tpu_custom_call.1} parent=23 // pred_region
          %p537 = scmp.lt.s32.totalorder %s33, 1
          %s538 = scalar_select %p537, %s33, 1
          %s539 = scalar_lea.vmem %s6, %s538
        $region44: #{tpu_custom_call.1} parent=23 // pred_fallthru
          _
        // Predicated region
        $region45: #{tpu_custom_call.1} parent=23 // pred_check
          %p540 = pneg %p239
        $region46: #{tpu_custom_call.1} parent=23 // pred_check_branch
          %542 = sbr.rel (%p540) target = $region48
        $region47: #{tpu_custom_call.1} parent=23 // pred_region
          %p543 = scmp.lt.s32.totalorder %s33, 1
          %s544 = scalar_select %p543, %s33, 1
          %s545 = scalar_lea.vmem %s7, %s544
        $region48: #{tpu_custom_call.1} parent=23 // pred_fallthru
          _
        // Predicated region
        $region49: #{tpu_custom_call.1} parent=23 // pred_check
          %p546 = pneg %p265
        $region50: #{tpu_custom_call.1} parent=23 // pred_check_branch
          %548 = sbr.rel (%p546) target = $region52
        $region51: #{tpu_custom_call.1} parent=23 // pred_region
          %s549 = sand.u32 %s25, 1
          %s550 = scalar_lea.sflag [#allocation4], %s549
          %s551 = sand.u32 %s255, 1
          %s552 = scalar_lea.vmem [#allocation10], %s551
          %s554 = ssub.s32 16, 16
          %555 = vsyncadd %s550, %s554
          %s556 = smul.addr %s33, 16
          %s557 = scalar_lea.hbm %s8, %s556
          %s559 = sshll.u32 %s552, 4
          %s560 = int_to_ptr.vmem [resolvable:$true] %s559
          %562 = dma.hbm_to_vmem [thread:$0]  %s557, 16, %s560, %s550
        $region52: #{tpu_custom_call.1} parent=23 // pred_fallthru
          _
        // Predicated region
        $region53: #{tpu_custom_call.1} parent=23 // pred_check
          %p563 = pneg %p291
        $region54: #{tpu_custom_call.1} parent=23 // pred_check_branch
          %565 = sbr.rel (%p563) target = $region56
        $region55: #{tpu_custom_call.1} parent=23 // pred_region
          %s566 = sand.u32 %s25, 1
          %s567 = scalar_lea.sflag [#allocation4], %s566
          %s568 = sand.u32 %s281, 1
          %s569 = smul.addr %s568, 256
          %s570 = scalar_lea.vmem [#allocation11], %s569
          %s572 = ssub.s32 4096, 4096
          %573 = vsyncadd %s567, %s572
          %s574 = smul.addr %s33, 64
          %s575 = smul.addr %s574, 64
          %s576 = scalar_lea.hbm %s9, %s575
          %s577 = sshll.u32 %s570, 4
          %s578 = int_to_ptr.vmem [resolvable:$true] %s577
          %583 = dma.hbm_to_vmem [thread:$0]  %s576, 4096, %s578, %s567, 256, 256, 16
        $region56: #{tpu_custom_call.1} parent=23 // pred_fallthru
          _
        // Predicated region
        $region57: #{tpu_custom_call.1} parent=23 // pred_check
          %p584 = pneg %p317
        $region58: #{tpu_custom_call.1} parent=23 // pred_check_branch
          %586 = sbr.rel (%p584) target = $region60
        $region59: #{tpu_custom_call.1} parent=23 // pred_region
          %p587 = scmp.lt.s32.totalorder %s33, 1
          %s588 = scalar_select %p587, %s33, 1
          %s589 = smul.addr %s588, 4
          %s590 = scalar_lea.vmem %s10, %s589
        $region60: #{tpu_custom_call.1} parent=23 // pred_fallthru
          _
        // Predicated region
        $region61: #{tpu_custom_call.1} parent=23 // pred_check
          %p591 = pneg %p343
        $region62: #{tpu_custom_call.1} parent=23 // pred_check_branch
          %593 = sbr.rel (%p591) target = $region64
        $region63: #{tpu_custom_call.1} parent=23 // pred_region
          %s594 = sand.u32 %s25, 1
          %s595 = scalar_lea.sflag [#allocation4], %s594
          %s596 = sand.u32 %s333, 1
          %s597 = smul.addr %s596, 256
          %s598 = scalar_lea.vmem [#allocation12], %s597
          %s600 = ssub.s32 4096, 4096
          %601 = vsyncadd %s595, %s600
          %s602 = smul.addr %s33, 64
          %s603 = smul.addr %s602, 64
          %s604 = scalar_lea.hbm %s11, %s603
          %s605 = sshll.u32 %s598, 4
          %s606 = int_to_ptr.vmem [resolvable:$true] %s605
          %611 = dma.hbm_to_vmem [thread:$0]  %s604, 4096, %s606, %s595, 64, 64, 4
        $region64: #{tpu_custom_call.1} parent=23 // pred_fallthru
          _
        // Predicated region
        $region65: #{tpu_custom_call.1} parent=23 // pred_check
          %p612 = pneg %p369
        $region66: #{tpu_custom_call.1} parent=23 // pred_check_branch
          %614 = sbr.rel (%p612) target = $region68
        $region67: #{tpu_custom_call.1} parent=23 // pred_region
          %p615 = scmp.lt.s32.totalorder %s33, 1
          %s616 = scalar_select %p615, %s33, 1
          %s617 = scalar_lea.vmem %s12, %s616
        $region68: #{tpu_custom_call.1} parent=23 // pred_fallthru
          _
      $region24: #{tpu_custom_call.1} parent=5 // pred_fallthru
        _
      %p618 = scmp.le.s32.totalorder 1, %s25
      %p619 = scmp.lt.s32.totalorder %s25, 3
      %p620 = pnand %p618, %p619
      %p621 = pneg %p620
      // Predicated region
      $region69: #{tpu_custom_call.1} parent=5 // pred_check
        _
      $region70: #{tpu_custom_call.1} parent=5 // pred_check_branch
        %623 = sbr.rel (%p620) target = $region72
      $region71: #{tpu_custom_call.1} parent=5 // pred_region
        %s624 = ssub.s32 %s25, 1
        // Predicated region
        $region73: #{tpu_custom_call.1} parent=71 // pred_check
          %p625 = pneg %p63
        $region74: #{tpu_custom_call.1} parent=71 // pred_check_branch
          %627 = sbr.rel (%p625) target = $region76
        $region75: #{tpu_custom_call.1} parent=71 // pred_region
          %628 = dma.done [#allocation4], 512
        $region76: #{tpu_custom_call.1} parent=71 // pred_fallthru
          _
        // Predicated region
        $region77: #{tpu_custom_call.1} parent=71 // pred_check
          %p629 = pneg %p89
        $region78: #{tpu_custom_call.1} parent=71 // pred_check_branch
          %631 = sbr.rel (%p629) target = $region80
        $region79: #{tpu_custom_call.1} parent=71 // pred_region
          %632 = dma.done [#allocation7], 512
        $region80: #{tpu_custom_call.1} parent=71 // pred_fallthru
          _
        %s633 = sand.u32 %s30, 1
        %s634 = scalar_lea.sflag [#allocation4], %s633
        %s635 = sand.u32 %s154, 1
        %s636 = smul.addr %s635, 192
        %s637 = scalar_lea.vmem [#allocation8], %s636
        // Predicated region
        $region81: #{tpu_custom_call.1} parent=71 // pred_check
          %p638 = pneg %p167
        $region82: #{tpu_custom_call.1} parent=71 // pred_check_branch
          %640 = sbr.rel (%p638) target = $region84
        $region83: #{tpu_custom_call.1} parent=71 // pred_region
          %641 = dma.done %s634, 3072
        $region84: #{tpu_custom_call.1} parent=71 // pred_fallthru
          _
        %s642 = sand.u32 %s30, 1
        %s643 = scalar_lea.sflag [#allocation4], %s642
        %s644 = sand.u32 %s180, 1
        %s645 = smul.addr %s644, 64
        %s646 = scalar_lea.vmem [#allocation9], %s645
        // Predicated region
        $region85: #{tpu_custom_call.1} parent=71 // pred_check
          %p647 = pneg %p193
        $region86: #{tpu_custom_call.1} parent=71 // pred_check_branch
          %649 = sbr.rel (%p647) target = $region88
        $region87: #{tpu_custom_call.1} parent=71 // pred_region
          %650 = dma.done %s643, 1024
        $region88: #{tpu_custom_call.1} parent=71 // pred_fallthru
          _
        %s651 = sand.u32 %s30, 1
        %s652 = scalar_lea.sflag [#allocation4], %s651
        %s653 = sand.u32 %s258, 1
        %s654 = scalar_lea.vmem [#allocation10], %s653
        // Predicated region
        $region89: #{tpu_custom_call.1} parent=71 // pred_check
          %p655 = pneg %p271
        $region90: #{tpu_custom_call.1} parent=71 // pred_check_branch
          %657 = sbr.rel (%p655) target = $region92
        $region91: #{tpu_custom_call.1} parent=71 // pred_region
          %658 = dma.done %s652, 16
        $region92: #{tpu_custom_call.1} parent=71 // pred_fallthru
          _
        %s659 = sand.u32 %s30, 1
        %s660 = scalar_lea.sflag [#allocation4], %s659
        %s661 = sand.u32 %s284, 1
        %s662 = smul.addr %s661, 256
        %s663 = scalar_lea.vmem [#allocation11], %s662
        // Predicated region
        $region93: #{tpu_custom_call.1} parent=71 // pred_check
          %p664 = pneg %p297
        $region94: #{tpu_custom_call.1} parent=71 // pred_check_branch
          %666 = sbr.rel (%p664) target = $region96
        $region95: #{tpu_custom_call.1} parent=71 // pred_region
          %667 = dma.done %s660, 4096
        $region96: #{tpu_custom_call.1} parent=71 // pred_fallthru
          _
        %s668 = sand.u32 %s30, 1
        %s669 = scalar_lea.sflag [#allocation4], %s668
        %s670 = sand.u32 %s336, 1
        %s671 = smul.addr %s670, 256
        %s672 = scalar_lea.vmem [#allocation12], %s671
        // Predicated region
        $region97: #{tpu_custom_call.1} parent=71 // pred_check
          %p673 = pneg %p349
        $region98: #{tpu_custom_call.1} parent=71 // pred_check_branch
          %675 = sbr.rel (%p673) target = $region100
        $region99: #{tpu_custom_call.1} parent=71 // pred_region
          %676 = dma.done %s669, 4096
        $region100: #{tpu_custom_call.1} parent=71 // pred_fallthru
          _
        %p677 = pneg %p63
        %p678 = pneg %p60
        %p679 = pneg %p89
        %p680 = pneg %p86
        %p681 = scmp.lt.s32.totalorder %s35, 1
        %s682 = scalar_select %p681, %s35, 1
        %s683 = scalar_lea.vmem %s2, %s682
        %p684 = pneg %p115
        %p685 = pneg %p112
        %p686 = scmp.lt.s32.totalorder %s35, 1
        %s687 = scalar_select %p686, %s35, 1
        %s688 = scalar_lea.vmem %s3, %s687
        %p689 = pneg %p141
        %p690 = pneg %p138
        %s691 = sand.u32 %s30, 1
        %s692 = scalar_lea.sflag [#allocation4], %s691
        %s693 = sand.u32 %s154, 1
        %s694 = smul.addr %s693, 192
        %s695 = scalar_lea.vmem [#allocation8], %s694
        %p696 = pneg %p167
        %p697 = pneg %p164
        %s698 = sand.u32 %s30, 1
        %s699 = scalar_lea.sflag [#allocation4], %s698
        %s700 = sand.u32 %s180, 1
        %s701 = smul.addr %s700, 64
        %s702 = scalar_lea.vmem [#allocation9], %s701
        %p703 = pneg %p193
        %p704 = pneg %p190
        %p705 = scmp.lt.s32.totalorder %s35, 1
        %s706 = scalar_select %p705, %s35, 1
        %s707 = scalar_lea.vmem %s6, %s706
        %p708 = pneg %p219
        %p709 = pneg %p216
        %p710 = scmp.lt.s32.totalorder %s35, 1
        %s711 = scalar_select %p710, %s35, 1
        %s712 = scalar_lea.vmem %s7, %s711
        %p713 = pneg %p245
        %p714 = pneg %p242
        %s715 = sand.u32 %s30, 1
        %s716 = scalar_lea.sflag [#allocation4], %s715
        %s717 = sand.u32 %s258, 1
        %s718 = scalar_lea.vmem [#allocation10], %s717
        %p719 = pneg %p271
        %p720 = pneg %p268
        %s721 = sand.u32 %s30, 1
        %s722 = scalar_lea.sflag [#allocation4], %s721
        %s723 = sand.u32 %s284, 1
        %s724 = smul.addr %s723, 256
        %s725 = scalar_lea.vmem [#allocation11], %s724
        %p726 = pneg %p297
        %p727 = pneg %p294
        %p728 = scmp.lt.s32.totalorder %s35, 1
        %s729 = scalar_select %p728, %s35, 1
        %s730 = smul.addr %s729, 4
        %s731 = scalar_lea.vmem %s10, %s730
        %p732 = pneg %p323
        %p733 = pneg %p320
        %s734 = sand.u32 %s30, 1
        %s735 = scalar_lea.sflag [#allocation4], %s734
        %s736 = sand.u32 %s336, 1
        %s737 = smul.addr %s736, 256
        %s738 = scalar_lea.vmem [#allocation12], %s737
        %p739 = pneg %p349
        %p740 = pneg %p346
        %p741 = scmp.lt.s32.totalorder %s35, 1
        %s742 = scalar_select %p741, %s35, 1
        %s743 = scalar_lea.vmem %s12, %s742
        %p744 = pneg %p375
        %p745 = pneg %p372
        %p746 = pneg %p401
        %p747 = pneg %p398
        %p748 = pneg %p427
        %p749 = pneg %p424
        %s750 = smul.u32 2, %s34
        %s751 = smul.u32 2, %s34
        %p752 = scmp.lt.s32.totalorder %s35, 1
        %s753 = scalar_select %p752, %s35, 1
        %s754 = scalar_lea.vmem %s2, %s753
        %p755 = scmp.lt.s32.totalorder %s35, 1
        %s756 = scalar_select %p755, %s35, 1
        %s757 = scalar_lea.vmem %s3, %s756
        %p758 = scmp.lt.s32.totalorder %s35, 1
        %s759 = scalar_select %p758, %s35, 1
        %s760 = scalar_lea.vmem %s6, %s759
        %p761 = scmp.lt.s32.totalorder %s35, 1
        %s762 = scalar_select %p761, %s35, 1
        %s763 = scalar_lea.vmem %s7, %s762
        %p764 = scmp.lt.s32.totalorder %s35, 1
        %s765 = scalar_select %p764, %s35, 1
        %s766 = smul.addr %s765, 4
        %s767 = scalar_lea.vmem %s10, %s766
        %p768 = scmp.lt.s32.totalorder %s35, 1
        %s769 = scalar_select %p768, %s35, 1
        %s770 = scalar_lea.vmem %s12, %s769
        %s771 = smul.u32 2, %s34
        %s772 = smul.u32 2, %s34
        %p774 = scmp.eq.s32.totalorder %s35, 0
        // Predicated region
        $region101: #{tpu_custom_call.1} parent=71 // pred_check
          %p775 = pneg %p774
        $region102: #{tpu_custom_call.1} parent=71 // pred_check_branch
          %777 = sbr.rel (%p775) target = $region104
        $region103: #{tpu_custom_call.1} parent=71 // pred_region
          %v778 = vld [vmem:[#allocation3] sm:$0xff]
          %v779 = vld [vmem:[#allocation3 + $0x8] sm:$0xff]
          %v780 = vld [vmem:[#allocation3 + $0x10] sm:$0xff]
          %v781 = vld [vmem:[#allocation3 + $0x18] sm:$0xff]
          %782 = vst [vmem:[#allocation2] sm:$0xff] %v778
          %783 = vst [vmem:[#allocation2 + $0x8] sm:$0xff] %v779
          %784 = vst [vmem:[#allocation2 + $0x10] sm:$0xff] %v780
          %785 = vst [vmem:[#allocation2 + $0x18] sm:$0xff] %v781
        $region104: #{tpu_custom_call.1} parent=71 // pred_fallthru
          _
        %v786 = vld [vmem:[#allocation2] sm:$0xff]
        %v787 = vld [vmem:[#allocation2 + $0x8] sm:$0xff]
        %v788 = vld [vmem:[#allocation2 + $0x10] sm:$0xff]
        %v789 = vld [vmem:[#allocation2 + $0x18] sm:$0xff]
        %v790 = vld [vmem:[#allocation6] sm:$0xff]
        %v791 = vld [vmem:[#allocation6 + $0x8] sm:$0xff]
        %v792 = vld [vmem:[#allocation6 + $0x10] sm:$0xff]
        %v793 = vld [vmem:[#allocation6 + $0x18] sm:$0xff]
        %v794 = vadd.f32 %v786, %v790
        %v795 = vadd.f32 %v787, %v791
        %v796 = vadd.f32 %v788, %v792
        %v797 = vadd.f32 %v789, %v793
        %v798 = vld [vmem:[%s754] sm:$0x1]
        %v799 = vld [vmem:[%s757] sm:$0x1]
        %800 = vadd.xlane.f32.xlu0 %v794
        %v801 = vpop.xlane.xlu0 %800
        %802 = vadd.xlane.f32.xlu0 %v795
        %v803 = vpop.xlane.xlu0 %802
        %804 = vadd.xlane.f32.xlu0 %v796
        %v805 = vpop.xlane.xlu0 %804
        %806 = vadd.xlane.f32.xlu0 %v797
        %v807 = vpop.xlane.xlu0 %806
        %v808 = vrcp.pop 128.0
        %v809 = vmul.f32 %v801, %v808
        %v810 = vmul.f32 %v803, %v808
        %v811 = vmul.f32 %v805, %v808
        %v812 = vmul.f32 %v807, %v808
        %v813 = vsub.f32 %v794, %v809
        %v814 = vsub.f32 %v795, %v810
        %v815 = vsub.f32 %v796, %v811
        %v816 = vsub.f32 %v797, %v812
        %v817 = vmul.f32 %v813, %v813
        %v818 = vmul.f32 %v814, %v814
        %v819 = vmul.f32 %v815, %v815
        %v820 = vmul.f32 %v816, %v816
        %821 = vadd.xlane.f32.xlu0 %v817
        %v822 = vpop.xlane.xlu0 %821
        %823 = vadd.xlane.f32.xlu0 %v818
        %v824 = vpop.xlane.xlu0 %823
        %825 = vadd.xlane.f32.xlu0 %v819
        %v826 = vpop.xlane.xlu0 %825
        %827 = vadd.xlane.f32.xlu0 %v820
        %v828 = vpop.xlane.xlu0 %827
        %v829 = vmul.f32 %v822, %v808
        %v830 = vmul.f32 %v824, %v808
        %v831 = vmul.f32 %v826, %v808
        %v832 = vmul.f32 %v828, %v808
        %v833 = vadd.f32 %v829, 1e-05
        %v834 = vadd.f32 %v830, 1e-05
        %v835 = vadd.f32 %v831, 1e-05
        %v836 = vadd.f32 %v832, 1e-05
        %v837 = vrsqrt.pop %v833
        %v838 = vrsqrt.pop %v834
        %v839 = vrsqrt.pop %v835
        %v840 = vrsqrt.pop %v836
        %v841 = vmul.f32 %v813, %v837
        %v842 = vmul.f32 %v814, %v838
        %v843 = vmul.f32 %v815, %v839
        %v844 = vmul.f32 %v816, %v840
        %v846 = vlaneseq
        %v847 = vshrl.u32 %v846, 7
        %v848 = vsub.s32 0, %v847
        %v849 = vrot.slane %v798, %v848
        %v851 = vmul.f32 %v841, %v849
        %v852 = vmul.f32 %v842, %v849
        %v853 = vmul.f32 %v843, %v849
        %v854 = vmul.f32 %v844, %v849
        %v856 = vlaneseq
        %v857 = vshrl.u32 %v856, 7
        %v858 = vsub.s32 0, %v857
        %v859 = vrot.slane %v799, %v858
        %v861 = vadd.f32 %v851, %v859
        %v862 = vadd.f32 %v852, %v859
        %v863 = vadd.f32 %v853, %v859
        %v864 = vadd.f32 %v854, %v859
        %v865 = vpack.c.bf16 %v862, %v861
        %v866 = vpack.c.bf16 %v864, %v863
        %v867 = vld [vmem:[%s637] sm:$0xff]
        %v868 = vld [vmem:[%s637 + $0x8] sm:$0xf]
        %v869 = vld [vmem:[%s637 + $0xc] sm:$0xff]
        %v870 = vld [vmem:[%s637 + $0x14] sm:$0xf]
        %v871 = vld [vmem:[%s637 + $0x18] sm:$0xff]
        %v872 = vld [vmem:[%s637 + $0x20] sm:$0xf]
        %v873 = vld [vmem:[%s637 + $0x24] sm:$0xff]
        %v874 = vld [vmem:[%s637 + $0x2c] sm:$0xf]
        %v875 = vld [vmem:[%s637 + $0x30] sm:$0xff]
        %v876 = vld [vmem:[%s637 + $0x38] sm:$0xf]
        %v877 = vld [vmem:[%s637 + $0x3c] sm:$0xff]
        %v878 = vld [vmem:[%s637 + $0x44] sm:$0xf]
        %v879 = vld [vmem:[%s637 + $0x48] sm:$0xff]
        %v880 = vld [vmem:[%s637 + $0x50] sm:$0xf]
        %v881 = vld [vmem:[%s637 + $0x54] sm:$0xff]
        %v882 = vld [vmem:[%s637 + $0x5c] sm:$0xf]
        %v883 = vld [vmem:[%s637 + $0x60] sm:$0xff]
        %v884 = vld [vmem:[%s637 + $0x68] sm:$0xf]
        %v885 = vld [vmem:[%s637 + $0x6c] sm:$0xff]
        %v886 = vld [vmem:[%s637 + $0x74] sm:$0xf]
        %v887 = vld [vmem:[%s637 + $0x78] sm:$0xff]
        %v888 = vld [vmem:[%s637 + $0x80] sm:$0xf]
        %v889 = vld [vmem:[%s637 + $0x84] sm:$0xff]
        %v890 = vld [vmem:[%s637 + $0x8c] sm:$0xf]
        %v891 = vld [vmem:[%s637 + $0x90] sm:$0xff]
        %v892 = vld [vmem:[%s637 + $0x98] sm:$0xf]
        %v893 = vld [vmem:[%s637 + $0x9c] sm:$0xff]
        %v894 = vld [vmem:[%s637 + $0xa4] sm:$0xf]
        %v895 = vld [vmem:[%s637 + $0xa8] sm:$0xff]
        %v896 = vld [vmem:[%s637 + $0xb0] sm:$0xf]
        %v897 = vld [vmem:[%s637 + $0xb4] sm:$0xff]
        %v898 = vld [vmem:[%s637 + $0xbc] sm:$0xf]
        %v931 = vunpack.c.l.b16 %v867
        %v932 = vunpack.c.h.b16 %v867
        %v933 = vunpack.c.l.b16 %v868
        %v934 = vunpack.c.l.b16 %v869
        %v935 = vunpack.c.h.b16 %v869
        %v936 = vunpack.c.l.b16 %v870
        %v937 = vunpack.c.l.b16 %v871
        %v938 = vunpack.c.h.b16 %v871
        %v939 = vunpack.c.l.b16 %v872
        %v940 = vunpack.c.l.b16 %v873
        %v941 = vunpack.c.h.b16 %v873
        %v942 = vunpack.c.l.b16 %v874
        %v943 = vunpack.c.l.b16 %v875
        %v944 = vunpack.c.h.b16 %v875
        %v945 = vunpack.c.l.b16 %v876
        %v946 = vunpack.c.l.b16 %v877
        %v947 = vunpack.c.h.b16 %v877
        %v948 = vunpack.c.l.b16 %v878
        %v949 = vunpack.c.l.b16 %v879
        %v950 = vunpack.c.h.b16 %v879
        %v951 = vunpack.c.l.b16 %v880
        %v952 = vunpack.c.l.b16 %v881
        %v953 = vunpack.c.h.b16 %v881
        %v954 = vunpack.c.l.b16 %v882
        %v955 = vunpack.c.l.b16 %v883
        %v956 = vunpack.c.h.b16 %v883
        %v957 = vunpack.c.l.b16 %v884
        %v958 = vunpack.c.l.b16 %v885
        %v959 = vunpack.c.h.b16 %v885
        %v960 = vunpack.c.l.b16 %v886
        %v961 = vunpack.c.l.b16 %v887
        %v962 = vunpack.c.h.b16 %v887
        %v963 = vunpack.c.l.b16 %v888
        %v964 = vunpack.c.l.b16 %v889
        %v965 = vunpack.c.h.b16 %v889
        %v966 = vunpack.c.l.b16 %v890
        %v967 = vunpack.c.l.b16 %v891
        %v968 = vunpack.c.h.b16 %v891
        %v969 = vunpack.c.l.b16 %v892
        %v970 = vunpack.c.l.b16 %v893
        %v971 = vunpack.c.h.b16 %v893
        %v972 = vunpack.c.l.b16 %v894
        %v973 = vunpack.c.l.b16 %v895
        %v974 = vunpack.c.h.b16 %v895
        %v975 = vunpack.c.l.b16 %v896
        %v976 = vunpack.c.l.b16 %v897
        %v977 = vunpack.c.h.b16 %v897
        %v978 = vunpack.c.l.b16 %v898
        %v979 = vpack.c.b16 %v934, %v931
        %v980 = vpack.c.b16 %v935, %v932
        %v981 = vpack.c.b16 %v936, %v933
        %v982 = vpack.c.b16 %v940, %v937
        %v983 = vpack.c.b16 %v941, %v938
        %v984 = vpack.c.b16 %v942, %v939
        %v985 = vpack.c.b16 %v946, %v943
        %v986 = vpack.c.b16 %v947, %v944
        %v987 = vpack.c.b16 %v948, %v945
        %v988 = vpack.c.b16 %v952, %v949
        %v989 = vpack.c.b16 %v953, %v950
        %v990 = vpack.c.b16 %v954, %v951
        %v991 = vpack.c.b16 %v958, %v955
        %v992 = vpack.c.b16 %v959, %v956
        %v993 = vpack.c.b16 %v960, %v957
        %v994 = vpack.c.b16 %v964, %v961
        %v995 = vpack.c.b16 %v965, %v962
        %v996 = vpack.c.b16 %v966, %v963
        %v997 = vpack.c.b16 %v970, %v967
        %v998 = vpack.c.b16 %v971, %v968
        %v999 = vpack.c.b16 %v972, %v969
        %v1000 = vpack.c.b16 %v976, %v973
        %v1001 = vpack.c.b16 %v977, %v974
        %v1002 = vpack.c.b16 %v978, %v975
        %1027 = vmatprep.subr.bf16.mxu0 %v1001
        %1028 = vmatpush1.bf16.msra.mxu0 %v1000
        %1029 = vmatprep.subr.bf16.mxu0 %v998
        %1030 = vmatpush1.bf16.msra.mxu0 %v997
        %1031 = vmatprep.subr.bf16.mxu0 %v995
        %1032 = vmatpush1.bf16.msra.mxu0 %v994
        %1033 = vmatprep.subr.bf16.mxu0 %v992
        %1034 = vmatpush1.bf16.msra.mxu0 %v991
        %1035 = vmatprep.subr.bf16.mxu0 %v989
        %1036 = vmatpush1.bf16.msra.mxu0 %v988
        %1037 = vmatprep.subr.bf16.mxu0 %v986
        %1038 = vmatpush1.bf16.msra.mxu0 %v985
        %1039 = vmatprep.subr.bf16.mxu0 %v983
        %1040 = vmatpush1.bf16.msra.mxu0 %v982
        %1041 = vmatprep.subr.bf16.mxu0 %v980
        %1042 = vmatpush1.bf16.msra.mxu0 %v979
        %1043 = vmatprep.subr.bf16.mxu0 0
        %1044 = vmatpush2.bf16.msra.mxu0 0
        %1045 = vmatprep.subr.bf16.mxu0 0
        %1046 = vmatpush2.bf16.msra.mxu0 0
        %1047 = vmatprep.subr.bf16.mxu0 0
        %1048 = vmatpush2.bf16.msra.mxu0 0
        %1049 = vmatprep.subr.bf16.mxu0 0
        %1050 = vmatpush2.bf16.msra.mxu0 0
        %1051 = vmatprep.subr.bf16.mxu0 0
        %1052 = vmatpush2.bf16.msra.mxu0 0
        %1053 = vmatprep.subr.bf16.mxu0 0
        %1054 = vmatpush2.bf16.msra.mxu0 0
        %1055 = vmatprep.subr.bf16.mxu0 0
        %1056 = vmatpush2.bf16.msra.mxu0 0
        %1057 = vmatprep.subr.bf16.mxu0 0
        %1058 = vmatpush2.bf16.msra.mxu0 0
        %1059 = vmatprep.mubr.bf16.mxu0 0
        %1060 = vmatmul.mubr.bf16.gmra.mxu0 %v865
        %v1061 = vpop.f32.mrf.mxu0
        %v1062 = vadd.f32 0.0, %v1061
        %v1063 = vpop.f32.mrf.mxu0
        %v1064 = vadd.f32 0.0, %v1063
        %v1065 = vpop.f32.mrf.mxu0
        %v1066 = vadd.f32 0.0, %v1065
        %v1067 = vpop.f32.mrf.mxu0
        %v1068 = vadd.f32 0.0, %v1067
        %1069 = vmatprep.mubr.bf16.mxu0 0
        %1070 = vmatmul.mubr.bf16.gmra.mxu0 %v866
        %v1071 = vpop.f32.mrf.mxu0
        %v1072 = vadd.f32 0.0, %v1071
        %v1073 = vpop.f32.mrf.mxu0
        %v1074 = vadd.f32 0.0, %v1073
        %v1075 = vpop.f32.mrf.mxu0
        %v1076 = vadd.f32 0.0, %v1075
        %v1077 = vpop.f32.mrf.mxu0
        %v1078 = vadd.f32 0.0, %v1077
        %1079 = vdwg.mxu0
        %1080 = vmatprep.subr.bf16.mxu0 0
        %1081 = vmatpush1.bf16.msra.mxu0 %v1002
        %1082 = vmatprep.subr.bf16.mxu0 0
        %1083 = vmatpush1.bf16.msra.mxu0 %v999
        %1084 = vmatprep.subr.bf16.mxu0 0
        %1085 = vmatpush1.bf16.msra.mxu0 %v996
        %1086 = vmatprep.subr.bf16.mxu0 0
        %1087 = vmatpush1.bf16.msra.mxu0 %v993
        %1088 = vmatprep.subr.bf16.mxu0 0
        %1089 = vmatpush1.bf16.msra.mxu0 %v990
        %1090 = vmatprep.subr.bf16.mxu0 0
        %1091 = vmatpush1.bf16.msra.mxu0 %v987
        %1092 = vmatprep.subr.bf16.mxu0 0
        %1093 = vmatpush1.bf16.msra.mxu0 %v984
        %1094 = vmatprep.subr.bf16.mxu0 0
        %1095 = vmatpush1.bf16.msra.mxu0 %v981
        %1096 = vmatprep.subr.bf16.mxu0 0
        %1097 = vmatpush2.bf16.msra.mxu0 0
        %1098 = vmatprep.subr.bf16.mxu0 0
        %1099 = vmatpush2.bf16.msra.mxu0 0
        %1100 = vmatprep.subr.bf16.mxu0 0
        %1101 = vmatpush2.bf16.msra.mxu0 0
        %1102 = vmatprep.subr.bf16.mxu0 0
        %1103 = vmatpush2.bf16.msra.mxu0 0
        %1104 = vmatprep.subr.bf16.mxu0 0
        %1105 = vmatpush2.bf16.msra.mxu0 0
        %1106 = vmatprep.subr.bf16.mxu0 0
        %1107 = vmatpush2.bf16.msra.mxu0 0
        %1108 = vmatprep.subr.bf16.mxu0 0
        %1109 = vmatpush2.bf16.msra.mxu0 0
        %1110 = vmatprep.subr.bf16.mxu0 0
        %1111 = vmatpush2.bf16.msra.mxu0 0
        %1112 = vmatprep.mubr.bf16.mxu0 0
        %1113 = vmatmul.mubr.bf16.gmra.mxu0 %v865
        %v1114 = vpop.f32.mrf.mxu0
        %v1115 = vadd.f32 0.0, %v1114
        %v1116 = vpop.f32.mrf.mxu0
        %v1117 = vpop.f32.mrf.mxu0
        %v1118 = vadd.f32 0.0, %v1117
        %v1119 = vpop.f32.mrf.mxu0
        %1120 = vmatprep.mubr.bf16.mxu0 0
        %1121 = vmatmul.mubr.bf16.gmra.mxu0 %v866
        %v1122 = vpop.f32.mrf.mxu0
        %v1123 = vadd.f32 0.0, %v1122
        %v1124 = vpop.f32.mrf.mxu0
        %v1125 = vpop.f32.mrf.mxu0
        %v1126 = vadd.f32 0.0, %v1125
        %v1127 = vpop.f32.mrf.mxu0
        %1128 = vdwg.mxu0
        %v1129 = vpack.c.bf16 %v1066, %v1062
        %v1130 = vpack.c.bf16 %v1076, %v1072
        %v1131 = vpack.c.bf16 %v1068, %v1064
        %v1132 = vpack.c.bf16 %v1078, %v1074
        %v1133 = vpack.c.bf16 %v1118, %v1115
        %v1134 = vpack.c.bf16 %v1126, %v1123
        %vm1135 = vcmask 261120
        %v1137 = vsel %vm1135, %v1129, 0
        %v1140 = vsel %vm1135, %v1131, 0
        %1142 = vmatprep.subr.bf16.mxu0 0
        %1143 = vmatpush1.bf16.xpose.msra.mxu0 0
        %1144 = vmatprep.subr.bf16.mxu0 0
        %1145 = vmatpush1.bf16.xpose.msra.mxu0 0
        %1146 = vmatprep.subr.bf16.mxu0 0
        %1147 = vmatpush1.bf16.xpose.msra.mxu0 0
        %1148 = vmatprep.subr.bf16.mxu0 0
        %1149 = vmatpush1.bf16.xpose.msra.mxu0 0
        %1150 = vmatprep.subr.bf16.mxu0 0
        %1151 = vmatpush1.bf16.xpose.msra.mxu0 0
        %1152 = vmatprep.subr.bf16.mxu0 0
        %1153 = vmatpush1.bf16.xpose.msra.mxu0 0
        %1154 = vmatprep.subr.bf16.mxu0 0
        %1155 = vmatpush1.bf16.xpose.msra.mxu0 0
        %1156 = vmatprep.subr.bf16.mxu0 0
        %1157 = vmatpush1.bf16.xpose.msra.mxu0 %v1140
        %1158 = vmatprep.subr.bf16.mxu0 0
        %1159 = vmatpush2.bf16.xpose.msra.mxu0 0
        %1160 = vmatprep.subr.bf16.mxu0 0
        %1161 = vmatpush2.bf16.xpose.msra.mxu0 0
        %1162 = vmatprep.subr.bf16.mxu0 0
        %1163 = vmatpush2.bf16.xpose.msra.mxu0 0
        %1164 = vmatprep.subr.bf16.mxu0 0
        %1165 = vmatpush2.bf16.xpose.msra.mxu0 0
        %1166 = vmatprep.subr.bf16.mxu0 0
        %1167 = vmatpush2.bf16.xpose.msra.mxu0 0
        %1168 = vmatprep.subr.bf16.mxu0 0
        %1169 = vmatpush2.bf16.xpose.msra.mxu0 0
        %1170 = vmatprep.subr.bf16.mxu0 0
        %1171 = vmatpush2.bf16.xpose.msra.mxu0 0
        %1172 = vmatprep.subr.bf16.mxu0 0
        %1173 = vmatpush2.bf16.xpose.msra.mxu0 0
        %1174 = vmatprep.mubr.bf16.mxu0 0
        %1175 = vmatmul.mubr.bf16.gmra.mxu0 %v1137
        %v1176 = vpop.f32.mrf.mxu0
        %v1177 = vadd.f32 0.0, %v1176
        %v1178 = vpop.f32.mrf.mxu0
        %v1179 = vpop.f32.mrf.mxu0
        %v1180 = vadd.f32 0.0, %v1179
        %v1181 = vpop.f32.mrf.mxu0
        %1182 = vdwg.mxu0
        %v1184 = vsel %vm1135, %v1130, 0
        %v1187 = vsel %vm1135, %v1132, 0
        %1189 = vmatprep.subr.bf16.mxu0 0
        %1190 = vmatpush1.bf16.xpose.msra.mxu0 0
        %1191 = vmatprep.subr.bf16.mxu0 0
        %1192 = vmatpush1.bf16.xpose.msra.mxu0 0
        %1193 = vmatprep.subr.bf16.mxu0 0
        %1194 = vmatpush1.bf16.xpose.msra.mxu0 0
        %1195 = vmatprep.subr.bf16.mxu0 0
        %1196 = vmatpush1.bf16.xpose.msra.mxu0 0
        %1197 = vmatprep.subr.bf16.mxu0 0
        %1198 = vmatpush1.bf16.xpose.msra.mxu0 0
        %1199 = vmatprep.subr.bf16.mxu0 0
        %1200 = vmatpush1.bf16.xpose.msra.mxu0 0
        %1201 = vmatprep.subr.bf16.mxu0 0
        %1202 = vmatpush1.bf16.xpose.msra.mxu0 0
        %1203 = vmatprep.subr.bf16.mxu0 0
        %1204 = vmatpush1.bf16.xpose.msra.mxu0 %v1187
        %1205 = vmatprep.subr.bf16.mxu0 0
        %1206 = vmatpush2.bf16.xpose.msra.mxu0 0
        %1207 = vmatprep.subr.bf16.mxu0 0
        %1208 = vmatpush2.bf16.xpose.msra.mxu0 0
        %1209 = vmatprep.subr.bf16.mxu0 0
        %1210 = vmatpush2.bf16.xpose.msra.mxu0 0
        %1211 = vmatprep.subr.bf16.mxu0 0
        %1212 = vmatpush2.bf16.xpose.msra.mxu0 0
        %1213 = vmatprep.subr.bf16.mxu0 0
        %1214 = vmatpush2.bf16.xpose.msra.mxu0 0
        %1215 = vmatprep.subr.bf16.mxu0 0
        %1216 = vmatpush2.bf16.xpose.msra.mxu0 0
        %1217 = vmatprep.subr.bf16.mxu0 0
        %1218 = vmatpush2.bf16.xpose.msra.mxu0 0
        %1219 = vmatprep.subr.bf16.mxu0 0
        %1220 = vmatpush2.bf16.xpose.msra.mxu0 0
        %1221 = vmatprep.mubr.bf16.mxu0 0
        %1222 = vmatmul.mubr.bf16.gmra.mxu0 %v1184
        %v1223 = vpop.f32.mrf.mxu0
        %v1224 = vadd.f32 0.0, %v1223
        %v1225 = vpop.f32.mrf.mxu0
        %v1226 = vpop.f32.mrf.mxu0
        %v1227 = vadd.f32 0.0, %v1226
        %v1228 = vpop.f32.mrf.mxu0
        %1229 = vdwg.mxu0
        %vm1230 = vcmask 130048
        %v1231 = vsel %vm1230, %v1177, -inf
        %1232 = vmax.xlane.f32.xlu0 %v1231
        %v1233 = vpop.xlane.xlu0 %1232
        %v1234 = vsel %vm1230, %v1180, -inf
        %1235 = vmax.xlane.f32.xlu0 %v1234
        %v1236 = vpop.xlane.xlu0 %1235
        %v1237 = vsel %vm1230, %v1224, -inf
        %1238 = vmax.xlane.f32.xlu0 %v1237
        %v1239 = vpop.xlane.xlu0 %1238
        %v1240 = vsel %vm1230, %v1227, -inf
        %1241 = vmax.xlane.f32.xlu0 %v1240
        %v1242 = vpop.xlane.xlu0 %1241
        %v1243 = vsub.f32 %v1177, %v1233
        %v1244 = vsub.f32 %v1180, %v1236
        %v1245 = vsub.f32 %v1224, %v1239
        %v1246 = vsub.f32 %v1227, %v1242
        %v1247 = vmul.f32 %v1243, 1.442695
        %v1248 = vpow.pop %v1247
        %v1249 = vmul.f32 %v1244, 1.442695
        %v1250 = vpow.pop %v1249
        %v1251 = vmul.f32 %v1245, 1.442695
        %v1252 = vpow.pop %v1251
        %v1253 = vmul.f32 %v1246, 1.442695
        %v1254 = vpow.pop %v1253
        %v1255 = vsel %vm1230, %v1248, 0.0
        %1256 = vadd.xlane.f32.xlu0 %v1255
        %v1257 = vpop.xlane.xlu0 %1256
        %v1258 = vsel %vm1230, %v1250, 0.0
        %1259 = vadd.xlane.f32.xlu0 %v1258
        %v1260 = vpop.xlane.xlu0 %1259
        %v1261 = vsel %vm1230, %v1252, 0.0
        %1262 = vadd.xlane.f32.xlu0 %v1261
        %v1263 = vpop.xlane.xlu0 %1262
        %v1264 = vsel %vm1230, %v1254, 0.0
        %1265 = vadd.xlane.f32.xlu0 %v1264
        %v1266 = vpop.xlane.xlu0 %1265
        %v1267 = vrcp.pop %v1257
        %v1268 = vrcp.pop %v1260
        %v1269 = vrcp.pop %v1263
        %v1270 = vrcp.pop %v1266
        %v1271 = vmul.f32 %v1248, %v1267
        %v1272 = vmul.f32 %v1250, %v1268
        %v1273 = vmul.f32 %v1252, %v1269
        %v1274 = vmul.f32 %v1254, %v1270
        %v1275 = vpack.c.bf16 %v1272, %v1271
        %v1276 = vpack.c.bf16 %v1274, %v1273
        %v1278 = vsel %vm1230, %v1275, 0
        %1280 = vmatprep.subr.bf16.mxu0 0
        %1281 = vmatpush1.bf16.msra.mxu0 0
        %1282 = vmatprep.subr.bf16.mxu0 0
        %1283 = vmatpush1.bf16.msra.mxu0 0
        %1284 = vmatprep.subr.bf16.mxu0 0
        %1285 = vmatpush1.bf16.msra.mxu0 0
        %1286 = vmatprep.subr.bf16.mxu0 0
        %1287 = vmatpush1.bf16.msra.mxu0 0
        %1288 = vmatprep.subr.bf16.mxu0 0
        %1289 = vmatpush1.bf16.msra.mxu0 0
        %1290 = vmatprep.subr.bf16.mxu0 0
        %1291 = vmatpush1.bf16.msra.mxu0 0
        %1292 = vmatprep.subr.bf16.mxu0 0
        %1293 = vmatpush1.bf16.msra.mxu0 0
        %1294 = vmatprep.subr.bf16.mxu0 0
        %1295 = vmatpush1.bf16.msra.mxu0 %v1133
        %1296 = vmatprep.subr.bf16.mxu0 0
        %1297 = vmatpush2.bf16.msra.mxu0 0
        %1298 = vmatprep.subr.bf16.mxu0 0
        %1299 = vmatpush2.bf16.msra.mxu0 0
        %1300 = vmatprep.subr.bf16.mxu0 0
        %1301 = vmatpush2.bf16.msra.mxu0 0
        %1302 = vmatprep.subr.bf16.mxu0 0
        %1303 = vmatpush2.bf16.msra.mxu0 0
        %1304 = vmatprep.subr.bf16.mxu0 0
        %1305 = vmatpush2.bf16.msra.mxu0 0
        %1306 = vmatprep.subr.bf16.mxu0 0
        %1307 = vmatpush2.bf16.msra.mxu0 0
        %1308 = vmatprep.subr.bf16.mxu0 0
        %1309 = vmatpush2.bf16.msra.mxu0 0
        %1310 = vmatprep.subr.bf16.mxu0 0
        %1311 = vmatpush2.bf16.msra.mxu0 0
        %1312 = vmatprep.mubr.bf16.mxu0 0
        %1313 = vmatmul.mubr.bf16.gmra.mxu0 %v1278
        %v1314 = vpop.f32.mrf.mxu0
        %v1315 = vadd.f32 0.0, %v1314
        %v1316 = vpop.f32.mrf.mxu0
        %v1317 = vpop.f32.mrf.mxu0
        %v1318 = vadd.f32 0.0, %v1317
        %v1319 = vpop.f32.mrf.mxu0
        %1320 = vdwg.mxu0
        %v1322 = vsel %vm1230, %v1276, 0
        %1324 = vmatprep.subr.bf16.mxu0 0
        %1325 = vmatpush1.bf16.msra.mxu0 0
        %1326 = vmatprep.subr.bf16.mxu0 0
        %1327 = vmatpush1.bf16.msra.mxu0 0
        %1328 = vmatprep.subr.bf16.mxu0 0
        %1329 = vmatpush1.bf16.msra.mxu0 0
        %1330 = vmatprep.subr.bf16.mxu0 0
        %1331 = vmatpush1.bf16.msra.mxu0 0
        %1332 = vmatprep.subr.bf16.mxu0 0
        %1333 = vmatpush1.bf16.msra.mxu0 0
        %1334 = vmatprep.subr.bf16.mxu0 0
        %1335 = vmatpush1.bf16.msra.mxu0 0
        %1336 = vmatprep.subr.bf16.mxu0 0
        %1337 = vmatpush1.bf16.msra.mxu0 0
        %1338 = vmatprep.subr.bf16.mxu0 0
        %1339 = vmatpush1.bf16.msra.mxu0 %v1134
        %1340 = vmatprep.subr.bf16.mxu0 0
        %1341 = vmatpush2.bf16.msra.mxu0 0
        %1342 = vmatprep.subr.bf16.mxu0 0
        %1343 = vmatpush2.bf16.msra.mxu0 0
        %1344 = vmatprep.subr.bf16.mxu0 0
        %1345 = vmatpush2.bf16.msra.mxu0 0
        %1346 = vmatprep.subr.bf16.mxu0 0
        %1347 = vmatpush2.bf16.msra.mxu0 0
        %1348 = vmatprep.subr.bf16.mxu0 0
        %1349 = vmatpush2.bf16.msra.mxu0 0
        %1350 = vmatprep.subr.bf16.mxu0 0
        %1351 = vmatpush2.bf16.msra.mxu0 0
        %1352 = vmatprep.subr.bf16.mxu0 0
        %1353 = vmatpush2.bf16.msra.mxu0 0
        %1354 = vmatprep.subr.bf16.mxu0 0
        %1355 = vmatpush2.bf16.msra.mxu0 0
        %1356 = vmatprep.mubr.bf16.mxu0 0
        %1357 = vmatmul.mubr.bf16.gmra.mxu0 %v1322
        %v1358 = vpop.f32.mrf.mxu0
        %v1359 = vadd.f32 0.0, %v1358
        %v1360 = vpop.f32.mrf.mxu0
        %v1361 = vpop.f32.mrf.mxu0
        %v1362 = vadd.f32 0.0, %v1361
        %v1363 = vpop.f32.mrf.mxu0
        %1364 = vdwg.mxu0
        %1366 = vrot.lane.b32.xlu0 %v1129, 96
        %v1367 = vpop.permute.xlu0 %1366
        %1369 = vrot.lane.b32.xlu0 %v1131, 96
        %v1370 = vpop.permute.xlu0 %1369
        %v1372 = vsel %vm1135, %v1367, 0
        %v1375 = vsel %vm1135, %v1370, 0
        %1377 = vmatprep.subr.bf16.mxu0 0
        %1378 = vmatpush1.bf16.xpose.msra.mxu0 0
        %1379 = vmatprep.subr.bf16.mxu0 0
        %1380 = vmatpush1.bf16.xpose.msra.mxu0 0
        %1381 = vmatprep.subr.bf16.mxu0 0
        %1382 = vmatpush1.bf16.xpose.msra.mxu0 0
        %1383 = vmatprep.subr.bf16.mxu0 0
        %1384 = vmatpush1.bf16.xpose.msra.mxu0 0
        %1385 = vmatprep.subr.bf16.mxu0 0
        %1386 = vmatpush1.bf16.xpose.msra.mxu0 0
        %1387 = vmatprep.subr.bf16.mxu0 0
        %1388 = vmatpush1.bf16.xpose.msra.mxu0 0
        %1389 = vmatprep.subr.bf16.mxu0 0
        %1390 = vmatpush1.bf16.xpose.msra.mxu0 0
        %1391 = vmatprep.subr.bf16.mxu0 0
        %1392 = vmatpush1.bf16.xpose.msra.mxu0 %v1375
        %1393 = vmatprep.subr.bf16.mxu0 0
        %1394 = vmatpush2.bf16.xpose.msra.mxu0 0
        %1395 = vmatprep.subr.bf16.mxu0 0
        %1396 = vmatpush2.bf16.xpose.msra.mxu0 0
        %1397 = vmatprep.subr.bf16.mxu0 0
        %1398 = vmatpush2.bf16.xpose.msra.mxu0 0
        %1399 = vmatprep.subr.bf16.mxu0 0
        %1400 = vmatpush2.bf16.xpose.msra.mxu0 0
        %1401 = vmatprep.subr.bf16.mxu0 0
        %1402 = vmatpush2.bf16.xpose.msra.mxu0 0
        %1403 = vmatprep.subr.bf16.mxu0 0
        %1404 = vmatpush2.bf16.xpose.msra.mxu0 0
        %1405 = vmatprep.subr.bf16.mxu0 0
        %1406 = vmatpush2.bf16.xpose.msra.mxu0 0
        %1407 = vmatprep.subr.bf16.mxu0 0
        %1408 = vmatpush2.bf16.xpose.msra.mxu0 0
        %1409 = vmatprep.mubr.bf16.mxu0 0
        %1410 = vmatmul.mubr.bf16.gmra.mxu0 %v1372
        %v1411 = vpop.f32.mrf.mxu0
        %v1412 = vadd.f32 0.0, %v1411
        %v1413 = vpop.f32.mrf.mxu0
        %v1414 = vpop.f32.mrf.mxu0
        %v1415 = vadd.f32 0.0, %v1414
        %v1416 = vpop.f32.mrf.mxu0
        %1417 = vdwg.mxu0
        %1419 = vrot.lane.b32.xlu0 %v1130, 96
        %v1420 = vpop.permute.xlu0 %1419
        %1422 = vrot.lane.b32.xlu0 %v1132, 96
        %v1423 = vpop.permute.xlu0 %1422
        %v1425 = vsel %vm1135, %v1420, 0
        %v1428 = vsel %vm1135, %v1423, 0
        %1430 = vmatprep.subr.bf16.mxu0 0
        %1431 = vmatpush1.bf16.xpose.msra.mxu0 0
        %1432 = vmatprep.subr.bf16.mxu0 0
        %1433 = vmatpush1.bf16.xpose.msra.mxu0 0
        %1434 = vmatprep.subr.bf16.mxu0 0
        %1435 = vmatpush1.bf16.xpose.msra.mxu0 0
        %1436 = vmatprep.subr.bf16.mxu0 0
        %1437 = vmatpush1.bf16.xpose.msra.mxu0 0
        %1438 = vmatprep.subr.bf16.mxu0 0
        %1439 = vmatpush1.bf16.xpose.msra.mxu0 0
        %1440 = vmatprep.subr.bf16.mxu0 0
        %1441 = vmatpush1.bf16.xpose.msra.mxu0 0
        %1442 = vmatprep.subr.bf16.mxu0 0
        %1443 = vmatpush1.bf16.xpose.msra.mxu0 0
        %1444 = vmatprep.subr.bf16.mxu0 0
        %1445 = vmatpush1.bf16.xpose.msra.mxu0 %v1428
        %1446 = vmatprep.subr.bf16.mxu0 0
        %1447 = vmatpush2.bf16.xpose.msra.mxu0 0
        %1448 = vmatprep.subr.bf16.mxu0 0
        %1449 = vmatpush2.bf16.xpose.msra.mxu0 0
        %1450 = vmatprep.subr.bf16.mxu0 0
        %1451 = vmatpush2.bf16.xpose.msra.mxu0 0
        %1452 = vmatprep.subr.bf16.mxu0 0
        %1453 = vmatpush2.bf16.xpose.msra.mxu0 0
        %1454 = vmatprep.subr.bf16.mxu0 0
        %1455 = vmatpush2.bf16.xpose.msra.mxu0 0
        %1456 = vmatprep.subr.bf16.mxu0 0
        %1457 = vmatpush2.bf16.xpose.msra.mxu0 0
        %1458 = vmatprep.subr.bf16.mxu0 0
        %1459 = vmatpush2.bf16.xpose.msra.mxu0 0
        %1460 = vmatprep.subr.bf16.mxu0 0
        %1461 = vmatpush2.bf16.xpose.msra.mxu0 0
        %1462 = vmatprep.mubr.bf16.mxu0 0
        %1463 = vmatmul.mubr.bf16.gmra.mxu0 %v1425
        %v1464 = vpop.f32.mrf.mxu0
        %v1465 = vadd.f32 0.0, %v1464
        %v1466 = vpop.f32.mrf.mxu0
        %v1467 = vpop.f32.mrf.mxu0
        %v1468 = vadd.f32 0.0, %v1467
        %v1469 = vpop.f32.mrf.mxu0
        %1470 = vdwg.mxu0
        %v1471 = vsel %vm1230, %v1412, -inf
        %1472 = vmax.xlane.f32.xlu0 %v1471
        %v1473 = vpop.xlane.xlu0 %1472
        %v1474 = vsel %vm1230, %v1415, -inf
        %1475 = vmax.xlane.f32.xlu0 %v1474
        %v1476 = vpop.xlane.xlu0 %1475
        %v1477 = vsel %vm1230, %v1465, -inf
        %1478 = vmax.xlane.f32.xlu0 %v1477
        %v1479 = vpop.xlane.xlu0 %1478
        %v1480 = vsel %vm1230, %v1468, -inf
        %1481 = vmax.xlane.f32.xlu0 %v1480
        %v1482 = vpop.xlane.xlu0 %1481
        %v1483 = vsub.f32 %v1412, %v1473
        %v1484 = vsub.f32 %v1415, %v1476
        %v1485 = vsub.f32 %v1465, %v1479
        %v1486 = vsub.f32 %v1468, %v1482
        %v1487 = vmul.f32 %v1483, 1.442695
        %v1488 = vpow.pop %v1487
        %v1489 = vmul.f32 %v1484, 1.442695
        %v1490 = vpow.pop %v1489
        %v1491 = vmul.f32 %v1485, 1.442695
        %v1492 = vpow.pop %v1491
        %v1493 = vmul.f32 %v1486, 1.442695
        %v1494 = vpow.pop %v1493
        %v1495 = vsel %vm1230, %v1488, 0.0
        %1496 = vadd.xlane.f32.xlu0 %v1495
        %v1497 = vpop.xlane.xlu0 %1496
        %v1498 = vsel %vm1230, %v1490, 0.0
        %1499 = vadd.xlane.f32.xlu0 %v1498
        %v1500 = vpop.xlane.xlu0 %1499
        %v1501 = vsel %vm1230, %v1492, 0.0
        %1502 = vadd.xlane.f32.xlu0 %v1501
        %v1503 = vpop.xlane.xlu0 %1502
        %v1504 = vsel %vm1230, %v1494, 0.0
        %1505 = vadd.xlane.f32.xlu0 %v1504
        %v1506 = vpop.xlane.xlu0 %1505
        %v1507 = vrcp.pop %v1497
        %v1508 = vrcp.pop %v1500
        %v1509 = vrcp.pop %v1503
        %v1510 = vrcp.pop %v1506
        %v1511 = vmul.f32 %v1488, %v1507
        %v1512 = vmul.f32 %v1490, %v1508
        %v1513 = vmul.f32 %v1492, %v1509
        %v1514 = vmul.f32 %v1494, %v1510
        %v1515 = vpack.c.bf16 %v1512, %v1511
        %v1516 = vpack.c.bf16 %v1514, %v1513
        %1518 = vrot.lane.b32.xlu0 %v1133, 96
        %v1519 = vpop.permute.xlu0 %1518
        %v1522 = vsel %vm1230, %v1515, 0
        %1524 = vmatprep.subr.bf16.mxu0 0
        %1525 = vmatpush1.bf16.msra.mxu0 0
        %1526 = vmatprep.subr.bf16.mxu0 0
        %1527 = vmatpush1.bf16.msra.mxu0 0
        %1528 = vmatprep.subr.bf16.mxu0 0
        %1529 = vmatpush1.bf16.msra.mxu0 0
        %1530 = vmatprep.subr.bf16.mxu0 0
        %1531 = vmatpush1.bf16.msra.mxu0 0
        %1532 = vmatprep.subr.bf16.mxu0 0
        %1533 = vmatpush1.bf16.msra.mxu0 0
        %1534 = vmatprep.subr.bf16.mxu0 0
        %1535 = vmatpush1.bf16.msra.mxu0 0
        %1536 = vmatprep.subr.bf16.mxu0 0
        %1537 = vmatpush1.bf16.msra.mxu0 0
        %1538 = vmatprep.subr.bf16.mxu0 0
        %1539 = vmatpush1.bf16.msra.mxu0 %v1519
        %1540 = vmatprep.subr.bf16.mxu0 0
        %1541 = vmatpush2.bf16.msra.mxu0 0
        %1542 = vmatprep.subr.bf16.mxu0 0
        %1543 = vmatpush2.bf16.msra.mxu0 0
        %1544 = vmatprep.subr.bf16.mxu0 0
        %1545 = vmatpush2.bf16.msra.mxu0 0
        %1546 = vmatprep.subr.bf16.mxu0 0
        %1547 = vmatpush2.bf16.msra.mxu0 0
        %1548 = vmatprep.subr.bf16.mxu0 0
        %1549 = vmatpush2.bf16.msra.mxu0 0
        %1550 = vmatprep.subr.bf16.mxu0 0
        %1551 = vmatpush2.bf16.msra.mxu0 0
        %1552 = vmatprep.subr.bf16.mxu0 0
        %1553 = vmatpush2.bf16.msra.mxu0 0
        %1554 = vmatprep.subr.bf16.mxu0 0
        %1555 = vmatpush2.bf16.msra.mxu0 0
        %1556 = vmatprep.mubr.bf16.mxu0 0
        %1557 = vmatmul.mubr.bf16.gmra.mxu0 %v1522
        %v1558 = vpop.f32.mrf.mxu0
        %v1559 = vadd.f32 0.0, %v1558
        %v1560 = vpop.f32.mrf.mxu0
        %v1561 = vpop.f32.mrf.mxu0
        %v1562 = vadd.f32 0.0, %v1561
        %v1563 = vpop.f32.mrf.mxu0
        %1564 = vdwg.mxu0
        %1566 = vrot.lane.b32.xlu0 %v1134, 96
        %v1567 = vpop.permute.xlu0 %1566
        %v1570 = vsel %vm1230, %v1516, 0
        %1572 = vmatprep.subr.bf16.mxu0 0
        %1573 = vmatpush1.bf16.msra.mxu0 0
        %1574 = vmatprep.subr.bf16.mxu0 0
        %1575 = vmatpush1.bf16.msra.mxu0 0
        %1576 = vmatprep.subr.bf16.mxu0 0
        %1577 = vmatpush1.bf16.msra.mxu0 0
        %1578 = vmatprep.subr.bf16.mxu0 0
        %1579 = vmatpush1.bf16.msra.mxu0 0
        %1580 = vmatprep.subr.bf16.mxu0 0
        %1581 = vmatpush1.bf16.msra.mxu0 0
        %1582 = vmatprep.subr.bf16.mxu0 0
        %1583 = vmatpush1.bf16.msra.mxu0 0
        %1584 = vmatprep.subr.bf16.mxu0 0
        %1585 = vmatpush1.bf16.msra.mxu0 0
        %1586 = vmatprep.subr.bf16.mxu0 0
        %1587 = vmatpush1.bf16.msra.mxu0 %v1567
        %1588 = vmatprep.subr.bf16.mxu0 0
        %1589 = vmatpush2.bf16.msra.mxu0 0
        %1590 = vmatprep.subr.bf16.mxu0 0
        %1591 = vmatpush2.bf16.msra.mxu0 0
        %1592 = vmatprep.subr.bf16.mxu0 0
        %1593 = vmatpush2.bf16.msra.mxu0 0
        %1594 = vmatprep.subr.bf16.mxu0 0
        %1595 = vmatpush2.bf16.msra.mxu0 0
        %1596 = vmatprep.subr.bf16.mxu0 0
        %1597 = vmatpush2.bf16.msra.mxu0 0
        %1598 = vmatprep.subr.bf16.mxu0 0
        %1599 = vmatpush2.bf16.msra.mxu0 0
        %1600 = vmatprep.subr.bf16.mxu0 0
        %1601 = vmatpush2.bf16.msra.mxu0 0
        %1602 = vmatprep.subr.bf16.mxu0 0
        %1603 = vmatpush2.bf16.msra.mxu0 0
        %1604 = vmatprep.mubr.bf16.mxu0 0
        %1605 = vmatmul.mubr.bf16.gmra.mxu0 %v1570
        %v1606 = vpop.f32.mrf.mxu0
        %v1607 = vadd.f32 0.0, %v1606
        %v1608 = vpop.f32.mrf.mxu0
        %v1609 = vpop.f32.mrf.mxu0
        %v1610 = vadd.f32 0.0, %v1609
        %v1611 = vpop.f32.mrf.mxu0
        %1612 = vdwg.mxu0
        %1613 = vrot.lane.b32.xlu0 %v1129, 64
        %v1614 = vpop.permute.xlu0 %1613
        %1615 = vrot.lane.b32.xlu0 %v1131, 64
        %v1616 = vpop.permute.xlu0 %1615
        %v1618 = vsel %vm1135, %v1614, 0
        %v1621 = vsel %vm1135, %v1616, 0
        %1623 = vmatprep.subr.bf16.mxu0 0
        %1624 = vmatpush1.bf16.xpose.msra.mxu0 0
        %1625 = vmatprep.subr.bf16.mxu0 0
        %1626 = vmatpush1.bf16.xpose.msra.mxu0 0
        %1627 = vmatprep.subr.bf16.mxu0 0
        %1628 = vmatpush1.bf16.xpose.msra.mxu0 0
        %1629 = vmatprep.subr.bf16.mxu0 0
        %1630 = vmatpush1.bf16.xpose.msra.mxu0 0
        %1631 = vmatprep.subr.bf16.mxu0 0
        %1632 = vmatpush1.bf16.xpose.msra.mxu0 0
        %1633 = vmatprep.subr.bf16.mxu0 0
        %1634 = vmatpush1.bf16.xpose.msra.mxu0 0
        %1635 = vmatprep.subr.bf16.mxu0 0
        %1636 = vmatpush1.bf16.xpose.msra.mxu0 0
        %1637 = vmatprep.subr.bf16.mxu0 0
        %1638 = vmatpush1.bf16.xpose.msra.mxu0 %v1621
        %1639 = vmatprep.subr.bf16.mxu0 0
        %1640 = vmatpush2.bf16.xpose.msra.mxu0 0
        %1641 = vmatprep.subr.bf16.mxu0 0
        %1642 = vmatpush2.bf16.xpose.msra.mxu0 0
        %1643 = vmatprep.subr.bf16.mxu0 0
        %1644 = vmatpush2.bf16.xpose.msra.mxu0 0
        %1645 = vmatprep.subr.bf16.mxu0 0
        %1646 = vmatpush2.bf16.xpose.msra.mxu0 0
        %1647 = vmatprep.subr.bf16.mxu0 0
        %1648 = vmatpush2.bf16.xpose.msra.mxu0 0
        %1649 = vmatprep.subr.bf16.mxu0 0
        %1650 = vmatpush2.bf16.xpose.msra.mxu0 0
        %1651 = vmatprep.subr.bf16.mxu0 0
        %1652 = vmatpush2.bf16.xpose.msra.mxu0 0
        %1653 = vmatprep.subr.bf16.mxu0 0
        %1654 = vmatpush2.bf16.xpose.msra.mxu0 0
        %1655 = vmatprep.mubr.bf16.mxu0 0
        %1656 = vmatmul.mubr.bf16.gmra.mxu0 %v1618
        %v1657 = vpop.f32.mrf.mxu0
        %v1658 = vadd.f32 0.0, %v1657
        %v1659 = vpop.f32.mrf.mxu0
        %v1660 = vpop.f32.mrf.mxu0
        %v1661 = vadd.f32 0.0, %v1660
        %v1662 = vpop.f32.mrf.mxu0
        %1663 = vdwg.mxu0
        %1664 = vrot.lane.b32.xlu0 %v1130, 64
        %v1665 = vpop.permute.xlu0 %1664
        %1666 = vrot.lane.b32.xlu0 %v1132, 64
        %v1667 = vpop.permute.xlu0 %1666
        %v1669 = vsel %vm1135, %v1665, 0
        %v1672 = vsel %vm1135, %v1667, 0
        %1674 = vmatprep.subr.bf16.mxu0 0
        %1675 = vmatpush1.bf16.xpose.msra.mxu0 0
        %1676 = vmatprep.subr.bf16.mxu0 0
        %1677 = vmatpush1.bf16.xpose.msra.mxu0 0
        %1678 = vmatprep.subr.bf16.mxu0 0
        %1679 = vmatpush1.bf16.xpose.msra.mxu0 0
        %1680 = vmatprep.subr.bf16.mxu0 0
        %1681 = vmatpush1.bf16.xpose.msra.mxu0 0
        %1682 = vmatprep.subr.bf16.mxu0 0
        %1683 = vmatpush1.bf16.xpose.msra.mxu0 0
        %1684 = vmatprep.subr.bf16.mxu0 0
        %1685 = vmatpush1.bf16.xpose.msra.mxu0 0
        %1686 = vmatprep.subr.bf16.mxu0 0
        %1687 = vmatpush1.bf16.xpose.msra.mxu0 0
        %1688 = vmatprep.subr.bf16.mxu0 0
        %1689 = vmatpush1.bf16.xpose.msra.mxu0 %v1672
        %1690 = vmatprep.subr.bf16.mxu0 0
        %1691 = vmatpush2.bf16.xpose.msra.mxu0 0
        %1692 = vmatprep.subr.bf16.mxu0 0
        %1693 = vmatpush2.bf16.xpose.msra.mxu0 0
        %1694 = vmatprep.subr.bf16.mxu0 0
        %1695 = vmatpush2.bf16.xpose.msra.mxu0 0
        %1696 = vmatprep.subr.bf16.mxu0 0
        %1697 = vmatpush2.bf16.xpose.msra.mxu0 0
        %1698 = vmatprep.subr.bf16.mxu0 0
        %1699 = vmatpush2.bf16.xpose.msra.mxu0 0
        %1700 = vmatprep.subr.bf16.mxu0 0
        %1701 = vmatpush2.bf16.xpose.msra.mxu0 0
        %1702 = vmatprep.subr.bf16.mxu0 0
        %1703 = vmatpush2.bf16.xpose.msra.mxu0 0
        %1704 = vmatprep.subr.bf16.mxu0 0
        %1705 = vmatpush2.bf16.xpose.msra.mxu0 0
        %1706 = vmatprep.mubr.bf16.mxu0 0
        %1707 = vmatmul.mubr.bf16.gmra.mxu0 %v1669
        %v1708 = vpop.f32.mrf.mxu0
        %v1709 = vadd.f32 0.0, %v1708
        %v1710 = vpop.f32.mrf.mxu0
        %v1711 = vpop.f32.mrf.mxu0
        %v1712 = vadd.f32 0.0, %v1711
        %v1713 = vpop.f32.mrf.mxu0
        %1714 = vdwg.mxu0
        %v1715 = vsel %vm1230, %v1658, -inf
        %1716 = vmax.xlane.f32.xlu0 %v1715
        %v1717 = vpop.xlane.xlu0 %1716
        %v1718 = vsel %vm1230, %v1661, -inf
        %1719 = vmax.xlane.f32.xlu0 %v1718
        %v1720 = vpop.xlane.xlu0 %1719
        %v1721 = vsel %vm1230, %v1709, -inf
        %1722 = vmax.xlane.f32.xlu0 %v1721
        %v1723 = vpop.xlane.xlu0 %1722
        %v1724 = vsel %vm1230, %v1712, -inf
        %1725 = vmax.xlane.f32.xlu0 %v1724
        %v1726 = vpop.xlane.xlu0 %1725
        %v1727 = vsub.f32 %v1658, %v1717
        %v1728 = vsub.f32 %v1661, %v1720
        %v1729 = vsub.f32 %v1709, %v1723
        %v1730 = vsub.f32 %v1712, %v1726
        %v1731 = vmul.f32 %v1727, 1.442695
        %v1732 = vpow.pop %v1731
        %v1733 = vmul.f32 %v1728, 1.442695
        %v1734 = vpow.pop %v1733
        %v1735 = vmul.f32 %v1729, 1.442695
        %v1736 = vpow.pop %v1735
        %v1737 = vmul.f32 %v1730, 1.442695
        %v1738 = vpow.pop %v1737
        %v1739 = vsel %vm1230, %v1732, 0.0
        %1740 = vadd.xlane.f32.xlu0 %v1739
        %v1741 = vpop.xlane.xlu0 %1740
        %v1742 = vsel %vm1230, %v1734, 0.0
        %1743 = vadd.xlane.f32.xlu0 %v1742
        %v1744 = vpop.xlane.xlu0 %1743
        %v1745 = vsel %vm1230, %v1736, 0.0
        %1746 = vadd.xlane.f32.xlu0 %v1745
        %v1747 = vpop.xlane.xlu0 %1746
        %v1748 = vsel %vm1230, %v1738, 0.0
        %1749 = vadd.xlane.f32.xlu0 %v1748
        %v1750 = vpop.xlane.xlu0 %1749
        %v1751 = vrcp.pop %v1741
        %v1752 = vrcp.pop %v1744
        %v1753 = vrcp.pop %v1747
        %v1754 = vrcp.pop %v1750
        %v1755 = vmul.f32 %v1732, %v1751
        %v1756 = vmul.f32 %v1734, %v1752
        %v1757 = vmul.f32 %v1736, %v1753
        %v1758 = vmul.f32 %v1738, %v1754
        %v1759 = vpack.c.bf16 %v1756, %v1755
        %v1760 = vpack.c.bf16 %v1758, %v1757
        %1761 = vrot.lane.b32.xlu0 %v1133, 64
        %v1762 = vpop.permute.xlu0 %1761
        %v1765 = vsel %vm1230, %v1759, 0
        %1767 = vmatprep.subr.bf16.mxu0 0
        %1768 = vmatpush1.bf16.msra.mxu0 0
        %1769 = vmatprep.subr.bf16.mxu0 0
        %1770 = vmatpush1.bf16.msra.mxu0 0
        %1771 = vmatprep.subr.bf16.mxu0 0
        %1772 = vmatpush1.bf16.msra.mxu0 0
        %1773 = vmatprep.subr.bf16.mxu0 0
        %1774 = vmatpush1.bf16.msra.mxu0 0
        %1775 = vmatprep.subr.bf16.mxu0 0
        %1776 = vmatpush1.bf16.msra.mxu0 0
        %1777 = vmatprep.subr.bf16.mxu0 0
        %1778 = vmatpush1.bf16.msra.mxu0 0
        %1779 = vmatprep.subr.bf16.mxu0 0
        %1780 = vmatpush1.bf16.msra.mxu0 0
        %1781 = vmatprep.subr.bf16.mxu0 0
        %1782 = vmatpush1.bf16.msra.mxu0 %v1762
        %1783 = vmatprep.subr.bf16.mxu0 0
        %1784 = vmatpush2.bf16.msra.mxu0 0
        %1785 = vmatprep.subr.bf16.mxu0 0
        %1786 = vmatpush2.bf16.msra.mxu0 0
        %1787 = vmatprep.subr.bf16.mxu0 0
        %1788 = vmatpush2.bf16.msra.mxu0 0
        %1789 = vmatprep.subr.bf16.mxu0 0
        %1790 = vmatpush2.bf16.msra.mxu0 0
        %1791 = vmatprep.subr.bf16.mxu0 0
        %1792 = vmatpush2.bf16.msra.mxu0 0
        %1793 = vmatprep.subr.bf16.mxu0 0
        %1794 = vmatpush2.bf16.msra.mxu0 0
        %1795 = vmatprep.subr.bf16.mxu0 0
        %1796 = vmatpush2.bf16.msra.mxu0 0
        %1797 = vmatprep.subr.bf16.mxu0 0
        %1798 = vmatpush2.bf16.msra.mxu0 0
        %1799 = vmatprep.mubr.bf16.mxu0 0
        %1800 = vmatmul.mubr.bf16.gmra.mxu0 %v1765
        %v1801 = vpop.f32.mrf.mxu0
        %v1802 = vadd.f32 0.0, %v1801
        %v1803 = vpop.f32.mrf.mxu0
        %v1804 = vpop.f32.mrf.mxu0
        %v1805 = vadd.f32 0.0, %v1804
        %v1806 = vpop.f32.mrf.mxu0
        %1807 = vdwg.mxu0
        %1808 = vrot.lane.b32.xlu0 %v1134, 64
        %v1809 = vpop.permute.xlu0 %1808
        %v1812 = vsel %vm1230, %v1760, 0
        %1814 = vmatprep.subr.bf16.mxu0 0
        %1815 = vmatpush1.bf16.msra.mxu0 0
        %1816 = vmatprep.subr.bf16.mxu0 0
        %1817 = vmatpush1.bf16.msra.mxu0 0
        %1818 = vmatprep.subr.bf16.mxu0 0
        %1819 = vmatpush1.bf16.msra.mxu0 0
        %1820 = vmatprep.subr.bf16.mxu0 0
        %1821 = vmatpush1.bf16.msra.mxu0 0
        %1822 = vmatprep.subr.bf16.mxu0 0
        %1823 = vmatpush1.bf16.msra.mxu0 0
        %1824 = vmatprep.subr.bf16.mxu0 0
        %1825 = vmatpush1.bf16.msra.mxu0 0
        %1826 = vmatprep.subr.bf16.mxu0 0
        %1827 = vmatpush1.bf16.msra.mxu0 0
        %1828 = vmatprep.subr.bf16.mxu0 0
        %1829 = vmatpush1.bf16.msra.mxu0 %v1809
        %1830 = vmatprep.subr.bf16.mxu0 0
        %1831 = vmatpush2.bf16.msra.mxu0 0
        %1832 = vmatprep.subr.bf16.mxu0 0
        %1833 = vmatpush2.bf16.msra.mxu0 0
        %1834 = vmatprep.subr.bf16.mxu0 0
        %1835 = vmatpush2.bf16.msra.mxu0 0
        %1836 = vmatprep.subr.bf16.mxu0 0
        %1837 = vmatpush2.bf16.msra.mxu0 0
        %1838 = vmatprep.subr.bf16.mxu0 0
        %1839 = vmatpush2.bf16.msra.mxu0 0
        %1840 = vmatprep.subr.bf16.mxu0 0
        %1841 = vmatpush2.bf16.msra.mxu0 0
        %1842 = vmatprep.subr.bf16.mxu0 0
        %1843 = vmatpush2.bf16.msra.mxu0 0
        %1844 = vmatprep.subr.bf16.mxu0 0
        %1845 = vmatpush2.bf16.msra.mxu0 0
        %1846 = vmatprep.mubr.bf16.mxu0 0
        %1847 = vmatmul.mubr.bf16.gmra.mxu0 %v1812
        %v1848 = vpop.f32.mrf.mxu0
        %v1849 = vadd.f32 0.0, %v1848
        %v1850 = vpop.f32.mrf.mxu0
        %v1851 = vpop.f32.mrf.mxu0
        %v1852 = vadd.f32 0.0, %v1851
        %v1853 = vpop.f32.mrf.mxu0
        %1854 = vdwg.mxu0
        %1855 = vrot.lane.b32.xlu0 %v1129, 32
        %v1856 = vpop.permute.xlu0 %1855
        %1857 = vrot.lane.b32.xlu0 %v1131, 32
        %v1858 = vpop.permute.xlu0 %1857
        %v1860 = vsel %vm1135, %v1856, 0
        %v1863 = vsel %vm1135, %v1858, 0
        %1865 = vmatprep.subr.bf16.mxu0 0
        %1866 = vmatpush1.bf16.xpose.msra.mxu0 0
        %1867 = vmatprep.subr.bf16.mxu0 0
        %1868 = vmatpush1.bf16.xpose.msra.mxu0 0
        %1869 = vmatprep.subr.bf16.mxu0 0
        %1870 = vmatpush1.bf16.xpose.msra.mxu0 0
        %1871 = vmatprep.subr.bf16.mxu0 0
        %1872 = vmatpush1.bf16.xpose.msra.mxu0 0
        %1873 = vmatprep.subr.bf16.mxu0 0
        %1874 = vmatpush1.bf16.xpose.msra.mxu0 0
        %1875 = vmatprep.subr.bf16.mxu0 0
        %1876 = vmatpush1.bf16.xpose.msra.mxu0 0
        %1877 = vmatprep.subr.bf16.mxu0 0
        %1878 = vmatpush1.bf16.xpose.msra.mxu0 0
        %1879 = vmatprep.subr.bf16.mxu0 0
        %1880 = vmatpush1.bf16.xpose.msra.mxu0 %v1863
        %1881 = vmatprep.subr.bf16.mxu0 0
        %1882 = vmatpush2.bf16.xpose.msra.mxu0 0
        %1883 = vmatprep.subr.bf16.mxu0 0
        %1884 = vmatpush2.bf16.xpose.msra.mxu0 0
        %1885 = vmatprep.subr.bf16.mxu0 0
        %1886 = vmatpush2.bf16.xpose.msra.mxu0 0
        %1887 = vmatprep.subr.bf16.mxu0 0
        %1888 = vmatpush2.bf16.xpose.msra.mxu0 0
        %1889 = vmatprep.subr.bf16.mxu0 0
        %1890 = vmatpush2.bf16.xpose.msra.mxu0 0
        %1891 = vmatprep.subr.bf16.mxu0 0
        %1892 = vmatpush2.bf16.xpose.msra.mxu0 0
        %1893 = vmatprep.subr.bf16.mxu0 0
        %1894 = vmatpush2.bf16.xpose.msra.mxu0 0
        %1895 = vmatprep.subr.bf16.mxu0 0
        %1896 = vmatpush2.bf16.xpose.msra.mxu0 0
        %1897 = vmatprep.mubr.bf16.mxu0 0
        %1898 = vmatmul.mubr.bf16.gmra.mxu0 %v1860
        %v1899 = vpop.f32.mrf.mxu0
        %v1900 = vadd.f32 0.0, %v1899
        %v1901 = vpop.f32.mrf.mxu0
        %v1902 = vpop.f32.mrf.mxu0
        %v1903 = vadd.f32 0.0, %v1902
        %v1904 = vpop.f32.mrf.mxu0
        %1905 = vdwg.mxu0
        %1906 = vrot.lane.b32.xlu0 %v1130, 32
        %v1907 = vpop.permute.xlu0 %1906
        %1908 = vrot.lane.b32.xlu0 %v1132, 32
        %v1909 = vpop.permute.xlu0 %1908
        %v1911 = vsel %vm1135, %v1907, 0
        %v1914 = vsel %vm1135, %v1909, 0
        %1916 = vmatprep.subr.bf16.mxu0 0
        %1917 = vmatpush1.bf16.xpose.msra.mxu0 0
        %1918 = vmatprep.subr.bf16.mxu0 0
        %1919 = vmatpush1.bf16.xpose.msra.mxu0 0
        %1920 = vmatprep.subr.bf16.mxu0 0
        %1921 = vmatpush1.bf16.xpose.msra.mxu0 0
        %1922 = vmatprep.subr.bf16.mxu0 0
        %1923 = vmatpush1.bf16.xpose.msra.mxu0 0
        %1924 = vmatprep.subr.bf16.mxu0 0
        %1925 = vmatpush1.bf16.xpose.msra.mxu0 0
        %1926 = vmatprep.subr.bf16.mxu0 0
        %1927 = vmatpush1.bf16.xpose.msra.mxu0 0
        %1928 = vmatprep.subr.bf16.mxu0 0
        %1929 = vmatpush1.bf16.xpose.msra.mxu0 0
        %1930 = vmatprep.subr.bf16.mxu0 0
        %1931 = vmatpush1.bf16.xpose.msra.mxu0 %v1914
        %1932 = vmatprep.subr.bf16.mxu0 0
        %1933 = vmatpush2.bf16.xpose.msra.mxu0 0
        %1934 = vmatprep.subr.bf16.mxu0 0
        %1935 = vmatpush2.bf16.xpose.msra.mxu0 0
        %1936 = vmatprep.subr.bf16.mxu0 0
        %1937 = vmatpush2.bf16.xpose.msra.mxu0 0
        %1938 = vmatprep.subr.bf16.mxu0 0
        %1939 = vmatpush2.bf16.xpose.msra.mxu0 0
        %1940 = vmatprep.subr.bf16.mxu0 0
        %1941 = vmatpush2.bf16.xpose.msra.mxu0 0
        %1942 = vmatprep.subr.bf16.mxu0 0
        %1943 = vmatpush2.bf16.xpose.msra.mxu0 0
        %1944 = vmatprep.subr.bf16.mxu0 0
        %1945 = vmatpush2.bf16.xpose.msra.mxu0 0
        %1946 = vmatprep.subr.bf16.mxu0 0
        %1947 = vmatpush2.bf16.xpose.msra.mxu0 0
        %1948 = vmatprep.mubr.bf16.mxu0 0
        %1949 = vmatmul.mubr.bf16.gmra.mxu0 %v1911
        %v1950 = vpop.f32.mrf.mxu0
        %v1951 = vadd.f32 0.0, %v1950
        %v1952 = vpop.f32.mrf.mxu0
        %v1953 = vpop.f32.mrf.mxu0
        %v1954 = vadd.f32 0.0, %v1953
        %v1955 = vpop.f32.mrf.mxu0
        %1956 = vdwg.mxu0
        %v1957 = vsel %vm1230, %v1900, -inf
        %1958 = vmax.xlane.f32.xlu0 %v1957
        %v1959 = vpop.xlane.xlu0 %1958
        %v1960 = vsel %vm1230, %v1903, -inf
        %1961 = vmax.xlane.f32.xlu0 %v1960
        %v1962 = vpop.xlane.xlu0 %1961
        %v1963 = vsel %vm1230, %v1951, -inf
        %1964 = vmax.xlane.f32.xlu0 %v1963
        %v1965 = vpop.xlane.xlu0 %1964
        %v1966 = vsel %vm1230, %v1954, -inf
        %1967 = vmax.xlane.f32.xlu0 %v1966
        %v1968 = vpop.xlane.xlu0 %1967
        %v1969 = vsub.f32 %v1900, %v1959
        %v1970 = vsub.f32 %v1903, %v1962
        %v1971 = vsub.f32 %v1951, %v1965
        %v1972 = vsub.f32 %v1954, %v1968
        %v1973 = vmul.f32 %v1969, 1.442695
        %v1974 = vpow.pop %v1973
        %v1975 = vmul.f32 %v1970, 1.442695
        %v1976 = vpow.pop %v1975
        %v1977 = vmul.f32 %v1971, 1.442695
        %v1978 = vpow.pop %v1977
        %v1979 = vmul.f32 %v1972, 1.442695
        %v1980 = vpow.pop %v1979
        %v1981 = vsel %vm1230, %v1974, 0.0
        %1982 = vadd.xlane.f32.xlu0 %v1981
        %v1983 = vpop.xlane.xlu0 %1982
        %v1984 = vsel %vm1230, %v1976, 0.0
        %1985 = vadd.xlane.f32.xlu0 %v1984
        %v1986 = vpop.xlane.xlu0 %1985
        %v1987 = vsel %vm1230, %v1978, 0.0
        %1988 = vadd.xlane.f32.xlu0 %v1987
        %v1989 = vpop.xlane.xlu0 %1988
        %v1990 = vsel %vm1230, %v1980, 0.0
        %1991 = vadd.xlane.f32.xlu0 %v1990
        %v1992 = vpop.xlane.xlu0 %1991
        %v1993 = vrcp.pop %v1983
        %v1994 = vrcp.pop %v1986
        %v1995 = vrcp.pop %v1989
        %v1996 = vrcp.pop %v1992
        %v1997 = vmul.f32 %v1974, %v1993
        %v1998 = vmul.f32 %v1976, %v1994
        %v1999 = vmul.f32 %v1978, %v1995
        %v2000 = vmul.f32 %v1980, %v1996
        %v2001 = vpack.c.bf16 %v1998, %v1997
        %v2002 = vpack.c.bf16 %v2000, %v1999
        %2003 = vrot.lane.b32.xlu0 %v1133, 32
        %v2004 = vpop.permute.xlu0 %2003
        %v2007 = vsel %vm1230, %v2001, 0
        %2009 = vmatprep.subr.bf16.mxu0 0
        %2010 = vmatpush1.bf16.msra.mxu0 0
        %2011 = vmatprep.subr.bf16.mxu0 0
        %2012 = vmatpush1.bf16.msra.mxu0 0
        %2013 = vmatprep.subr.bf16.mxu0 0
        %2014 = vmatpush1.bf16.msra.mxu0 0
        %2015 = vmatprep.subr.bf16.mxu0 0
        %2016 = vmatpush1.bf16.msra.mxu0 0
        %2017 = vmatprep.subr.bf16.mxu0 0
        %2018 = vmatpush1.bf16.msra.mxu0 0
        %2019 = vmatprep.subr.bf16.mxu0 0
        %2020 = vmatpush1.bf16.msra.mxu0 0
        %2021 = vmatprep.subr.bf16.mxu0 0
        %2022 = vmatpush1.bf16.msra.mxu0 0
        %2023 = vmatprep.subr.bf16.mxu0 0
        %2024 = vmatpush1.bf16.msra.mxu0 %v2004
        %2025 = vmatprep.subr.bf16.mxu0 0
        %2026 = vmatpush2.bf16.msra.mxu0 0
        %2027 = vmatprep.subr.bf16.mxu0 0
        %2028 = vmatpush2.bf16.msra.mxu0 0
        %2029 = vmatprep.subr.bf16.mxu0 0
        %2030 = vmatpush2.bf16.msra.mxu0 0
        %2031 = vmatprep.subr.bf16.mxu0 0
        %2032 = vmatpush2.bf16.msra.mxu0 0
        %2033 = vmatprep.subr.bf16.mxu0 0
        %2034 = vmatpush2.bf16.msra.mxu0 0
        %2035 = vmatprep.subr.bf16.mxu0 0
        %2036 = vmatpush2.bf16.msra.mxu0 0
        %2037 = vmatprep.subr.bf16.mxu0 0
        %2038 = vmatpush2.bf16.msra.mxu0 0
        %2039 = vmatprep.subr.bf16.mxu0 0
        %2040 = vmatpush2.bf16.msra.mxu0 0
        %2041 = vmatprep.mubr.bf16.mxu0 0
        %2042 = vmatmul.mubr.bf16.gmra.mxu0 %v2007
        %v2043 = vpop.f32.mrf.mxu0
        %v2044 = vadd.f32 0.0, %v2043
        %v2045 = vpop.f32.mrf.mxu0
        %v2046 = vpop.f32.mrf.mxu0
        %v2047 = vadd.f32 0.0, %v2046
        %v2048 = vpop.f32.mrf.mxu0
        %2049 = vdwg.mxu0
        %2050 = vrot.lane.b32.xlu0 %v1134, 32
        %v2051 = vpop.permute.xlu0 %2050
        %v2054 = vsel %vm1230, %v2002, 0
        %2056 = vmatprep.subr.bf16.mxu0 0
        %2057 = vmatpush1.bf16.msra.mxu0 0
        %2058 = vmatprep.subr.bf16.mxu0 0
        %2059 = vmatpush1.bf16.msra.mxu0 0
        %2060 = vmatprep.subr.bf16.mxu0 0
        %2061 = vmatpush1.bf16.msra.mxu0 0
        %2062 = vmatprep.subr.bf16.mxu0 0
        %2063 = vmatpush1.bf16.msra.mxu0 0
        %2064 = vmatprep.subr.bf16.mxu0 0
        %2065 = vmatpush1.bf16.msra.mxu0 0
        %2066 = vmatprep.subr.bf16.mxu0 0
        %2067 = vmatpush1.bf16.msra.mxu0 0
        %2068 = vmatprep.subr.bf16.mxu0 0
        %2069 = vmatpush1.bf16.msra.mxu0 0
        %2070 = vmatprep.subr.bf16.mxu0 0
        %2071 = vmatpush1.bf16.msra.mxu0 %v2051
        %2072 = vmatprep.subr.bf16.mxu0 0
        %2073 = vmatpush2.bf16.msra.mxu0 0
        %2074 = vmatprep.subr.bf16.mxu0 0
        %2075 = vmatpush2.bf16.msra.mxu0 0
        %2076 = vmatprep.subr.bf16.mxu0 0
        %2077 = vmatpush2.bf16.msra.mxu0 0
        %2078 = vmatprep.subr.bf16.mxu0 0
        %2079 = vmatpush2.bf16.msra.mxu0 0
        %2080 = vmatprep.subr.bf16.mxu0 0
        %2081 = vmatpush2.bf16.msra.mxu0 0
        %2082 = vmatprep.subr.bf16.mxu0 0
        %2083 = vmatpush2.bf16.msra.mxu0 0
        %2084 = vmatprep.subr.bf16.mxu0 0
        %2085 = vmatpush2.bf16.msra.mxu0 0
        %2086 = vmatprep.subr.bf16.mxu0 0
        %2087 = vmatpush2.bf16.msra.mxu0 0
        %2088 = vmatprep.mubr.bf16.mxu0 0
        %2089 = vmatmul.mubr.bf16.gmra.mxu0 %v2054
        %v2090 = vpop.f32.mrf.mxu0
        %v2091 = vadd.f32 0.0, %v2090
        %v2092 = vpop.f32.mrf.mxu0
        %v2093 = vpop.f32.mrf.mxu0
        %v2094 = vadd.f32 0.0, %v2093
        %v2095 = vpop.f32.mrf.mxu0
        %2096 = vdwg.mxu0
        %2101 = vrot.lane.b32.xlu0 %v1559, 32
        %v2102 = vpop.permute.xlu0 %2101
        %2103 = vrot.lane.b32.xlu0 %v1562, 32
        %v2104 = vpop.permute.xlu0 %2103
        %2105 = vrot.lane.b32.xlu0 %v1607, 32
        %v2106 = vpop.permute.xlu0 %2105
        %2107 = vrot.lane.b32.xlu0 %v1610, 32
        %v2108 = vpop.permute.xlu0 %2107
        %2117 = vrot.lane.b32.xlu0 %v1802, 64
        %v2118 = vpop.permute.xlu0 %2117
        %2119 = vrot.lane.b32.xlu0 %v1805, 64
        %v2120 = vpop.permute.xlu0 %2119
        %2121 = vrot.lane.b32.xlu0 %v1849, 64
        %v2122 = vpop.permute.xlu0 %2121
        %2123 = vrot.lane.b32.xlu0 %v1852, 64
        %v2124 = vpop.permute.xlu0 %2123
        %2133 = vrot.lane.b32.xlu0 %v2044, 96
        %v2134 = vpop.permute.xlu0 %2133
        %2135 = vrot.lane.b32.xlu0 %v2047, 96
        %v2136 = vpop.permute.xlu0 %2135
        %2137 = vrot.lane.b32.xlu0 %v2091, 96
        %v2138 = vpop.permute.xlu0 %2137
        %2139 = vrot.lane.b32.xlu0 %v2094, 96
        %v2140 = vpop.permute.xlu0 %2139
        %v2145 = vsel %vm1135, %v1315, %v2102
        %v2146 = vsel %vm1135, %v1318, %v2104
        %v2147 = vsel %vm1135, %v1359, %v2106
        %v2148 = vsel %vm1135, %v1362, %v2108
        %vm2149 = vcmask 523264
        %v2150 = vsel %vm2149, %v2145, %v2118
        %v2151 = vsel %vm2149, %v2146, %v2120
        %v2152 = vsel %vm2149, %v2147, %v2122
        %v2153 = vsel %vm2149, %v2148, %v2124
        %vm2154 = vcmask 785408
        %v2155 = vsel %vm2154, %v2150, %v2134
        %v2156 = vsel %vm2154, %v2151, %v2136
        %v2157 = vsel %vm2154, %v2152, %v2138
        %v2158 = vsel %vm2154, %v2153, %v2140
        %v2159 = vpack.c.bf16 %v2156, %v2155
        %v2160 = vpack.c.bf16 %v2158, %v2157
        %v2161 = vld [vmem:[%s646] sm:$0xf]
        %v2162 = vld [vmem:[%s646 + $0x4] sm:$0xf]
        %v2163 = vld [vmem:[%s646 + $0x8] sm:$0xf]
        %v2164 = vld [vmem:[%s646 + $0xc] sm:$0xf]
        %v2165 = vld [vmem:[%s646 + $0x10] sm:$0xf]
        %v2166 = vld [vmem:[%s646 + $0x14] sm:$0xf]
        %v2167 = vld [vmem:[%s646 + $0x18] sm:$0xf]
        %v2168 = vld [vmem:[%s646 + $0x1c] sm:$0xf]
        %v2169 = vld [vmem:[%s646 + $0x20] sm:$0xf]
        %v2170 = vld [vmem:[%s646 + $0x24] sm:$0xf]
        %v2171 = vld [vmem:[%s646 + $0x28] sm:$0xf]
        %v2172 = vld [vmem:[%s646 + $0x2c] sm:$0xf]
        %v2173 = vld [vmem:[%s646 + $0x30] sm:$0xf]
        %v2174 = vld [vmem:[%s646 + $0x34] sm:$0xf]
        %v2175 = vld [vmem:[%s646 + $0x38] sm:$0xf]
        %v2176 = vld [vmem:[%s646 + $0x3c] sm:$0xf]
        %v2193 = vunpack.c.l.b16 %v2161
        %v2194 = vunpack.c.l.b16 %v2162
        %v2195 = vunpack.c.l.b16 %v2163
        %v2196 = vunpack.c.l.b16 %v2164
        %v2197 = vunpack.c.l.b16 %v2165
        %v2198 = vunpack.c.l.b16 %v2166
        %v2199 = vunpack.c.l.b16 %v2167
        %v2200 = vunpack.c.l.b16 %v2168
        %v2201 = vunpack.c.l.b16 %v2169
        %v2202 = vunpack.c.l.b16 %v2170
        %v2203 = vunpack.c.l.b16 %v2171
        %v2204 = vunpack.c.l.b16 %v2172
        %v2205 = vunpack.c.l.b16 %v2173
        %v2206 = vunpack.c.l.b16 %v2174
        %v2207 = vunpack.c.l.b16 %v2175
        %v2208 = vunpack.c.l.b16 %v2176
        %v2209 = vpack.c.b16 %v2194, %v2193
        %v2210 = vpack.c.b16 %v2196, %v2195
        %v2211 = vpack.c.b16 %v2198, %v2197
        %v2212 = vpack.c.b16 %v2200, %v2199
        %v2213 = vpack.c.b16 %v2202, %v2201
        %v2214 = vpack.c.b16 %v2204, %v2203
        %v2215 = vpack.c.b16 %v2206, %v2205
        %v2216 = vpack.c.b16 %v2208, %v2207
        %2225 = vmatprep.subr.bf16.mxu0 0
        %2226 = vmatpush1.bf16.msra.mxu0 %v2216
        %2227 = vmatprep.subr.bf16.mxu0 0
        %2228 = vmatpush1.bf16.msra.mxu0 %v2215
        %2229 = vmatprep.subr.bf16.mxu0 0
        %2230 = vmatpush1.bf16.msra.mxu0 %v2214
        %2231 = vmatprep.subr.bf16.mxu0 0
        %2232 = vmatpush1.bf16.msra.mxu0 %v2213
        %2233 = vmatprep.subr.bf16.mxu0 0
        %2234 = vmatpush1.bf16.msra.mxu0 %v2212
        %2235 = vmatprep.subr.bf16.mxu0 0
        %2236 = vmatpush1.bf16.msra.mxu0 %v2211
        %2237 = vmatprep.subr.bf16.mxu0 0
        %2238 = vmatpush1.bf16.msra.mxu0 %v2210
        %2239 = vmatprep.subr.bf16.mxu0 0
        %2240 = vmatpush1.bf16.msra.mxu0 %v2209
        %2241 = vmatprep.subr.bf16.mxu0 0
        %2242 = vmatpush2.bf16.msra.mxu0 0
        %2243 = vmatprep.subr.bf16.mxu0 0
        %2244 = vmatpush2.bf16.msra.mxu0 0
        %2245 = vmatprep.subr.bf16.mxu0 0
        %2246 = vmatpush2.bf16.msra.mxu0 0
        %2247 = vmatprep.subr.bf16.mxu0 0
        %2248 = vmatpush2.bf16.msra.mxu0 0
        %2249 = vmatprep.subr.bf16.mxu0 0
        %2250 = vmatpush2.bf16.msra.mxu0 0
        %2251 = vmatprep.subr.bf16.mxu0 0
        %2252 = vmatpush2.bf16.msra.mxu0 0
        %2253 = vmatprep.subr.bf16.mxu0 0
        %2254 = vmatpush2.bf16.msra.mxu0 0
        %2255 = vmatprep.subr.bf16.mxu0 0
        %2256 = vmatpush2.bf16.msra.mxu0 0
        %2257 = vmatprep.mubr.bf16.mxu0 0
        %2258 = vmatmul.mubr.bf16.gmra.mxu0 %v2159
        %v2259 = vpop.f32.mrf.mxu0
        %v2260 = vadd.f32 0.0, %v2259
        %v2261 = vpop.f32.mrf.mxu0
        %v2262 = vpop.f32.mrf.mxu0
        %v2263 = vadd.f32 0.0, %v2262
        %v2264 = vpop.f32.mrf.mxu0
        %2265 = vmatprep.mubr.bf16.mxu0 0
        %2266 = vmatmul.mubr.bf16.gmra.mxu0 %v2160
        %v2267 = vpop.f32.mrf.mxu0
        %v2268 = vadd.f32 0.0, %v2267
        %v2269 = vpop.f32.mrf.mxu0
        %v2270 = vpop.f32.mrf.mxu0
        %v2271 = vadd.f32 0.0, %v2270
        %v2272 = vpop.f32.mrf.mxu0
        %2273 = vdwg.mxu0
        %v2274 = vadd.f32 %v794, %v2260
        %v2275 = vadd.f32 %v795, %v2263
        %v2276 = vadd.f32 %v796, %v2268
        %v2277 = vadd.f32 %v797, %v2271
        %v2278 = vld [vmem:[%s760] sm:$0x1]
        %v2280 = vlaneseq
        %v2281 = vshrl.u32 %v2280, 7
        %v2282 = vsub.s32 0, %v2281
        %v2283 = vrot.slane %v2278, %v2282
        %v2285 = vadd.f32 %v2274, %v2283
        %v2286 = vadd.f32 %v2275, %v2283
        %v2287 = vadd.f32 %v2276, %v2283
        %v2288 = vadd.f32 %v2277, %v2283
        %v2289 = vld [vmem:[%s763] sm:$0x1]
        %v2290 = vld [vmem:[%s654] sm:$0x1]
        %2291 = vadd.xlane.f32.xlu0 %v2285
        %v2292 = vpop.xlane.xlu0 %2291
        %2293 = vadd.xlane.f32.xlu0 %v2286
        %v2294 = vpop.xlane.xlu0 %2293
        %2295 = vadd.xlane.f32.xlu0 %v2287
        %v2296 = vpop.xlane.xlu0 %2295
        %2297 = vadd.xlane.f32.xlu0 %v2288
        %v2298 = vpop.xlane.xlu0 %2297
        %v2299 = vmul.f32 %v2292, %v808
        %v2300 = vmul.f32 %v2294, %v808
        %v2301 = vmul.f32 %v2296, %v808
        %v2302 = vmul.f32 %v2298, %v808
        %v2303 = vsub.f32 %v2285, %v2299
        %v2304 = vsub.f32 %v2286, %v2300
        %v2305 = vsub.f32 %v2287, %v2301
        %v2306 = vsub.f32 %v2288, %v2302
        %v2307 = vmul.f32 %v2303, %v2303
        %v2308 = vmul.f32 %v2304, %v2304
        %v2309 = vmul.f32 %v2305, %v2305
        %v2310 = vmul.f32 %v2306, %v2306
        %2311 = vadd.xlane.f32.xlu0 %v2307
        %v2312 = vpop.xlane.xlu0 %2311
        %2313 = vadd.xlane.f32.xlu0 %v2308
        %v2314 = vpop.xlane.xlu0 %2313
        %2315 = vadd.xlane.f32.xlu0 %v2309
        %v2316 = vpop.xlane.xlu0 %2315
        %2317 = vadd.xlane.f32.xlu0 %v2310
        %v2318 = vpop.xlane.xlu0 %2317
        %v2319 = vmul.f32 %v2312, %v808
        %v2320 = vmul.f32 %v2314, %v808
        %v2321 = vmul.f32 %v2316, %v808
        %v2322 = vmul.f32 %v2318, %v808
        %v2323 = vadd.f32 %v2319, 1e-05
        %v2324 = vadd.f32 %v2320, 1e-05
        %v2325 = vadd.f32 %v2321, 1e-05
        %v2326 = vadd.f32 %v2322, 1e-05
        %v2327 = vrsqrt.pop %v2323
        %v2328 = vrsqrt.pop %v2324
        %v2329 = vrsqrt.pop %v2325
        %v2330 = vrsqrt.pop %v2326
        %v2331 = vmul.f32 %v2303, %v2327
        %v2332 = vmul.f32 %v2304, %v2328
        %v2333 = vmul.f32 %v2305, %v2329
        %v2334 = vmul.f32 %v2306, %v2330
        %v2336 = vlaneseq
        %v2337 = vshrl.u32 %v2336, 7
        %v2338 = vsub.s32 0, %v2337
        %v2339 = vrot.slane %v2289, %v2338
        %v2341 = vmul.f32 %v2331, %v2339
        %v2342 = vmul.f32 %v2332, %v2339
        %v2343 = vmul.f32 %v2333, %v2339
        %v2344 = vmul.f32 %v2334, %v2339
        %v2346 = vlaneseq
        %v2347 = vshrl.u32 %v2346, 7
        %v2348 = vsub.s32 0, %v2347
        %v2349 = vrot.slane %v2290, %v2348
        %v2351 = vadd.f32 %v2341, %v2349
        %v2352 = vadd.f32 %v2342, %v2349
        %v2353 = vadd.f32 %v2343, %v2349
        %v2354 = vadd.f32 %v2344, %v2349
        %v2355 = vpack.c.bf16 %v2352, %v2351
        %v2356 = vpack.c.bf16 %v2354, %v2353
        %v2357 = vld [vmem:[%s663] sm:$0xff]
        %v2358 = vld [vmem:[%s663 + $0x8] sm:$0xff]
        %v2359 = vld [vmem:[%s663 + $0x10] sm:$0xff]
        %v2360 = vld [vmem:[%s663 + $0x18] sm:$0xff]
        %v2361 = vld [vmem:[%s663 + $0x20] sm:$0xff]
        %v2362 = vld [vmem:[%s663 + $0x28] sm:$0xff]
        %v2363 = vld [vmem:[%s663 + $0x30] sm:$0xff]
        %v2364 = vld [vmem:[%s663 + $0x38] sm:$0xff]
        %v2365 = vld [vmem:[%s663 + $0x40] sm:$0xff]
        %v2366 = vld [vmem:[%s663 + $0x48] sm:$0xff]
        %v2367 = vld [vmem:[%s663 + $0x50] sm:$0xff]
        %v2368 = vld [vmem:[%s663 + $0x58] sm:$0xff]
        %v2369 = vld [vmem:[%s663 + $0x60] sm:$0xff]
        %v2370 = vld [vmem:[%s663 + $0x68] sm:$0xff]
        %v2371 = vld [vmem:[%s663 + $0x70] sm:$0xff]
        %v2372 = vld [vmem:[%s663 + $0x78] sm:$0xff]
        %v2373 = vld [vmem:[%s663 + $0x80] sm:$0xff]
        %v2374 = vld [vmem:[%s663 + $0x88] sm:$0xff]
        %v2375 = vld [vmem:[%s663 + $0x90] sm:$0xff]
        %v2376 = vld [vmem:[%s663 + $0x98] sm:$0xff]
        %v2377 = vld [vmem:[%s663 + $0xa0] sm:$0xff]
        %v2378 = vld [vmem:[%s663 + $0xa8] sm:$0xff]
        %v2379 = vld [vmem:[%s663 + $0xb0] sm:$0xff]
        %v2380 = vld [vmem:[%s663 + $0xb8] sm:$0xff]
        %v2381 = vld [vmem:[%s663 + $0xc0] sm:$0xff]
        %v2382 = vld [vmem:[%s663 + $0xc8] sm:$0xff]
        %v2383 = vld [vmem:[%s663 + $0xd0] sm:$0xff]
        %v2384 = vld [vmem:[%s663 + $0xd8] sm:$0xff]
        %v2385 = vld [vmem:[%s663 + $0xe0] sm:$0xff]
        %v2386 = vld [vmem:[%s663 + $0xe8] sm:$0xff]
        %v2387 = vld [vmem:[%s663 + $0xf0] sm:$0xff]
        %v2388 = vld [vmem:[%s663 + $0xf8] sm:$0xff]
        %v2389 = vld [vmem:[%s767] sm:$0xf]
        %v2391 = vlaneseq
        %v2392 = vshrl.u32 %v2391, 7
        %v2393 = vsub.s32 0, %v2392
        %v2394 = vrot.slane %v2389, %v2393
        %v2395 = vlaneseq
        %v2396 = vshrl.u32 %v2395, 7
        %v2397 = vsub.s32 1, %v2396
        %v2398 = vrot.slane %v2389, %v2397
        %v2399 = vlaneseq
        %v2400 = vshrl.u32 %v2399, 7
        %v2401 = vsub.s32 2, %v2400
        %v2402 = vrot.slane %v2389, %v2401
        %v2403 = vlaneseq
        %v2404 = vshrl.u32 %v2403, 7
        %v2405 = vsub.s32 3, %v2404
        %v2406 = vrot.slane %v2389, %v2405
        %v2443 = vunpack.c.l.b16 %v2357
        %v2444 = vunpack.c.h.b16 %v2357
        %v2445 = vunpack.c.l.b16 %v2358
        %v2446 = vunpack.c.h.b16 %v2358
        %v2447 = vunpack.c.l.b16 %v2359
        %v2448 = vunpack.c.h.b16 %v2359
        %v2449 = vunpack.c.l.b16 %v2360
        %v2450 = vunpack.c.h.b16 %v2360
        %v2451 = vunpack.c.l.b16 %v2361
        %v2452 = vunpack.c.h.b16 %v2361
        %v2453 = vunpack.c.l.b16 %v2362
        %v2454 = vunpack.c.h.b16 %v2362
        %v2455 = vunpack.c.l.b16 %v2363
        %v2456 = vunpack.c.h.b16 %v2363
        %v2457 = vunpack.c.l.b16 %v2364
        %v2458 = vunpack.c.h.b16 %v2364
        %v2459 = vunpack.c.l.b16 %v2365
        %v2460 = vunpack.c.h.b16 %v2365
        %v2461 = vunpack.c.l.b16 %v2366
        %v2462 = vunpack.c.h.b16 %v2366
        %v2463 = vunpack.c.l.b16 %v2367
        %v2464 = vunpack.c.h.b16 %v2367
        %v2465 = vunpack.c.l.b16 %v2368
        %v2466 = vunpack.c.h.b16 %v2368
        %v2467 = vunpack.c.l.b16 %v2369
        %v2468 = vunpack.c.h.b16 %v2369
        %v2469 = vunpack.c.l.b16 %v2370
        %v2470 = vunpack.c.h.b16 %v2370
        %v2471 = vunpack.c.l.b16 %v2371
        %v2472 = vunpack.c.h.b16 %v2371
        %v2473 = vunpack.c.l.b16 %v2372
        %v2474 = vunpack.c.h.b16 %v2372
        %v2475 = vunpack.c.l.b16 %v2373
        %v2476 = vunpack.c.h.b16 %v2373
        %v2477 = vunpack.c.l.b16 %v2374
        %v2478 = vunpack.c.h.b16 %v2374
        %v2479 = vunpack.c.l.b16 %v2375
        %v2480 = vunpack.c.h.b16 %v2375
        %v2481 = vunpack.c.l.b16 %v2376
        %v2482 = vunpack.c.h.b16 %v2376
        %v2483 = vunpack.c.l.b16 %v2377
        %v2484 = vunpack.c.h.b16 %v2377
        %v2485 = vunpack.c.l.b16 %v2378
        %v2486 = vunpack.c.h.b16 %v2378
        %v2487 = vunpack.c.l.b16 %v2379
        %v2488 = vunpack.c.h.b16 %v2379
        %v2489 = vunpack.c.l.b16 %v2380
        %v2490 = vunpack.c.h.b16 %v2380
        %v2491 = vunpack.c.l.b16 %v2381
        %v2492 = vunpack.c.h.b16 %v2381
        %v2493 = vunpack.c.l.b16 %v2382
        %v2494 = vunpack.c.h.b16 %v2382
        %v2495 = vunpack.c.l.b16 %v2383
        %v2496 = vunpack.c.h.b16 %v2383
        %v2497 = vunpack.c.l.b16 %v2384
        %v2498 = vunpack.c.h.b16 %v2384
        %v2499 = vunpack.c.l.b16 %v2385
        %v2500 = vunpack.c.h.b16 %v2385
        %v2501 = vunpack.c.l.b16 %v2386
        %v2502 = vunpack.c.h.b16 %v2386
        %v2503 = vunpack.c.l.b16 %v2387
        %v2504 = vunpack.c.h.b16 %v2387
        %v2505 = vunpack.c.l.b16 %v2388
        %v2506 = vunpack.c.h.b16 %v2388
        %v2507 = vpack.c.b16 %v2447, %v2443
        %v2508 = vpack.c.b16 %v2448, %v2444
        %v2509 = vpack.c.b16 %v2449, %v2445
        %v2510 = vpack.c.b16 %v2450, %v2446
        %v2511 = vpack.c.b16 %v2455, %v2451
        %v2512 = vpack.c.b16 %v2456, %v2452
        %v2513 = vpack.c.b16 %v2457, %v2453
        %v2514 = vpack.c.b16 %v2458, %v2454
        %v2515 = vpack.c.b16 %v2463, %v2459
        %v2516 = vpack.c.b16 %v2464, %v2460
        %v2517 = vpack.c.b16 %v2465, %v2461
        %v2518 = vpack.c.b16 %v2466, %v2462
        %v2519 = vpack.c.b16 %v2471, %v2467
        %v2520 = vpack.c.b16 %v2472, %v2468
        %v2521 = vpack.c.b16 %v2473, %v2469
        %v2522 = vpack.c.b16 %v2474, %v2470
        %v2523 = vpack.c.b16 %v2479, %v2475
        %v2524 = vpack.c.b16 %v2480, %v2476
        %v2525 = vpack.c.b16 %v2481, %v2477
        %v2526 = vpack.c.b16 %v2482, %v2478
        %v2527 = vpack.c.b16 %v2487, %v2483
        %v2528 = vpack.c.b16 %v2488, %v2484
        %v2529 = vpack.c.b16 %v2489, %v2485
        %v2530 = vpack.c.b16 %v2490, %v2486
        %v2531 = vpack.c.b16 %v2495, %v2491
        %v2532 = vpack.c.b16 %v2496, %v2492
        %v2533 = vpack.c.b16 %v2497, %v2493
        %v2534 = vpack.c.b16 %v2498, %v2494
        %v2535 = vpack.c.b16 %v2503, %v2499
        %v2536 = vpack.c.b16 %v2504, %v2500
        %v2537 = vpack.c.b16 %v2505, %v2501
        %v2538 = vpack.c.b16 %v2506, %v2502
        %2571 = vmatprep.subr.bf16.mxu0 %v2536
        %2572 = vmatpush1.bf16.msra.mxu0 %v2535
        %2573 = vmatprep.subr.bf16.mxu0 %v2532
        %2574 = vmatpush1.bf16.msra.mxu0 %v2531
        %2575 = vmatprep.subr.bf16.mxu0 %v2528
        %2576 = vmatpush1.bf16.msra.mxu0 %v2527
        %2577 = vmatprep.subr.bf16.mxu0 %v2524
        %2578 = vmatpush1.bf16.msra.mxu0 %v2523
        %2579 = vmatprep.subr.bf16.mxu0 %v2520
        %2580 = vmatpush1.bf16.msra.mxu0 %v2519
        %2581 = vmatprep.subr.bf16.mxu0 %v2516
        %2582 = vmatpush1.bf16.msra.mxu0 %v2515
        %2583 = vmatprep.subr.bf16.mxu0 %v2512
        %2584 = vmatpush1.bf16.msra.mxu0 %v2511
        %2585 = vmatprep.subr.bf16.mxu0 %v2508
        %2586 = vmatpush1.bf16.msra.mxu0 %v2507
        %2587 = vmatprep.subr.bf16.mxu0 0
        %2588 = vmatpush2.bf16.msra.mxu0 0
        %2589 = vmatprep.subr.bf16.mxu0 0
        %2590 = vmatpush2.bf16.msra.mxu0 0
        %2591 = vmatprep.subr.bf16.mxu0 0
        %2592 = vmatpush2.bf16.msra.mxu0 0
        %2593 = vmatprep.subr.bf16.mxu0 0
        %2594 = vmatpush2.bf16.msra.mxu0 0
        %2595 = vmatprep.subr.bf16.mxu0 0
        %2596 = vmatpush2.bf16.msra.mxu0 0
        %2597 = vmatprep.subr.bf16.mxu0 0
        %2598 = vmatpush2.bf16.msra.mxu0 0
        %2599 = vmatprep.subr.bf16.mxu0 0
        %2600 = vmatpush2.bf16.msra.mxu0 0
        %2601 = vmatprep.subr.bf16.mxu0 0
        %2602 = vmatpush2.bf16.msra.mxu0 0
        %2603 = vmatprep.mubr.bf16.mxu0 0
        %2604 = vmatmul.mubr.bf16.gmra.mxu0 %v2355
        %v2605 = vpop.f32.mrf.mxu0
        %v2606 = vadd.f32 %v2394, %v2605
        %v2607 = vpop.f32.mrf.mxu0
        %v2608 = vadd.f32 %v2398, %v2607
        %v2609 = vpop.f32.mrf.mxu0
        %v2610 = vadd.f32 %v2394, %v2609
        %v2611 = vpop.f32.mrf.mxu0
        %v2612 = vadd.f32 %v2398, %v2611
        %2613 = vmatprep.mubr.bf16.mxu0 0
        %2614 = vmatmul.mubr.bf16.gmra.mxu0 %v2356
        %v2615 = vpop.f32.mrf.mxu0
        %v2616 = vadd.f32 %v2394, %v2615
        %v2617 = vpop.f32.mrf.mxu0
        %v2618 = vadd.f32 %v2398, %v2617
        %v2619 = vpop.f32.mrf.mxu0
        %v2620 = vadd.f32 %v2394, %v2619
        %v2621 = vpop.f32.mrf.mxu0
        %v2622 = vadd.f32 %v2398, %v2621
        %2623 = vdwg.mxu0
        %2624 = vmatprep.subr.bf16.mxu0 %v2538
        %2625 = vmatpush1.bf16.msra.mxu0 %v2537
        %2626 = vmatprep.subr.bf16.mxu0 %v2534
        %2627 = vmatpush1.bf16.msra.mxu0 %v2533
        %2628 = vmatprep.subr.bf16.mxu0 %v2530
        %2629 = vmatpush1.bf16.msra.mxu0 %v2529
        %2630 = vmatprep.subr.bf16.mxu0 %v2526
        %2631 = vmatpush1.bf16.msra.mxu0 %v2525
        %2632 = vmatprep.subr.bf16.mxu0 %v2522
        %2633 = vmatpush1.bf16.msra.mxu0 %v2521
        %2634 = vmatprep.subr.bf16.mxu0 %v2518
        %2635 = vmatpush1.bf16.msra.mxu0 %v2517
        %2636 = vmatprep.subr.bf16.mxu0 %v2514
        %2637 = vmatpush1.bf16.msra.mxu0 %v2513
        %2638 = vmatprep.subr.bf16.mxu0 %v2510
        %2639 = vmatpush1.bf16.msra.mxu0 %v2509
        %2640 = vmatprep.subr.bf16.mxu0 0
        %2641 = vmatpush2.bf16.msra.mxu0 0
        %2642 = vmatprep.subr.bf16.mxu0 0
        %2643 = vmatpush2.bf16.msra.mxu0 0
        %2644 = vmatprep.subr.bf16.mxu0 0
        %2645 = vmatpush2.bf16.msra.mxu0 0
        %2646 = vmatprep.subr.bf16.mxu0 0
        %2647 = vmatpush2.bf16.msra.mxu0 0
        %2648 = vmatprep.subr.bf16.mxu0 0
        %2649 = vmatpush2.bf16.msra.mxu0 0
        %2650 = vmatprep.subr.bf16.mxu0 0
        %2651 = vmatpush2.bf16.msra.mxu0 0
        %2652 = vmatprep.subr.bf16.mxu0 0
        %2653 = vmatpush2.bf16.msra.mxu0 0
        %2654 = vmatprep.subr.bf16.mxu0 0
        %2655 = vmatpush2.bf16.msra.mxu0 0
        %2656 = vmatprep.mubr.bf16.mxu0 0
        %2657 = vmatmul.mubr.bf16.gmra.mxu0 %v2355
        %v2658 = vpop.f32.mrf.mxu0
        %v2659 = vadd.f32 %v2402, %v2658
        %v2660 = vpop.f32.mrf.mxu0
        %v2661 = vadd.f32 %v2406, %v2660
        %v2662 = vpop.f32.mrf.mxu0
        %v2663 = vadd.f32 %v2402, %v2662
        %v2664 = vpop.f32.mrf.mxu0
        %v2665 = vadd.f32 %v2406, %v2664
        %2666 = vmatprep.mubr.bf16.mxu0 0
        %2667 = vmatmul.mubr.bf16.gmra.mxu0 %v2356
        %v2668 = vpop.f32.mrf.mxu0
        %v2669 = vadd.f32 %v2402, %v2668
        %v2670 = vpop.f32.mrf.mxu0
        %v2671 = vadd.f32 %v2406, %v2670
        %v2672 = vpop.f32.mrf.mxu0
        %v2673 = vadd.f32 %v2402, %v2672
        %v2674 = vpop.f32.mrf.mxu0
        %v2675 = vadd.f32 %v2406, %v2674
        %2676 = vdwg.mxu0
        %v2677 = vmul.f32 %v2606, %v2606
        %v2678 = vmul.f32 %v2608, %v2608
        %v2679 = vmul.f32 %v2659, %v2659
        %v2680 = vmul.f32 %v2661, %v2661
        %v2681 = vmul.f32 %v2610, %v2610
        %v2682 = vmul.f32 %v2612, %v2612
        %v2683 = vmul.f32 %v2663, %v2663
        %v2684 = vmul.f32 %v2665, %v2665
        %v2685 = vmul.f32 %v2616, %v2616
        %v2686 = vmul.f32 %v2618, %v2618
        %v2687 = vmul.f32 %v2669, %v2669
        %v2688 = vmul.f32 %v2671, %v2671
        %v2689 = vmul.f32 %v2620, %v2620
        %v2690 = vmul.f32 %v2622, %v2622
        %v2691 = vmul.f32 %v2673, %v2673
        %v2692 = vmul.f32 %v2675, %v2675
        %v2693 = vmul.f32 %v2606, %v2677
        %v2694 = vmul.f32 %v2608, %v2678
        %v2695 = vmul.f32 %v2659, %v2679
        %v2696 = vmul.f32 %v2661, %v2680
        %v2697 = vmul.f32 %v2610, %v2681
        %v2698 = vmul.f32 %v2612, %v2682
        %v2699 = vmul.f32 %v2663, %v2683
        %v2700 = vmul.f32 %v2665, %v2684
        %v2701 = vmul.f32 %v2616, %v2685
        %v2702 = vmul.f32 %v2618, %v2686
        %v2703 = vmul.f32 %v2669, %v2687
        %v2704 = vmul.f32 %v2671, %v2688
        %v2705 = vmul.f32 %v2620, %v2689
        %v2706 = vmul.f32 %v2622, %v2690
        %v2707 = vmul.f32 %v2673, %v2691
        %v2708 = vmul.f32 %v2675, %v2692
        %v2709 = vmul.f32 %v2693, 0.044715
        %v2710 = vmul.f32 %v2694, 0.044715
        %v2711 = vmul.f32 %v2695, 0.044715
        %v2712 = vmul.f32 %v2696, 0.044715
        %v2713 = vmul.f32 %v2697, 0.044715
        %v2714 = vmul.f32 %v2698, 0.044715
        %v2715 = vmul.f32 %v2699, 0.044715
        %v2716 = vmul.f32 %v2700, 0.044715
        %v2717 = vmul.f32 %v2701, 0.044715
        %v2718 = vmul.f32 %v2702, 0.044715
        %v2719 = vmul.f32 %v2703, 0.044715
        %v2720 = vmul.f32 %v2704, 0.044715
        %v2721 = vmul.f32 %v2705, 0.044715
        %v2722 = vmul.f32 %v2706, 0.044715
        %v2723 = vmul.f32 %v2707, 0.044715
        %v2724 = vmul.f32 %v2708, 0.044715
        %v2725 = vadd.f32 %v2606, %v2709
        %v2726 = vadd.f32 %v2608, %v2710
        %v2727 = vadd.f32 %v2659, %v2711
        %v2728 = vadd.f32 %v2661, %v2712
        %v2729 = vadd.f32 %v2610, %v2713
        %v2730 = vadd.f32 %v2612, %v2714
        %v2731 = vadd.f32 %v2663, %v2715
        %v2732 = vadd.f32 %v2665, %v2716
        %v2733 = vadd.f32 %v2616, %v2717
        %v2734 = vadd.f32 %v2618, %v2718
        %v2735 = vadd.f32 %v2669, %v2719
        %v2736 = vadd.f32 %v2671, %v2720
        %v2737 = vadd.f32 %v2620, %v2721
        %v2738 = vadd.f32 %v2622, %v2722
        %v2739 = vadd.f32 %v2673, %v2723
        %v2740 = vadd.f32 %v2675, %v2724
        %v2741 = vmul.f32 %v2725, 0.7978846
        %v2742 = vmul.f32 %v2726, 0.7978846
        %v2743 = vmul.f32 %v2727, 0.7978846
        %v2744 = vmul.f32 %v2728, 0.7978846
        %v2745 = vmul.f32 %v2729, 0.7978846
        %v2746 = vmul.f32 %v2730, 0.7978846
        %v2747 = vmul.f32 %v2731, 0.7978846
        %v2748 = vmul.f32 %v2732, 0.7978846
        %v2749 = vmul.f32 %v2733, 0.7978846
        %v2750 = vmul.f32 %v2734, 0.7978846
        %v2751 = vmul.f32 %v2735, 0.7978846
        %v2752 = vmul.f32 %v2736, 0.7978846
        %v2753 = vmul.f32 %v2737, 0.7978846
        %v2754 = vmul.f32 %v2738, 0.7978846
        %v2755 = vmul.f32 %v2739, 0.7978846
        %v2756 = vmul.f32 %v2740, 0.7978846
        %v2757 = vtanh.pop %v2741
        %v2758 = vtanh.pop %v2742
        %v2759 = vtanh.pop %v2743
        %v2760 = vtanh.pop %v2744
        %v2761 = vtanh.pop %v2745
        %v2762 = vtanh.pop %v2746
        %v2763 = vtanh.pop %v2747
        %v2764 = vtanh.pop %v2748
        %v2765 = vtanh.pop %v2749
        %v2766 = vtanh.pop %v2750
        %v2767 = vtanh.pop %v2751
        %v2768 = vtanh.pop %v2752
        %v2769 = vtanh.pop %v2753
        %v2770 = vtanh.pop %v2754
        %v2771 = vtanh.pop %v2755
        %v2772 = vtanh.pop %v2756
        %v2773 = vadd.f32 %v2757, 1.0
        %v2774 = vadd.f32 %v2758, 1.0
        %v2775 = vadd.f32 %v2759, 1.0
        %v2776 = vadd.f32 %v2760, 1.0
        %v2777 = vadd.f32 %v2761, 1.0
        %v2778 = vadd.f32 %v2762, 1.0
        %v2779 = vadd.f32 %v2763, 1.0
        %v2780 = vadd.f32 %v2764, 1.0
        %v2781 = vadd.f32 %v2765, 1.0
        %v2782 = vadd.f32 %v2766, 1.0
        %v2783 = vadd.f32 %v2767, 1.0
        %v2784 = vadd.f32 %v2768, 1.0
        %v2785 = vadd.f32 %v2769, 1.0
        %v2786 = vadd.f32 %v2770, 1.0
        %v2787 = vadd.f32 %v2771, 1.0
        %v2788 = vadd.f32 %v2772, 1.0
        %v2789 = vmul.f32 %v2773, 0.5
        %v2790 = vmul.f32 %v2774, 0.5
        %v2791 = vmul.f32 %v2775, 0.5
        %v2792 = vmul.f32 %v2776, 0.5
        %v2793 = vmul.f32 %v2777, 0.5
        %v2794 = vmul.f32 %v2778, 0.5
        %v2795 = vmul.f32 %v2779, 0.5
        %v2796 = vmul.f32 %v2780, 0.5
        %v2797 = vmul.f32 %v2781, 0.5
        %v2798 = vmul.f32 %v2782, 0.5
        %v2799 = vmul.f32 %v2783, 0.5
        %v2800 = vmul.f32 %v2784, 0.5
        %v2801 = vmul.f32 %v2785, 0.5
        %v2802 = vmul.f32 %v2786, 0.5
        %v2803 = vmul.f32 %v2787, 0.5
        %v2804 = vmul.f32 %v2788, 0.5
        %v2805 = vmul.f32 %v2606, %v2789
        %v2806 = vmul.f32 %v2608, %v2790
        %v2807 = vmul.f32 %v2659, %v2791
        %v2808 = vmul.f32 %v2661, %v2792
        %v2809 = vmul.f32 %v2610, %v2793
        %v2810 = vmul.f32 %v2612, %v2794
        %v2811 = vmul.f32 %v2663, %v2795
        %v2812 = vmul.f32 %v2665, %v2796
        %v2813 = vmul.f32 %v2616, %v2797
        %v2814 = vmul.f32 %v2618, %v2798
        %v2815 = vmul.f32 %v2669, %v2799
        %v2816 = vmul.f32 %v2671, %v2800
        %v2817 = vmul.f32 %v2620, %v2801
        %v2818 = vmul.f32 %v2622, %v2802
        %v2819 = vmul.f32 %v2673, %v2803
        %v2820 = vmul.f32 %v2675, %v2804
        %v2821 = vpack.c.bf16 %v2809, %v2805
        %v2822 = vpack.c.bf16 %v2810, %v2806
        %v2823 = vpack.c.bf16 %v2811, %v2807
        %v2824 = vpack.c.bf16 %v2812, %v2808
        %v2825 = vpack.c.bf16 %v2817, %v2813
        %v2826 = vpack.c.bf16 %v2818, %v2814
        %v2827 = vpack.c.bf16 %v2819, %v2815
        %v2828 = vpack.c.bf16 %v2820, %v2816
        %v2829 = vld [vmem:[%s672] sm:$0xf]
        %v2830 = vld [vmem:[%s672 + $0x4] sm:$0xf]
        %v2831 = vld [vmem:[%s672 + $0x8] sm:$0xf]
        %v2832 = vld [vmem:[%s672 + $0xc] sm:$0xf]
        %v2833 = vld [vmem:[%s672 + $0x10] sm:$0xf]
        %v2834 = vld [vmem:[%s672 + $0x14] sm:$0xf]
        %v2835 = vld [vmem:[%s672 + $0x18] sm:$0xf]
        %v2836 = vld [vmem:[%s672 + $0x1c] sm:$0xf]
        %v2837 = vld [vmem:[%s672 + $0x20] sm:$0xf]
        %v2838 = vld [vmem:[%s672 + $0x24] sm:$0xf]
        %v2839 = vld [vmem:[%s672 + $0x28] sm:$0xf]
        %v2840 = vld [vmem:[%s672 + $0x2c] sm:$0xf]
        %v2841 = vld [vmem:[%s672 + $0x30] sm:$0xf]
        %v2842 = vld [vmem:[%s672 + $0x34] sm:$0xf]
        %v2843 = vld [vmem:[%s672 + $0x38] sm:$0xf]
        %v2844 = vld [vmem:[%s672 + $0x3c] sm:$0xf]
        %v2845 = vld [vmem:[%s672 + $0x40] sm:$0xf]
        %v2846 = vld [vmem:[%s672 + $0x44] sm:$0xf]
        %v2847 = vld [vmem:[%s672 + $0x48] sm:$0xf]
        %v2848 = vld [vmem:[%s672 + $0x4c] sm:$0xf]
        %v2849 = vld [vmem:[%s672 + $0x50] sm:$0xf]
        %v2850 = vld [vmem:[%s672 + $0x54] sm:$0xf]
        %v2851 = vld [vmem:[%s672 + $0x58] sm:$0xf]
        %v2852 = vld [vmem:[%s672 + $0x5c] sm:$0xf]
        %v2853 = vld [vmem:[%s672 + $0x60] sm:$0xf]
        %v2854 = vld [vmem:[%s672 + $0x64] sm:$0xf]
        %v2855 = vld [vmem:[%s672 + $0x68] sm:$0xf]
        %v2856 = vld [vmem:[%s672 + $0x6c] sm:$0xf]
        %v2857 = vld [vmem:[%s672 + $0x70] sm:$0xf]
        %v2858 = vld [vmem:[%s672 + $0x74] sm:$0xf]
        %v2859 = vld [vmem:[%s672 + $0x78] sm:$0xf]
        %v2860 = vld [vmem:[%s672 + $0x7c] sm:$0xf]
        %v2861 = vld [vmem:[%s672 + $0x80] sm:$0xf]
        %v2862 = vld [vmem:[%s672 + $0x84] sm:$0xf]
        %v2863 = vld [vmem:[%s672 + $0x88] sm:$0xf]
        %v2864 = vld [vmem:[%s672 + $0x8c] sm:$0xf]
        %v2865 = vld [vmem:[%s672 + $0x90] sm:$0xf]
        %v2866 = vld [vmem:[%s672 + $0x94] sm:$0xf]
        %v2867 = vld [vmem:[%s672 + $0x98] sm:$0xf]
        %v2868 = vld [vmem:[%s672 + $0x9c] sm:$0xf]
        %v2869 = vld [vmem:[%s672 + $0xa0] sm:$0xf]
        %v2870 = vld [vmem:[%s672 + $0xa4] sm:$0xf]
        %v2871 = vld [vmem:[%s672 + $0xa8] sm:$0xf]
        %v2872 = vld [vmem:[%s672 + $0xac] sm:$0xf]
        %v2873 = vld [vmem:[%s672 + $0xb0] sm:$0xf]
        %v2874 = vld [vmem:[%s672 + $0xb4] sm:$0xf]
        %v2875 = vld [vmem:[%s672 + $0xb8] sm:$0xf]
        %v2876 = vld [vmem:[%s672 + $0xbc] sm:$0xf]
        %v2877 = vld [vmem:[%s672 + $0xc0] sm:$0xf]
        %v2878 = vld [vmem:[%s672 + $0xc4] sm:$0xf]
        %v2879 = vld [vmem:[%s672 + $0xc8] sm:$0xf]
        %v2880 = vld [vmem:[%s672 + $0xcc] sm:$0xf]
        %v2881 = vld [vmem:[%s672 + $0xd0] sm:$0xf]
        %v2882 = vld [vmem:[%s672 + $0xd4] sm:$0xf]
        %v2883 = vld [vmem:[%s672 + $0xd8] sm:$0xf]
        %v2884 = vld [vmem:[%s672 + $0xdc] sm:$0xf]
        %v2885 = vld [vmem:[%s672 + $0xe0] sm:$0xf]
        %v2886 = vld [vmem:[%s672 + $0xe4] sm:$0xf]
        %v2887 = vld [vmem:[%s672 + $0xe8] sm:$0xf]
        %v2888 = vld [vmem:[%s672 + $0xec] sm:$0xf]
        %v2889 = vld [vmem:[%s672 + $0xf0] sm:$0xf]
        %v2890 = vld [vmem:[%s672 + $0xf4] sm:$0xf]
        %v2891 = vld [vmem:[%s672 + $0xf8] sm:$0xf]
        %v2892 = vld [vmem:[%s672 + $0xfc] sm:$0xf]
        %v2893 = vld [vmem:[%s770] sm:$0x1]
        %v2895 = vlaneseq
        %v2896 = vshrl.u32 %v2895, 7
        %v2897 = vsub.s32 0, %v2896
        %v2898 = vrot.slane %v2893, %v2897
        %v2964 = vunpack.c.l.b16 %v2829
        %v2965 = vunpack.c.l.b16 %v2830
        %v2966 = vunpack.c.l.b16 %v2831
        %v2967 = vunpack.c.l.b16 %v2832
        %v2968 = vunpack.c.l.b16 %v2833
        %v2969 = vunpack.c.l.b16 %v2834
        %v2970 = vunpack.c.l.b16 %v2835
        %v2971 = vunpack.c.l.b16 %v2836
        %v2972 = vunpack.c.l.b16 %v2837
        %v2973 = vunpack.c.l.b16 %v2838
        %v2974 = vunpack.c.l.b16 %v2839
        %v2975 = vunpack.c.l.b16 %v2840
        %v2976 = vunpack.c.l.b16 %v2841
        %v2977 = vunpack.c.l.b16 %v2842
        %v2978 = vunpack.c.l.b16 %v2843
        %v2979 = vunpack.c.l.b16 %v2844
        %v2980 = vunpack.c.l.b16 %v2845
        %v2981 = vunpack.c.l.b16 %v2846
        %v2982 = vunpack.c.l.b16 %v2847
        %v2983 = vunpack.c.l.b16 %v2848
        %v2984 = vunpack.c.l.b16 %v2849
        %v2985 = vunpack.c.l.b16 %v2850
        %v2986 = vunpack.c.l.b16 %v2851
        %v2987 = vunpack.c.l.b16 %v2852
        %v2988 = vunpack.c.l.b16 %v2853
        %v2989 = vunpack.c.l.b16 %v2854
        %v2990 = vunpack.c.l.b16 %v2855
        %v2991 = vunpack.c.l.b16 %v2856
        %v2992 = vunpack.c.l.b16 %v2857
        %v2993 = vunpack.c.l.b16 %v2858
        %v2994 = vunpack.c.l.b16 %v2859
        %v2995 = vunpack.c.l.b16 %v2860
        %v2996 = vunpack.c.l.b16 %v2861
        %v2997 = vunpack.c.l.b16 %v2862
        %v2998 = vunpack.c.l.b16 %v2863
        %v2999 = vunpack.c.l.b16 %v2864
        %v3000 = vunpack.c.l.b16 %v2865
        %v3001 = vunpack.c.l.b16 %v2866
        %v3002 = vunpack.c.l.b16 %v2867
        %v3003 = vunpack.c.l.b16 %v2868
        %v3004 = vunpack.c.l.b16 %v2869
        %v3005 = vunpack.c.l.b16 %v2870
        %v3006 = vunpack.c.l.b16 %v2871
        %v3007 = vunpack.c.l.b16 %v2872
        %v3008 = vunpack.c.l.b16 %v2873
        %v3009 = vunpack.c.l.b16 %v2874
        %v3010 = vunpack.c.l.b16 %v2875
        %v3011 = vunpack.c.l.b16 %v2876
        %v3012 = vunpack.c.l.b16 %v2877
        %v3013 = vunpack.c.l.b16 %v2878
        %v3014 = vunpack.c.l.b16 %v2879
        %v3015 = vunpack.c.l.b16 %v2880
        %v3016 = vunpack.c.l.b16 %v2881
        %v3017 = vunpack.c.l.b16 %v2882
        %v3018 = vunpack.c.l.b16 %v2883
        %v3019 = vunpack.c.l.b16 %v2884
        %v3020 = vunpack.c.l.b16 %v2885
        %v3021 = vunpack.c.l.b16 %v2886
        %v3022 = vunpack.c.l.b16 %v2887
        %v3023 = vunpack.c.l.b16 %v2888
        %v3024 = vunpack.c.l.b16 %v2889
        %v3025 = vunpack.c.l.b16 %v2890
        %v3026 = vunpack.c.l.b16 %v2891
        %v3027 = vunpack.c.l.b16 %v2892
        %v3028 = vpack.c.b16 %v2965, %v2964
        %v3029 = vpack.c.b16 %v2967, %v2966
        %v3030 = vpack.c.b16 %v2969, %v2968
        %v3031 = vpack.c.b16 %v2971, %v2970
        %v3032 = vpack.c.b16 %v2973, %v2972
        %v3033 = vpack.c.b16 %v2975, %v2974
        %v3034 = vpack.c.b16 %v2977, %v2976
        %v3035 = vpack.c.b16 %v2979, %v2978
        %v3036 = vpack.c.b16 %v2981, %v2980
        %v3037 = vpack.c.b16 %v2983, %v2982
        %v3038 = vpack.c.b16 %v2985, %v2984
        %v3039 = vpack.c.b16 %v2987, %v2986
        %v3040 = vpack.c.b16 %v2989, %v2988
        %v3041 = vpack.c.b16 %v2991, %v2990
        %v3042 = vpack.c.b16 %v2993, %v2992
        %v3043 = vpack.c.b16 %v2995, %v2994
        %v3044 = vpack.c.b16 %v2997, %v2996
        %v3045 = vpack.c.b16 %v2999, %v2998
        %v3046 = vpack.c.b16 %v3001, %v3000
        %v3047 = vpack.c.b16 %v3003, %v3002
        %v3048 = vpack.c.b16 %v3005, %v3004
        %v3049 = vpack.c.b16 %v3007, %v3006
        %v3050 = vpack.c.b16 %v3009, %v3008
        %v3051 = vpack.c.b16 %v3011, %v3010
        %v3052 = vpack.c.b16 %v3013, %v3012
        %v3053 = vpack.c.b16 %v3015, %v3014
        %v3054 = vpack.c.b16 %v3017, %v3016
        %v3055 = vpack.c.b16 %v3019, %v3018
        %v3056 = vpack.c.b16 %v3021, %v3020
        %v3057 = vpack.c.b16 %v3023, %v3022
        %v3058 = vpack.c.b16 %v3025, %v3024
        %v3059 = vpack.c.b16 %v3027, %v3026
        %3092 = vmatprep.subr.bf16.mxu0 0
        %3093 = vmatpush1.bf16.msra.mxu0 %v3035
        %3094 = vmatprep.subr.bf16.mxu0 0
        %3095 = vmatpush1.bf16.msra.mxu0 %v3034
        %3096 = vmatprep.subr.bf16.mxu0 0
        %3097 = vmatpush1.bf16.msra.mxu0 %v3033
        %3098 = vmatprep.subr.bf16.mxu0 0
        %3099 = vmatpush1.bf16.msra.mxu0 %v3032
        %3100 = vmatprep.subr.bf16.mxu0 0
        %3101 = vmatpush1.bf16.msra.mxu0 %v3031
        %3102 = vmatprep.subr.bf16.mxu0 0
        %3103 = vmatpush1.bf16.msra.mxu0 %v3030
        %3104 = vmatprep.subr.bf16.mxu0 0
        %3105 = vmatpush1.bf16.msra.mxu0 %v3029
        %3106 = vmatprep.subr.bf16.mxu0 0
        %3107 = vmatpush1.bf16.msra.mxu0 %v3028
        %3108 = vmatprep.subr.bf16.mxu0 0
        %3109 = vmatpush2.bf16.msra.mxu0 %v3043
        %3110 = vmatprep.subr.bf16.mxu0 0
        %3111 = vmatpush2.bf16.msra.mxu0 %v3042
        %3112 = vmatprep.subr.bf16.mxu0 0
        %3113 = vmatpush2.bf16.msra.mxu0 %v3041
        %3114 = vmatprep.subr.bf16.mxu0 0
        %3115 = vmatpush2.bf16.msra.mxu0 %v3040
        %3116 = vmatprep.subr.bf16.mxu0 0
        %3117 = vmatpush2.bf16.msra.mxu0 %v3039
        %3118 = vmatprep.subr.bf16.mxu0 0
        %3119 = vmatpush2.bf16.msra.mxu0 %v3038
        %3120 = vmatprep.subr.bf16.mxu0 0
        %3121 = vmatpush2.bf16.msra.mxu0 %v3037
        %3122 = vmatprep.subr.bf16.mxu0 0
        %3123 = vmatpush2.bf16.msra.mxu0 %v3036
        %3124 = vmatprep.mubr.bf16.mxu0 %v2822
        %3125 = vmatmul.mubr.bf16.gmra.mxu0 %v2821
        %v3126 = vpop.f32.mrf.mxu0
        %v3127 = vadd.f32 %v2898, %v3126
        %v3128 = vpop.f32.mrf.mxu0
        %v3129 = vpop.f32.mrf.mxu0
        %v3130 = vadd.f32 %v2898, %v3129
        %v3131 = vpop.f32.mrf.mxu0
        %3132 = vmatprep.mubr.bf16.mxu0 %v2826
        %3133 = vmatmul.mubr.bf16.gmra.mxu0 %v2825
        %v3134 = vpop.f32.mrf.mxu0
        %v3135 = vadd.f32 %v2898, %v3134
        %v3136 = vpop.f32.mrf.mxu0
        %v3137 = vpop.f32.mrf.mxu0
        %v3138 = vadd.f32 %v2898, %v3137
        %v3139 = vpop.f32.mrf.mxu0
        %3140 = vdwg.mxu0
        %3141 = vmatprep.subr.bf16.mxu0 0
        %3142 = vmatpush1.bf16.msra.mxu0 %v3051
        %3143 = vmatprep.subr.bf16.mxu0 0
        %3144 = vmatpush1.bf16.msra.mxu0 %v3050
        %3145 = vmatprep.subr.bf16.mxu0 0
        %3146 = vmatpush1.bf16.msra.mxu0 %v3049
        %3147 = vmatprep.subr.bf16.mxu0 0
        %3148 = vmatpush1.bf16.msra.mxu0 %v3048
        %3149 = vmatprep.subr.bf16.mxu0 0
        %3150 = vmatpush1.bf16.msra.mxu0 %v3047
        %3151 = vmatprep.subr.bf16.mxu0 0
        %3152 = vmatpush1.bf16.msra.mxu0 %v3046
        %3153 = vmatprep.subr.bf16.mxu0 0
        %3154 = vmatpush1.bf16.msra.mxu0 %v3045
        %3155 = vmatprep.subr.bf16.mxu0 0
        %3156 = vmatpush1.bf16.msra.mxu0 %v3044
        %3157 = vmatprep.subr.bf16.mxu0 0
        %3158 = vmatpush2.bf16.msra.mxu0 %v3059
        %3159 = vmatprep.subr.bf16.mxu0 0
        %3160 = vmatpush2.bf16.msra.mxu0 %v3058
        %3161 = vmatprep.subr.bf16.mxu0 0
        %3162 = vmatpush2.bf16.msra.mxu0 %v3057
        %3163 = vmatprep.subr.bf16.mxu0 0
        %3164 = vmatpush2.bf16.msra.mxu0 %v3056
        %3165 = vmatprep.subr.bf16.mxu0 0
        %3166 = vmatpush2.bf16.msra.mxu0 %v3055
        %3167 = vmatprep.subr.bf16.mxu0 0
        %3168 = vmatpush2.bf16.msra.mxu0 %v3054
        %3169 = vmatprep.subr.bf16.mxu0 0
        %3170 = vmatpush2.bf16.msra.mxu0 %v3053
        %3171 = vmatprep.subr.bf16.mxu0 0
        %3172 = vmatpush2.bf16.msra.mxu0 %v3052
        %3173 = vmatprep.mubr.bf16.mxu0 %v2824
        %3174 = vmatmul.mubr.bf16.gmra.mxu0 %v2823
        %v3175 = vpop.f32.mrf.mxu0
        %v3176 = vadd.f32 %v3127, %v3175
        %v3177 = vpop.f32.mrf.mxu0
        %v3178 = vpop.f32.mrf.mxu0
        %v3179 = vadd.f32 %v3130, %v3178
        %v3180 = vpop.f32.mrf.mxu0
        %3181 = vmatprep.mubr.bf16.mxu0 %v2828
        %3182 = vmatmul.mubr.bf16.gmra.mxu0 %v2827
        %v3183 = vpop.f32.mrf.mxu0
        %v3184 = vadd.f32 %v3135, %v3183
        %v3185 = vpop.f32.mrf.mxu0
        %v3186 = vpop.f32.mrf.mxu0
        %v3187 = vadd.f32 %v3138, %v3186
        %v3188 = vpop.f32.mrf.mxu0
        %3189 = vdwg.mxu0
        %v3190 = vadd.f32 %v2285, %v3176
        %v3191 = vadd.f32 %v2286, %v3179
        %v3192 = vadd.f32 %v2287, %v3184
        %v3193 = vadd.f32 %v2288, %v3187
        %3194 = vst [vmem:[#allocation2] sm:$0xff] %v3190
        %3195 = vst [vmem:[#allocation2 + $0x8] sm:$0xff] %v3191
        %3196 = vst [vmem:[#allocation2 + $0x10] sm:$0xff] %v3192
        %3197 = vst [vmem:[#allocation2 + $0x18] sm:$0xff] %v3193
        %p3198 = scmp.eq.s32.totalorder %s35, 1
        // Predicated region
        $region105: #{tpu_custom_call.1} parent=71 // pred_check
          %p3199 = pneg %p3198
        $region106: #{tpu_custom_call.1} parent=71 // pred_check_branch
          %3201 = sbr.rel (%p3199) target = $region108
        $region107: #{tpu_custom_call.1} parent=71 // pred_region
          %3202 = vst [vmem:[#allocation13] sm:$0xff] %v3190
          %3203 = vst [vmem:[#allocation13 + $0x8] sm:$0xff] %v3191
          %3204 = vst [vmem:[#allocation13 + $0x10] sm:$0xff] %v3192
          %3205 = vst [vmem:[#allocation13 + $0x18] sm:$0xff] %v3193
          %3206 = vst.msk [vmem:[#allocation14] sm:$0xff] %vm1230, %v1271
          %3207 = vst.msk [vmem:[#allocation14 + $0x8] sm:$0xff] %vm1230, %v1272
          %3208 = vst.msk [vmem:[#allocation14 + $0x10] sm:$0xff] %vm1230, %v1511
          %3209 = vst.msk [vmem:[#allocation14 + $0x18] sm:$0xff] %vm1230, %v1512
          %3210 = vst.msk [vmem:[#allocation14 + $0x20] sm:$0xff] %vm1230, %v1755
          %3211 = vst.msk [vmem:[#allocation14 + $0x28] sm:$0xff] %vm1230, %v1756
          %3212 = vst.msk [vmem:[#allocation14 + $0x30] sm:$0xff] %vm1230, %v1997
          %3213 = vst.msk [vmem:[#allocation14 + $0x38] sm:$0xff] %vm1230, %v1998
          %3214 = vst.msk [vmem:[#allocation14 + $0x40] sm:$0xff] %vm1230, %v1273
          %3215 = vst.msk [vmem:[#allocation14 + $0x48] sm:$0xff] %vm1230, %v1274
          %3216 = vst.msk [vmem:[#allocation14 + $0x50] sm:$0xff] %vm1230, %v1513
          %3217 = vst.msk [vmem:[#allocation14 + $0x58] sm:$0xff] %vm1230, %v1514
          %3218 = vst.msk [vmem:[#allocation14 + $0x60] sm:$0xff] %vm1230, %v1757
          %3219 = vst.msk [vmem:[#allocation14 + $0x68] sm:$0xff] %vm1230, %v1758
          %3220 = vst.msk [vmem:[#allocation14 + $0x70] sm:$0xff] %vm1230, %v1999
          %3221 = vst.msk [vmem:[#allocation14 + $0x78] sm:$0xff] %vm1230, %v2000
        $region108: #{tpu_custom_call.1} parent=71 // pred_fallthru
          _
        // Predicated region
        $region109: #{tpu_custom_call.1} parent=71 // pred_check
          %p3222 = pneg %p398
        $region110: #{tpu_custom_call.1} parent=71 // pred_check_branch
          %3224 = sbr.rel (%p3222) target = $region112
        $region111: #{tpu_custom_call.1} parent=71 // pred_region
          %s3225 = smul.u32 2, %s34
          %s3227 = ssub.s32 512, 512
          %3228 = vsyncadd [#allocation5], %s3227
          %s3229 = smul.addr %s3225, 2
          %s3230 = smul.addr %s3229, 128
          %s3231 = scalar_lea.hbm %s13, %s3230
          %s3232 = sshll.u32 [#allocation13], 4
          %s3233 = int_to_ptr.vmem [resolvable:$true] %s3232
          %3238 = dma.vmem_to_hbm [thread:$0]  %s3233, 512, %s3231, [#allocation5], 128, 128, 8
        $region112: #{tpu_custom_call.1} parent=71 // pred_fallthru
          _
        // Predicated region
        $region113: #{tpu_custom_call.1} parent=71 // pred_check
          %p3239 = pneg %p424
        $region114: #{tpu_custom_call.1} parent=71 // pred_check_branch
          %3241 = sbr.rel (%p3239) target = $region116
        $region115: #{tpu_custom_call.1} parent=71 // pred_region
          %s3242 = smul.u32 2, %s34
          %s3244 = ssub.s32 2048, 2048
          %3245 = vsyncadd [#allocation15], %s3244
          %s3246 = smul.addr %s3242, 8
          %s3247 = smul.addr %s3246, 128
          %s3248 = scalar_lea.hbm %s14, %s3247
          %s3249 = sshll.u32 [#allocation14], 4
          %s3250 = int_to_ptr.vmem [resolvable:$true] %s3249
          %3255 = dma.vmem_to_hbm [thread:$0]  %s3250, 2048, %s3248, [#allocation15], 128, 128, 8
        $region116: #{tpu_custom_call.1} parent=71 // pred_fallthru
          _
        // Predicated region
        $region117: #{tpu_custom_call.1} parent=71 // pred_check
          %p3256 = pneg %p398
        $region118: #{tpu_custom_call.1} parent=71 // pred_check_branch
          %3258 = sbr.rel (%p3256) target = $region120
        $region119: #{tpu_custom_call.1} parent=71 // pred_region
          %3259 = dma.done [#allocation5], 512
        $region120: #{tpu_custom_call.1} parent=71 // pred_fallthru
          _
        // Predicated region
        $region121: #{tpu_custom_call.1} parent=71 // pred_check
          %p3260 = pneg %p424
        $region122: #{tpu_custom_call.1} parent=71 // pred_check_branch
          %3262 = sbr.rel (%p3260) target = $region124
        $region123: #{tpu_custom_call.1} parent=71 // pred_region
          %3263 = dma.done [#allocation15], 2048
        $region124: #{tpu_custom_call.1} parent=71 // pred_fallthru
          _
      $region72: #{tpu_custom_call.1} parent=5 // pred_fallthru
        _
      %p3264 = scmp.le.s32.totalorder 2, %s25
      // Predicated region
      $region125: #{tpu_custom_call.1} parent=5 // pred_check
        %p3265 = pneg %p3264
      $region126: #{tpu_custom_call.1} parent=5 // pred_check_branch
        %3267 = sbr.rel (%p3265) target = $region128
      $region127: #{tpu_custom_call.1} parent=5 // pred_region
        %s3268 = ssub.s32 %s25, 2
      $region128: #{tpu_custom_call.1} parent=5 // pred_fallthru
        _
    $region6: #{tpu_custom_call.1} parent=1 // loop_footer
      %s29 = sadd.s32 1, %s25
    $region7: #{tpu_custom_call.1} parent=1 // loop_footer_branch
      %24 = sbr.rel target = $region3
    $region8: #{tpu_custom_call.1} parent=1 // loop_exit
      _
    %3269 = vsyncpa [#allocation4], 1
    %s3270 = scalar_lea.sflag [#allocation4], 1
    %3271 = vsyncpa %s3270, 1
    %3272 = vsyncpa [#allocation7], 1
    %3273 = vsyncpa [#allocation5], 1
    %s3274 = scalar_lea.sflag [#allocation5], 1
    %3275 = vsyncpa %s3274, 1
    %3276 = vsyncpa [#allocation15], 1

</llo_original>
